<compile_context>
chip_gen: v7x
topology: tpu7x:2x2x1
jax: 0.10.0
libtpu: 0.0.40
codegen_flags: <defaults>
</compile_context>

<pallas_src>
import numpy as np
import jax
import jax.numpy as jnp
from jax.experimental import pallas as pl
from jax.experimental.pallas import tpu as pltpu

_F32 = jnp.float32
_EPS = 1e-5


def _sigmoid(z):
    # single EUP transcendental instead of exp + divide
    return 0.5 * jnp.tanh(0.5 * z) + 0.5


def _ae_kernel(
    # data + (1, N) constant masks
    x_ref, keepl_ref, keepr_ref, even_ref,
    # encoder1 (Conv1d(1,64,3,p=1) + BN(64) + Sigmoid)
    w_e1, b_e1, g_e1, s_e1,
    # encoder2 (Conv1d(64,64,3,p=1) + BN(64) + Sigmoid)   [3 tap weights]
    w_e2_0, w_e2_1, w_e2_2, b_e2, g_e2, s_e2,
    # encoder3 (Conv1d(64,1,3,p=1) + BN(1) + Sigmoid)     [3 tap weights]
    w_e3_0, w_e3_1, w_e3_2, b_e3, g_e3, s_e3,
    # encoder4 (Conv1d(1,1,2,s=2) + BN(1) + Sigmoid)
    w4a, w4b, b_e4, g_e4, s_e4,
    # decoder4 (ConvTranspose1d(1,1,2,s=2) + BN(1) + Sigmoid)
    wd4a, wd4b, b_d4, g_d4, s_d4,
    # decoder3 (Conv1d(1,64,3,p=1) + BN(64) + Sigmoid)
    w_d3, b_d3, g_d3, s_d3,
    # decoder2 (Conv1d(64,64,3,p=1) + BN(64) + Sigmoid)   [3 tap weights]
    w_d2_0, w_d2_1, w_d2_2, b_d2, g_d2, s_d2,
    # decoder1 (Conv1d(64,1,3,p=1) + BN(1) + Sigmoid)     [3 tap weights]
    w_d1_0, w_d1_1, w_d1_2, b_d1, g_d1, s_d1,
    # em head (Linear(L/2, n_clus) expanded to full-L with zero odd rows)
    w_em, b_em,
    # outputs (PyTorch layout)
    enc1_o, enc2_o, enc3_o, enc4_o, dec4_o, dec3_o, dec2_o, dec1_o, em_o,
):
    B = enc1_o.shape[0]
    L = enc1_o.shape[2]
    N = x_ref.shape[1]

    keep_l = keepl_ref[...]          # 1.0 except 0.0 at l == 0     (per sequence)
    keep_r = keepr_ref[...]          # 1.0 except 0.0 at l == L-1   (per sequence)
    even_f = even_ref[...]           # 1.0 at even l (== even flat n, L is even)
    odd_f = 1.0 - even_f

    def bn_sig(y, g_ref, s_ref, mask=None, inv_count=None):
        # training-mode BatchNorm1d (biased variance, eps=1e-5), one-pass stats,
        # folded into a single per-channel scale/shift before the sigmoid.
        if mask is None:
            inv = 1.0 / N
            s1 = jnp.sum(y, axis=1, keepdims=True)
            s2 = jnp.sum(y * y, axis=1, keepdims=True)
        else:
            inv = inv_count
            ym = y * mask
            s1 = jnp.sum(ym, axis=1, keepdims=True)
            s2 = jnp.sum(ym * y, axis=1, keepdims=True)
        mean = s1 * inv
        var = jnp.maximum(s2 * inv - mean * mean, 0.0)
        scale = g_ref[...] * jax.lax.rsqrt(var + _EPS)
        shift = s_ref[...] - mean * scale
        return _sigmoid(y * scale + shift)

    def shifted(xv):
        # x[:, l-1] / x[:, l+1] with zero padding at sequence boundaries
        xl = pltpu.roll(xv, 1, axis=1) * keep_l
        xr = pltpu.roll(xv, N - 1, axis=1) * keep_r
        return xl, xr

    def conv3_cin1(xv, w_ref, b_ref):
        # xv: (1, N); w: (Cout, 3) -> broadcast multiplies (VPU), no matmul
        xl, xr = shifted(xv)
        w = w_ref[...]
        return w[:, 0:1] * xl + w[:, 1:2] * xv + w[:, 2:3] * xr + b_ref[...]

    def conv3_cin64(xv, w0_ref, w1_ref, w2_ref, b_ref):
        # xv: (Cin, N); three (Cout, Cin) @ (Cin, N) MXU matmuls, f32 acc.
        # No (3*Cin, N) slab is materialized (saves VMEM stores on the vst slot).
        xl, xr = shifted(xv)
        acc = jnp.dot(w1_ref[...], xv, preferred_element_type=_F32)
        acc = acc + jnp.dot(w0_ref[...], xl, preferred_element_type=_F32)
        acc = acc + jnp.dot(w2_ref[...], xr, preferred_element_type=_F32)
        return acc + b_ref[...]

    def write_ncl(out_ref, val):
        # (C, B*L) value -> (B, C, L) output ref (per-batch lane-slice stores);
        # avoids wrapper-side XLA transposes of the big activations.
        for b in range(B):
            out_ref[b] = val[:, b * L:(b + 1) * L]

    xv = x_ref[...]                                              # (1, N)

    e1 = bn_sig(conv3_cin1(xv, w_e1, b_e1), g_e1, s_e1)          # (64, N)
    write_ncl(enc1_o, e1)
    e2 = bn_sig(conv3_cin64(e1, w_e2_0, w_e2_1, w_e2_2, b_e2), g_e2, s_e2)
    write_ncl(enc2_o, e2)
    e3 = bn_sig(conv3_cin64(e2, w_e3_0, w_e3_1, w_e3_2, b_e3), g_e3, s_e3)
    write_ncl(enc3_o, e3)

    # encoder4: Conv1d(1,1,k=2,s=2) evaluated in the full-N domain.
    # out for (b, j) lives at even lane n = b*L + 2j:  w0*x[n] + w1*x[n+1] + b.
    # BN statistics are taken over the even lanes only (count = N/2).
    e3_next = pltpu.roll(e3, N - 1, axis=1)                      # e3[:, n+1]
    y4 = w4a[...] * e3 + w4b[...] * e3_next + b_e4[...]
    e4 = bn_sig(y4, g_e4, s_e4, mask=even_f, inv_count=2.0 / N)  # (1, N)
    write_ncl(enc4_o, e4)        # odd lanes hold don't-care values (see wrapper)

    # em head: softmax(Linear(enc4)).  w_em has zeros at odd rows, so the
    # odd-lane garbage in e4 is annihilated by the matmul itself.
    rows = [e4[:, b * L:(b + 1) * L] for b in range(B)]          # each (1, L)
    a_mat = jnp.concatenate(rows, axis=0)                        # (B, L)
    logits = jnp.dot(a_mat, w_em[...], preferred_element_type=_F32) + b_em[...]
    mx = jnp.max(logits, axis=1, keepdims=True)
    ex = jnp.exp(logits - mx)
    em_o[...] = ex / jnp.sum(ex, axis=1, keepdims=True)

    # decoder4: ConvTranspose1d(1,1,k=2,s=2):
    #   even n: w0 * e4[n] + b      odd n: w1 * e4[n-1] + b
    e4_prev = pltpu.roll(e4, 1, axis=1)                          # e4[:, n-1]
    d4_pre = even_f * (wd4a[...] * e4) + odd_f * (wd4b[...] * e4_prev) + b_d4[...]
    d4 = bn_sig(d4_pre, g_d4, s_d4)                              # (1, N)
    write_ncl(dec4_o, d4)

    d3 = bn_sig(conv3_cin1(d4, w_d3, b_d3), g_d3, s_d3)          # (64, N)
    write_ncl(dec3_o, d3)
    d2 = bn_sig(conv3_cin64(d3, w_d2_0, w_d2_1, w_d2_2, b_d2), g_d2, s_d2)
    write_ncl(dec2_o, d2)
    d1 = bn_sig(conv3_cin64(d2, w_d1_0, w_d1_1, w_d1_2, b_d1), g_d1, s_d1)
    write_ncl(dec1_o, d1)


def _build_masks(B, L):
    N = B * L
    pos = np.arange(N) % L
    keep_l = (pos != 0).astype(np.float32).reshape(1, N)
    keep_r = (pos != (L - 1)).astype(np.float32).reshape(1, N)
    even = ((pos % 2) == 0).astype(np.float32).reshape(1, N)
    return jnp.asarray(keep_l), jnp.asarray(keep_r), jnp.asarray(even)


def init_params(key, L, n_clus):
    # Deterministic synthetic init (PyTorch-like uniform bounds); BN gamma=1, beta=0.
    Lh = L // 2
    keys = iter(jax.random.split(key, 40))

    def uconv(cout, cin, k):
        bound = 1.0 / np.sqrt(cin * k)
        w = jax.random.uniform(next(keys), (cout, cin, k), _F32, -bound, bound)
        b = jax.random.uniform(next(keys), (cout,), _F32, -bound, bound)
        return w, b

    def bn(c):
        return jnp.ones((c, 1), _F32), jnp.zeros((c, 1), _F32)

    def conv3_cin1_params(cout):
        w, b = uconv(cout, 1, 3)
        g, s = bn(cout)
        return [w[:, 0, :], b.reshape(cout, 1), g, s]            # w: (Cout, 3)

    def conv3_cin64_params(cout, cin):
        w, b = uconv(cout, cin, 3)
        g, s = bn(cout)
        return [w[:, :, 0], w[:, :, 1], w[:, :, 2],              # 3 x (Cout, Cin)
                b.reshape(cout, 1), g, s]

    main = []
    main += conv3_cin1_params(64)        # encoder1
    main += conv3_cin64_params(64, 64)   # encoder2
    main += conv3_cin64_params(1, 64)    # encoder3
    # encoder4: Conv1d(1,1,k=2,s=2)
    w4, b4 = uconv(1, 1, 2)
    g4, s4 = bn(1)
    main += [w4[:, :, 0].reshape(1, 1), w4[:, :, 1].reshape(1, 1),
             b4.reshape(1, 1), g4, s4]
    # decoder4: ConvTranspose1d(1,1,k=2,s=2)  (weight shape (Cin,Cout,K)=(1,1,2))
    wd4, bd4 = uconv(1, 1, 2)
    gd4, sd4 = bn(1)
    main += [wd4[:, :, 0].reshape(1, 1), wd4[:, :, 1].reshape(1, 1),
             bd4.reshape(1, 1), gd4, sd4]
    main += conv3_cin1_params(64)        # decoder3
    main += conv3_cin64_params(64, 64)   # decoder2
    main += conv3_cin64_params(1, 64)    # decoder1
    # em = Linear(L/2, n_clus); expand to full-L weight with zeros at odd rows
    bound = 1.0 / np.sqrt(Lh)
    W = jax.random.uniform(next(keys), (n_clus, Lh), _F32, -bound, bound)
    bem = jax.random.uniform(next(keys), (n_clus,), _F32, -bound, bound)
    w_full = jnp.zeros((L, n_clus), _F32).at[0::2, :].set(jnp.transpose(W))
    main += [w_full, bem.reshape(1, n_clus)]
    return main


def depict_forward(x, params, n_clus):
    """x: (B, 1, L) NCL float32 (PyTorch layout). Returns the 9-tuple of forward()."""
    B, c_in, L = x.shape
    assert c_in == 1 and L % 2 == 0
    N = B * L
    Lh = L // 2

    keep_l, keep_r, even_f = _build_masks(B, L)
    x_flat = x[:, 0, :].reshape(1, N).astype(_F32)

    inputs = [x_flat, keep_l, keep_r, even_f] + list(params)
    out_shape = [
        jax.ShapeDtypeStruct((B, 64, L), _F32),   # enc1
        jax.ShapeDtypeStruct((B, 64, L), _F32),   # enc2
        jax.ShapeDtypeStruct((B, 1, L), _F32),    # enc3
        jax.ShapeDtypeStruct((B, 1, L), _F32),    # enc4 (full-L, valid at even l)
        jax.ShapeDtypeStruct((B, 1, L), _F32),    # dec4
        jax.ShapeDtypeStruct((B, 64, L), _F32),   # dec3
        jax.ShapeDtypeStruct((B, 64, L), _F32),   # dec2
        jax.ShapeDtypeStruct((B, 1, L), _F32),    # dec1
        jax.ShapeDtypeStruct((B, n_clus), _F32),  # em
    ]
    vmem = pl.BlockSpec(memory_space=pltpu.MemorySpace.VMEM)

    # Size scoped VMEM from N (~2 KiB live f32 per lane at peak), clamp to a
    # range that also fits v7x's smaller physical VMEM at these sizes.
    est = 2048 * N + (8 << 20)
    vmem_bytes = int(min(max(est, 32 << 20), 96 << 20))

    outs = pl.pallas_call(
        _ae_kernel,
        out_shape=out_shape,
        in_specs=[vmem] * len(inputs),
        out_specs=[vmem] * len(out_shape),
        compiler_params=pltpu.CompilerParams(vmem_limit_bytes=vmem_bytes),
    )(*inputs)
    enc1, enc2, enc3, enc4_full, dec4, dec3, dec2, dec1, em = outs

    # compact the even positions of the full-L encoder4 activation -> (B, 1, L/2)
    enc4 = enc4_full[:, :, 0::2]
    return (enc1, enc2, enc3, enc4, dec4, dec3, dec2, dec1, em)


def _reference_forward(x, params, n_clus):
    # Pure-JAX (XLA) reference mirroring the PyTorch module, for sanity checking.
    B, _, L = x.shape
    p = list(params)
    w_e1, b_e1, g_e1, s_e1 = p[0:4]
    w_e2 = p[4:7]; b_e2, g_e2, s_e2 = p[7:10]
    w_e3 = p[10:13]; b_e3, g_e3, s_e3 = p[13:16]
    w4a, w4b, b_e4, g_e4, s_e4 = p[16:21]
    wd4a, wd4b, b_d4, g_d4, s_d4 = p[21:26]
    w_d3, b_d3, g_d3, s_d3 = p[26:30]
    w_d2 = p[30:33]; b_d2, g_d2, s_d2 = p[33:36]
    w_d1 = p[36:39]; b_d1, g_d1, s_d1 = p[39:42]
    w_em_full, b_em = p[42:44]

    def bn_sig(y, g, s):
        mean = jnp.mean(y, axis=(0, 2), keepdims=True)
        var = jnp.mean((y - mean) ** 2, axis=(0, 2), keepdims=True)
        yn = (y - mean) / jnp.sqrt(var + _EPS)
        return jax.nn.sigmoid(g.reshape(1, -1, 1) * yn + s.reshape(1, -1, 1))

    def conv3(y, taps, b):
        Ly = y.shape[-1]
        yl = jnp.pad(y, ((0, 0), (0, 0), (1, 0)))[:, :, :Ly]
        yr = jnp.pad(y, ((0, 0), (0, 0), (0, 1)))[:, :, 1:]
        out = (jnp.einsum('oc,bcl->bol', taps[0], yl)
               + jnp.einsum('oc,bcl->bol', taps[1], y)
               + jnp.einsum('oc,bcl->bol', taps[2], yr))
        return out + b.reshape(1, -1, 1)

    def split3(w):  # (Cout, 3) -> 3 x (Cout, 1)
        return [w[:, 0:1], w[:, 1:2], w[:, 2:3]]

    enc1 = bn_sig(conv3(x, split3(w_e1), b_e1), g_e1, s_e1)
    enc2 = bn_sig(conv3(enc1, w_e2, b_e2), g_e2, s_e2)
    enc3 = bn_sig(conv3(enc2, w_e3, b_e3), g_e3, s_e3)
    y4 = w4a * enc3[:, :, 0::2] + w4b * enc3[:, :, 1::2] + b_e4
    enc4 = bn_sig(y4, g_e4, s_e4)
    ev = wd4a * enc4 + b_d4
    od = wd4b * enc4 + b_d4
    d4_pre = jnp.stack([ev, od], axis=-1).reshape(B, 1, L)
    dec4 = bn_sig(d4_pre, g_d4, s_d4)
    dec3 = bn_sig(conv3(dec4, split3(w_d3), b_d3), g_d3, s_d3)
    dec2 = bn_sig(conv3(dec3, w_d2, b_d2), g_d2, s_d2)
    dec1 = bn_sig(conv3(dec2, w_d1, b_d1), g_d1, s_d1)
    logits = enc4[:, 0, :] @ w_em_full[0::2, :] + b_em
    em = jax.nn.softmax(logits, axis=1)
    return (enc1, enc2, enc3, enc4, dec4, dec3, dec2, dec1, em)


if __name__ == "__main__":
    B, L, n_clus = 2, 64, 4          # N = B*L = 128 -> lane-aligned flat layout
    key = jax.random.PRNGKey(0)
    kx, kp = jax.random.split(key)
    x = jax.random.normal(kx, (B, 1, L), _F32)
    params = init_params(kp, L, n_clus)

    outs = depict_forward(x, params, n_clus)
    jax.block_until_ready(outs)

    expected = [(B, 64, L), (B, 64, L), (B, 1, L), (B, 1, L // 2),
                (B, 1, L), (B, 64, L), (B, 64, L), (B, 1, L), (B, n_clus)]
    assert [tuple(o.shape) for o in outs] == expected
    assert all(bool(jnp.all(jnp.isfinite(o))) for o in outs)

    refs = _reference_forward(x, params, n_clus)
    for got, want in zip(outs, refs):
        np.testing.assert_allclose(np.asarray(got), np.asarray(want),
                                   rtol=2e-3, atol=2e-4)

    print("KERNEL_OK")
</pallas_src>

<mosaic_0001>
module attributes {stable_mosaic.version = 11 : i64} {
  func.func @_ae_kernel(%arg0: memref<1x128xf32, #tpu.memory_space<vmem>>, %arg1: memref<1x128xf32, #tpu.memory_space<vmem>>, %arg2: memref<1x128xf32, #tpu.memory_space<vmem>>, %arg3: memref<1x128xf32, #tpu.memory_space<vmem>>, %arg4: memref<64x3xf32, #tpu.memory_space<vmem>>, %arg5: memref<64x1xf32, #tpu.memory_space<vmem>>, %arg6: memref<64x1xf32, #tpu.memory_space<vmem>>, %arg7: memref<64x1xf32, #tpu.memory_space<vmem>>, %arg8: memref<64x64xf32, #tpu.memory_space<vmem>>, %arg9: memref<64x64xf32, #tpu.memory_space<vmem>>, %arg10: memref<64x64xf32, #tpu.memory_space<vmem>>, %arg11: memref<64x1xf32, #tpu.memory_space<vmem>>, %arg12: memref<64x1xf32, #tpu.memory_space<vmem>>, %arg13: memref<64x1xf32, #tpu.memory_space<vmem>>, %arg14: memref<1x64xf32, #tpu.memory_space<vmem>>, %arg15: memref<1x64xf32, #tpu.memory_space<vmem>>, %arg16: memref<1x64xf32, #tpu.memory_space<vmem>>, %arg17: memref<1x1xf32, #tpu.memory_space<vmem>>, %arg18: memref<1x1xf32, #tpu.memory_space<vmem>>, %arg19: memref<1x1xf32, #tpu.memory_space<vmem>>, %arg20: memref<1x1xf32, #tpu.memory_space<vmem>>, %arg21: memref<1x1xf32, #tpu.memory_space<vmem>>, %arg22: memref<1x1xf32, #tpu.memory_space<vmem>>, %arg23: memref<1x1xf32, #tpu.memory_space<vmem>>, %arg24: memref<1x1xf32, #tpu.memory_space<vmem>>, %arg25: memref<1x1xf32, #tpu.memory_space<vmem>>, %arg26: memref<1x1xf32, #tpu.memory_space<vmem>>, %arg27: memref<1x1xf32, #tpu.memory_space<vmem>>, %arg28: memref<1x1xf32, #tpu.memory_space<vmem>>, %arg29: memref<1x1xf32, #tpu.memory_space<vmem>>, %arg30: memref<64x3xf32, #tpu.memory_space<vmem>>, %arg31: memref<64x1xf32, #tpu.memory_space<vmem>>, %arg32: memref<64x1xf32, #tpu.memory_space<vmem>>, %arg33: memref<64x1xf32, #tpu.memory_space<vmem>>, %arg34: memref<64x64xf32, #tpu.memory_space<vmem>>, %arg35: memref<64x64xf32, #tpu.memory_space<vmem>>, %arg36: memref<64x64xf32, #tpu.memory_space<vmem>>, %arg37: memref<64x1xf32, #tpu.memory_space<vmem>>, %arg38: memref<64x1xf32, #tpu.memory_space<vmem>>, %arg39: memref<64x1xf32, #tpu.memory_space<vmem>>, %arg40: memref<1x64xf32, #tpu.memory_space<vmem>>, %arg41: memref<1x64xf32, #tpu.memory_space<vmem>>, %arg42: memref<1x64xf32, #tpu.memory_space<vmem>>, %arg43: memref<1x1xf32, #tpu.memory_space<vmem>>, %arg44: memref<1x1xf32, #tpu.memory_space<vmem>>, %arg45: memref<1x1xf32, #tpu.memory_space<vmem>>, %arg46: memref<64x4xf32, #tpu.memory_space<vmem>>, %arg47: memref<1x4xf32, #tpu.memory_space<vmem>>, %arg48: memref<2x64x64xf32, #tpu.memory_space<vmem>>, %arg49: memref<2x64x64xf32, #tpu.memory_space<vmem>>, %arg50: memref<2x1x64xf32, #tpu.memory_space<vmem>>, %arg51: memref<2x1x64xf32, #tpu.memory_space<vmem>>, %arg52: memref<2x1x64xf32, #tpu.memory_space<vmem>>, %arg53: memref<2x64x64xf32, #tpu.memory_space<vmem>>, %arg54: memref<2x64x64xf32, #tpu.memory_space<vmem>>, %arg55: memref<2x1x64xf32, #tpu.memory_space<vmem>>, %arg56: memref<2x4xf32, #tpu.memory_space<vmem>>) attributes {dimension_semantics = [], scalar_prefetch = 0 : i64, scratch_operands = 0 : i64, tpu.core_type = #tpu.core_type<tc>} {
    %c0 = arith.constant 0 : index
    %c0_0 = arith.constant 0 : index
    %0 = vector.load %arg1[%c0, %c0_0] : memref<1x128xf32, #tpu.memory_space<vmem>>, vector<1x128xf32>
    %c0_1 = arith.constant 0 : index
    %c0_2 = arith.constant 0 : index
    %1 = vector.load %arg2[%c0_1, %c0_2] : memref<1x128xf32, #tpu.memory_space<vmem>>, vector<1x128xf32>
    %c0_3 = arith.constant 0 : index
    %c0_4 = arith.constant 0 : index
    %2 = vector.load %arg3[%c0_3, %c0_4] : memref<1x128xf32, #tpu.memory_space<vmem>>, vector<1x128xf32>
    %cst = arith.constant 1.000000e+00 : f32
    %3 = vector.broadcast %cst : f32 to vector<1x128xf32>
    %4 = arith.subf %3, %2 : vector<1x128xf32>
    %c0_5 = arith.constant 0 : index
    %c0_6 = arith.constant 0 : index
    %5 = vector.load %arg0[%c0_5, %c0_6] : memref<1x128xf32, #tpu.memory_space<vmem>>, vector<1x128xf32>
    %c1_i32 = arith.constant 1 : i32
    %6 = tpu.dynamic_rotate %5 by %c1_i32 dim 1 : vector<1x128xf32>, i32 -> vector<1x128xf32>
    %7 = arith.mulf %6, %0 : vector<1x128xf32>
    %c127_i32 = arith.constant 127 : i32
    %8 = tpu.dynamic_rotate %5 by %c127_i32 dim 1 : vector<1x128xf32>, i32 -> vector<1x128xf32>
    %9 = arith.mulf %8, %1 : vector<1x128xf32>
    %c0_7 = arith.constant 0 : index
    %c0_8 = arith.constant 0 : index
    %10 = vector.load %arg4[%c0_7, %c0_8] : memref<64x3xf32, #tpu.memory_space<vmem>>, vector<64x3xf32>
    %11 = vector.extract_strided_slice %10 {offsets = [0, 0], sizes = [64, 1], strides = [1, 1]} : vector<64x3xf32> to vector<64x1xf32>
    %12 = vector.broadcast %11 : vector<64x1xf32> to vector<64x128xf32>
    %13 = vector.broadcast %7 : vector<1x128xf32> to vector<64x128xf32>
    %14 = arith.mulf %12, %13 : vector<64x128xf32>
    %15 = vector.extract_strided_slice %10 {offsets = [0, 1], sizes = [64, 1], strides = [1, 1]} : vector<64x3xf32> to vector<64x1xf32>
    %16 = vector.broadcast %15 : vector<64x1xf32> to vector<64x128xf32>
    %17 = vector.broadcast %5 : vector<1x128xf32> to vector<64x128xf32>
    %18 = arith.mulf %16, %17 : vector<64x128xf32>
    %19 = arith.addf %14, %18 : vector<64x128xf32>
    %20 = vector.extract_strided_slice %10 {offsets = [0, 2], sizes = [64, 1], strides = [1, 1]} : vector<64x3xf32> to vector<64x1xf32>
    %21 = vector.broadcast %20 : vector<64x1xf32> to vector<64x128xf32>
    %22 = vector.broadcast %9 : vector<1x128xf32> to vector<64x128xf32>
    %23 = arith.mulf %21, %22 : vector<64x128xf32>
    %24 = arith.addf %19, %23 : vector<64x128xf32>
    %c0_9 = arith.constant 0 : index
    %c0_10 = arith.constant 0 : index
    %25 = vector.load %arg5[%c0_9, %c0_10] : memref<64x1xf32, #tpu.memory_space<vmem>>, vector<64x1xf32>
    %26 = vector.broadcast %25 : vector<64x1xf32> to vector<64x128xf32>
    %27 = arith.addf %24, %26 : vector<64x128xf32>
    %cst_11 = arith.constant dense<0.000000e+00> : vector<64xf32>
    %28 = vector.multi_reduction <add>, %27, %cst_11 [1] : vector<64x128xf32> to vector<64xf32>
    %29 = vector.shape_cast %28 : vector<64xf32> to vector<64x1xf32>
    %30 = arith.mulf %27, %27 : vector<64x128xf32>
    %cst_12 = arith.constant dense<0.000000e+00> : vector<64xf32>
    %31 = vector.multi_reduction <add>, %30, %cst_12 [1] : vector<64x128xf32> to vector<64xf32>
    %32 = vector.shape_cast %31 : vector<64xf32> to vector<64x1xf32>
    %cst_13 = arith.constant 7.812500e-03 : f32
    %33 = vector.broadcast %cst_13 : f32 to vector<64x1xf32>
    %34 = arith.mulf %29, %33 : vector<64x1xf32>
    %cst_14 = arith.constant 7.812500e-03 : f32
    %35 = vector.broadcast %cst_14 : f32 to vector<64x1xf32>
    %36 = arith.mulf %32, %35 : vector<64x1xf32>
    %37 = arith.mulf %34, %34 : vector<64x1xf32>
    %38 = arith.subf %36, %37 : vector<64x1xf32>
    %cst_15 = arith.constant 0.000000e+00 : f32
    %39 = vector.broadcast %cst_15 : f32 to vector<64x1xf32>
    %40 = arith.maximumf %38, %39 : vector<64x1xf32>
    %c0_16 = arith.constant 0 : index
    %c0_17 = arith.constant 0 : index
    %41 = vector.load %arg6[%c0_16, %c0_17] : memref<64x1xf32, #tpu.memory_space<vmem>>, vector<64x1xf32>
    %cst_18 = arith.constant 9.99999974E-6 : f32
    %42 = vector.broadcast %cst_18 : f32 to vector<64x1xf32>
    %43 = arith.addf %40, %42 : vector<64x1xf32>
    %44 = math.rsqrt %43 : vector<64x1xf32>
    %45 = arith.mulf %41, %44 : vector<64x1xf32>
    %c0_19 = arith.constant 0 : index
    %c0_20 = arith.constant 0 : index
    %46 = vector.load %arg7[%c0_19, %c0_20] : memref<64x1xf32, #tpu.memory_space<vmem>>, vector<64x1xf32>
    %47 = arith.mulf %34, %45 : vector<64x1xf32>
    %48 = arith.subf %46, %47 : vector<64x1xf32>
    %49 = vector.broadcast %45 : vector<64x1xf32> to vector<64x128xf32>
    %50 = arith.mulf %27, %49 : vector<64x128xf32>
    %51 = vector.broadcast %48 : vector<64x1xf32> to vector<64x128xf32>
    %52 = arith.addf %50, %51 : vector<64x128xf32>
    %cst_21 = arith.constant 5.000000e-01 : f32
    %53 = vector.broadcast %cst_21 : f32 to vector<64x128xf32>
    %54 = arith.mulf %53, %52 : vector<64x128xf32>
    %55 = math.tanh %54 : vector<64x128xf32>
    %cst_22 = arith.constant 5.000000e-01 : f32
    %56 = vector.broadcast %cst_22 : f32 to vector<64x128xf32>
    %57 = arith.mulf %56, %55 : vector<64x128xf32>
    %cst_23 = arith.constant 5.000000e-01 : f32
    %58 = vector.broadcast %cst_23 : f32 to vector<64x128xf32>
    %59 = arith.addf %57, %58 : vector<64x128xf32>
    %60 = vector.extract_strided_slice %59 {offsets = [0, 0], sizes = [64, 64], strides = [1, 1]} : vector<64x128xf32> to vector<64x64xf32>
    %c0_24 = arith.constant 0 : index
    %c0_25 = arith.constant 0 : index
    %c0_26 = arith.constant 0 : index
    %61 = vector.load %arg48[%c0_24, %c0_25, %c0_26] : memref<2x64x64xf32, #tpu.memory_space<vmem>>, vector<1x64x64xf32>
    %62 = vector.shape_cast %61 : vector<1x64x64xf32> to vector<64x64xf32>
    %63 = vector.shape_cast %60 : vector<64x64xf32> to vector<1x64x64xf32>
    tpu.vector_store %arg48[%c0_24, %c0_25, %c0_26], %63 {strides = array<i32>} : memref<2x64x64xf32, #tpu.memory_space<vmem>>, vector<1x64x64xf32>,
    %64 = vector.extract_strided_slice %59 {offsets = [0, 64], sizes = [64, 64], strides = [1, 1]} : vector<64x128xf32> to vector<64x64xf32>
    %c1 = arith.constant 1 : index
    %c0_27 = arith.constant 0 : index
    %c0_28 = arith.constant 0 : index
    %65 = vector.load %arg48[%c1, %c0_27, %c0_28] : memref<2x64x64xf32, #tpu.memory_space<vmem>>, vector<1x64x64xf32>
    %66 = vector.shape_cast %65 : vector<1x64x64xf32> to vector<64x64xf32>
    %67 = vector.shape_cast %64 : vector<64x64xf32> to vector<1x64x64xf32>
    tpu.vector_store %arg48[%c1, %c0_27, %c0_28], %67 {strides = array<i32>} : memref<2x64x64xf32, #tpu.memory_space<vmem>>, vector<1x64x64xf32>,
    %c1_i32_29 = arith.constant 1 : i32
    %68 = tpu.dynamic_rotate %59 by %c1_i32_29 dim 1 : vector<64x128xf32>, i32 -> vector<64x128xf32>
    %69 = vector.broadcast %0 : vector<1x128xf32> to vector<64x128xf32>
    %70 = arith.mulf %68, %69 : vector<64x128xf32>
    %c127_i32_30 = arith.constant 127 : i32
    %71 = tpu.dynamic_rotate %59 by %c127_i32_30 dim 1 : vector<64x128xf32>, i32 -> vector<64x128xf32>
    %72 = vector.broadcast %1 : vector<1x128xf32> to vector<64x128xf32>
    %73 = arith.mulf %71, %72 : vector<64x128xf32>
    %c0_31 = arith.constant 0 : index
    %c0_32 = arith.constant 0 : index
    %74 = vector.load %arg9[%c0_31, %c0_32] : memref<64x64xf32, #tpu.memory_space<vmem>>, vector<64x64xf32>
    %cst_33 = arith.constant dense<0.000000e+00> : vector<64x128xf32>
    %75 = tpu.matmul %74, %59, %cst_33 {dimension_numbers = #tpu.dot_dimension_numbers<[1], [0], [0], [1], [0, 0, 1, 1], [], []>} : vector<64x64xf32>, vector<64x128xf32>, vector<64x128xf32> -> vector<64x128xf32>
    %c0_34 = arith.constant 0 : index
    %c0_35 = arith.constant 0 : index
    %76 = vector.load %arg8[%c0_34, %c0_35] : memref<64x64xf32, #tpu.memory_space<vmem>>, vector<64x64xf32>
    %cst_36 = arith.constant dense<0.000000e+00> : vector<64x128xf32>
    %77 = tpu.matmul %76, %70, %cst_36 {dimension_numbers = #tpu.dot_dimension_numbers<[1], [0], [0], [1], [0, 0, 1, 1], [], []>} : vector<64x64xf32>, vector<64x128xf32>, vector<64x128xf32> -> vector<64x128xf32>
    %78 = arith.addf %75, %77 : vector<64x128xf32>
    %c0_37 = arith.constant 0 : index
    %c0_38 = arith.constant 0 : index
    %79 = vector.load %arg10[%c0_37, %c0_38] : memref<64x64xf32, #tpu.memory_space<vmem>>, vector<64x64xf32>
    %cst_39 = arith.constant dense<0.000000e+00> : vector<64x128xf32>
    %80 = tpu.matmul %79, %73, %cst_39 {dimension_numbers = #tpu.dot_dimension_numbers<[1], [0], [0], [1], [0, 0, 1, 1], [], []>} : vector<64x64xf32>, vector<64x128xf32>, vector<64x128xf32> -> vector<64x128xf32>
    %81 = arith.addf %78, %80 : vector<64x128xf32>
    %c0_40 = arith.constant 0 : index
    %c0_41 = arith.constant 0 : index
    %82 = vector.load %arg11[%c0_40, %c0_41] : memref<64x1xf32, #tpu.memory_space<vmem>>, vector<64x1xf32>
    %83 = vector.broadcast %82 : vector<64x1xf32> to vector<64x128xf32>
    %84 = arith.addf %81, %83 : vector<64x128xf32>
    %cst_42 = arith.constant dense<0.000000e+00> : vector<64xf32>
    %85 = vector.multi_reduction <add>, %84, %cst_42 [1] : vector<64x128xf32> to vector<64xf32>
    %86 = vector.shape_cast %85 : vector<64xf32> to vector<64x1xf32>
    %87 = arith.mulf %84, %84 : vector<64x128xf32>
    %cst_43 = arith.constant dense<0.000000e+00> : vector<64xf32>
    %88 = vector.multi_reduction <add>, %87, %cst_43 [1] : vector<64x128xf32> to vector<64xf32>
    %89 = vector.shape_cast %88 : vector<64xf32> to vector<64x1xf32>
    %cst_44 = arith.constant 7.812500e-03 : f32
    %90 = vector.broadcast %cst_44 : f32 to vector<64x1xf32>
    %91 = arith.mulf %86, %90 : vector<64x1xf32>
    %cst_45 = arith.constant 7.812500e-03 : f32
    %92 = vector.broadcast %cst_45 : f32 to vector<64x1xf32>
    %93 = arith.mulf %89, %92 : vector<64x1xf32>
    %94 = arith.mulf %91, %91 : vector<64x1xf32>
    %95 = arith.subf %93, %94 : vector<64x1xf32>
    %cst_46 = arith.constant 0.000000e+00 : f32
    %96 = vector.broadcast %cst_46 : f32 to vector<64x1xf32>
    %97 = arith.maximumf %95, %96 : vector<64x1xf32>
    %c0_47 = arith.constant 0 : index
    %c0_48 = arith.constant 0 : index
    %98 = vector.load %arg12[%c0_47, %c0_48] : memref<64x1xf32, #tpu.memory_space<vmem>>, vector<64x1xf32>
    %cst_49 = arith.constant 9.99999974E-6 : f32
    %99 = vector.broadcast %cst_49 : f32 to vector<64x1xf32>
    %100 = arith.addf %97, %99 : vector<64x1xf32>
    %101 = math.rsqrt %100 : vector<64x1xf32>
    %102 = arith.mulf %98, %101 : vector<64x1xf32>
    %c0_50 = arith.constant 0 : index
    %c0_51 = arith.constant 0 : index
    %103 = vector.load %arg13[%c0_50, %c0_51] : memref<64x1xf32, #tpu.memory_space<vmem>>, vector<64x1xf32>
    %104 = arith.mulf %91, %102 : vector<64x1xf32>
    %105 = arith.subf %103, %104 : vector<64x1xf32>
    %106 = vector.broadcast %102 : vector<64x1xf32> to vector<64x128xf32>
    %107 = arith.mulf %84, %106 : vector<64x128xf32>
    %108 = vector.broadcast %105 : vector<64x1xf32> to vector<64x128xf32>
    %109 = arith.addf %107, %108 : vector<64x128xf32>
    %cst_52 = arith.constant 5.000000e-01 : f32
    %110 = vector.broadcast %cst_52 : f32 to vector<64x128xf32>
    %111 = arith.mulf %110, %109 : vector<64x128xf32>
    %112 = math.tanh %111 : vector<64x128xf32>
    %cst_53 = arith.constant 5.000000e-01 : f32
    %113 = vector.broadcast %cst_53 : f32 to vector<64x128xf32>
    %114 = arith.mulf %113, %112 : vector<64x128xf32>
    %cst_54 = arith.constant 5.000000e-01 : f32
    %115 = vector.broadcast %cst_54 : f32 to vector<64x128xf32>
    %116 = arith.addf %114, %115 : vector<64x128xf32>
    %117 = vector.extract_strided_slice %116 {offsets = [0, 0], sizes = [64, 64], strides = [1, 1]} : vector<64x128xf32> to vector<64x64xf32>
    %c0_55 = arith.constant 0 : index
    %c0_56 = arith.constant 0 : index
    %c0_57 = arith.constant 0 : index
    %118 = vector.load %arg49[%c0_55, %c0_56, %c0_57] : memref<2x64x64xf32, #tpu.memory_space<vmem>>, vector<1x64x64xf32>
    %119 = vector.shape_cast %118 : vector<1x64x64xf32> to vector<64x64xf32>
    %120 = vector.shape_cast %117 : vector<64x64xf32> to vector<1x64x64xf32>
    tpu.vector_store %arg49[%c0_55, %c0_56, %c0_57], %120 {strides = array<i32>} : memref<2x64x64xf32, #tpu.memory_space<vmem>>, vector<1x64x64xf32>,
    %121 = vector.extract_strided_slice %116 {offsets = [0, 64], sizes = [64, 64], strides = [1, 1]} : vector<64x128xf32> to vector<64x64xf32>
    %c1_58 = arith.constant 1 : index
    %c0_59 = arith.constant 0 : index
    %c0_60 = arith.constant 0 : index
    %122 = vector.load %arg49[%c1_58, %c0_59, %c0_60] : memref<2x64x64xf32, #tpu.memory_space<vmem>>, vector<1x64x64xf32>
    %123 = vector.shape_cast %122 : vector<1x64x64xf32> to vector<64x64xf32>
    %124 = vector.shape_cast %121 : vector<64x64xf32> to vector<1x64x64xf32>
    tpu.vector_store %arg49[%c1_58, %c0_59, %c0_60], %124 {strides = array<i32>} : memref<2x64x64xf32, #tpu.memory_space<vmem>>, vector<1x64x64xf32>,
    %c1_i32_61 = arith.constant 1 : i32
    %125 = tpu.dynamic_rotate %116 by %c1_i32_61 dim 1 : vector<64x128xf32>, i32 -> vector<64x128xf32>
    %126 = vector.broadcast %0 : vector<1x128xf32> to vector<64x128xf32>
    %127 = arith.mulf %125, %126 : vector<64x128xf32>
    %c127_i32_62 = arith.constant 127 : i32
    %128 = tpu.dynamic_rotate %116 by %c127_i32_62 dim 1 : vector<64x128xf32>, i32 -> vector<64x128xf32>
    %129 = vector.broadcast %1 : vector<1x128xf32> to vector<64x128xf32>
    %130 = arith.mulf %128, %129 : vector<64x128xf32>
    %c0_63 = arith.constant 0 : index
    %c0_64 = arith.constant 0 : index
    %131 = vector.load %arg15[%c0_63, %c0_64] : memref<1x64xf32, #tpu.memory_space<vmem>>, vector<1x64xf32>
    %cst_65 = arith.constant dense<0.000000e+00> : vector<1x128xf32>
    %132 = tpu.matmul %131, %116, %cst_65 {dimension_numbers = #tpu.dot_dimension_numbers<[1], [0], [0], [1], [0, 0, 1, 1], [], []>} : vector<1x64xf32>, vector<64x128xf32>, vector<1x128xf32> -> vector<1x128xf32>
    %c0_66 = arith.constant 0 : index
    %c0_67 = arith.constant 0 : index
    %133 = vector.load %arg14[%c0_66, %c0_67] : memref<1x64xf32, #tpu.memory_space<vmem>>, vector<1x64xf32>
    %cst_68 = arith.constant dense<0.000000e+00> : vector<1x128xf32>
    %134 = tpu.matmul %133, %127, %cst_68 {dimension_numbers = #tpu.dot_dimension_numbers<[1], [0], [0], [1], [0, 0, 1, 1], [], []>} : vector<1x64xf32>, vector<64x128xf32>, vector<1x128xf32> -> vector<1x128xf32>
    %135 = arith.addf %132, %134 : vector<1x128xf32>
    %c0_69 = arith.constant 0 : index
    %c0_70 = arith.constant 0 : index
    %136 = vector.load %arg16[%c0_69, %c0_70] : memref<1x64xf32, #tpu.memory_space<vmem>>, vector<1x64xf32>
    %cst_71 = arith.constant dense<0.000000e+00> : vector<1x128xf32>
    %137 = tpu.matmul %136, %130, %cst_71 {dimension_numbers = #tpu.dot_dimension_numbers<[1], [0], [0], [1], [0, 0, 1, 1], [], []>} : vector<1x64xf32>, vector<64x128xf32>, vector<1x128xf32> -> vector<1x128xf32>
    %138 = arith.addf %135, %137 : vector<1x128xf32>
    %c0_72 = arith.constant 0 : index
    %c0_73 = arith.constant 0 : index
    %139 = vector.load %arg17[%c0_72, %c0_73] : memref<1x1xf32, #tpu.memory_space<vmem>>, vector<1x1xf32>
    %140 = vector.broadcast %139 : vector<1x1xf32> to vector<1x128xf32>
    %141 = arith.addf %138, %140 : vector<1x128xf32>
    %cst_74 = arith.constant dense<0.000000e+00> : vector<1xf32>
    %142 = vector.multi_reduction <add>, %141, %cst_74 [1] : vector<1x128xf32> to vector<1xf32>
    %143 = vector.shape_cast %142 : vector<1xf32> to vector<1x1xf32>
    %144 = arith.mulf %141, %141 : vector<1x128xf32>
    %cst_75 = arith.constant dense<0.000000e+00> : vector<1xf32>
    %145 = vector.multi_reduction <add>, %144, %cst_75 [1] : vector<1x128xf32> to vector<1xf32>
    %146 = vector.shape_cast %145 : vector<1xf32> to vector<1x1xf32>
    %cst_76 = arith.constant 7.812500e-03 : f32
    %147 = vector.broadcast %cst_76 : f32 to vector<1x1xf32>
    %148 = arith.mulf %143, %147 : vector<1x1xf32>
    %cst_77 = arith.constant 7.812500e-03 : f32
    %149 = vector.broadcast %cst_77 : f32 to vector<1x1xf32>
    %150 = arith.mulf %146, %149 : vector<1x1xf32>
    %151 = arith.mulf %148, %148 : vector<1x1xf32>
    %152 = arith.subf %150, %151 : vector<1x1xf32>
    %cst_78 = arith.constant 0.000000e+00 : f32
    %153 = vector.broadcast %cst_78 : f32 to vector<1x1xf32>
    %154 = arith.maximumf %152, %153 : vector<1x1xf32>
    %c0_79 = arith.constant 0 : index
    %c0_80 = arith.constant 0 : index
    %155 = vector.load %arg18[%c0_79, %c0_80] : memref<1x1xf32, #tpu.memory_space<vmem>>, vector<1x1xf32>
    %cst_81 = arith.constant 9.99999974E-6 : f32
    %156 = vector.broadcast %cst_81 : f32 to vector<1x1xf32>
    %157 = arith.addf %154, %156 : vector<1x1xf32>
    %158 = math.rsqrt %157 : vector<1x1xf32>
    %159 = arith.mulf %155, %158 : vector<1x1xf32>
    %c0_82 = arith.constant 0 : index
    %c0_83 = arith.constant 0 : index
    %160 = vector.load %arg19[%c0_82, %c0_83] : memref<1x1xf32, #tpu.memory_space<vmem>>, vector<1x1xf32>
    %161 = arith.mulf %148, %159 : vector<1x1xf32>
    %162 = arith.subf %160, %161 : vector<1x1xf32>
    %163 = vector.broadcast %159 : vector<1x1xf32> to vector<1x128xf32>
    %164 = arith.mulf %141, %163 : vector<1x128xf32>
    %165 = vector.broadcast %162 : vector<1x1xf32> to vector<1x128xf32>
    %166 = arith.addf %164, %165 : vector<1x128xf32>
    %cst_84 = arith.constant 5.000000e-01 : f32
    %167 = vector.broadcast %cst_84 : f32 to vector<1x128xf32>
    %168 = arith.mulf %167, %166 : vector<1x128xf32>
    %169 = math.tanh %168 : vector<1x128xf32>
    %cst_85 = arith.constant 5.000000e-01 : f32
    %170 = vector.broadcast %cst_85 : f32 to vector<1x128xf32>
    %171 = arith.mulf %170, %169 : vector<1x128xf32>
    %cst_86 = arith.constant 5.000000e-01 : f32
    %172 = vector.broadcast %cst_86 : f32 to vector<1x128xf32>
    %173 = arith.addf %171, %172 : vector<1x128xf32>
    %174 = vector.extract_strided_slice %173 {offsets = [0, 0], sizes = [1, 64], strides = [1, 1]} : vector<1x128xf32> to vector<1x64xf32>
    %c0_87 = arith.constant 0 : index
    %c0_88 = arith.constant 0 : index
    %c0_89 = arith.constant 0 : index
    %175 = vector.load %arg50[%c0_87, %c0_88, %c0_89] : memref<2x1x64xf32, #tpu.memory_space<vmem>>, vector<1x1x64xf32>
    %176 = vector.shape_cast %175 : vector<1x1x64xf32> to vector<1x64xf32>
    %177 = vector.shape_cast %174 : vector<1x64xf32> to vector<1x1x64xf32>
    tpu.vector_store %arg50[%c0_87, %c0_88, %c0_89], %177 {strides = array<i32>} : memref<2x1x64xf32, #tpu.memory_space<vmem>>, vector<1x1x64xf32>,
    %178 = vector.extract_strided_slice %173 {offsets = [0, 64], sizes = [1, 64], strides = [1, 1]} : vector<1x128xf32> to vector<1x64xf32>
    %c1_90 = arith.constant 1 : index
    %c0_91 = arith.constant 0 : index
    %c0_92 = arith.constant 0 : index
    %179 = vector.load %arg50[%c1_90, %c0_91, %c0_92] : memref<2x1x64xf32, #tpu.memory_space<vmem>>, vector<1x1x64xf32>
    %180 = vector.shape_cast %179 : vector<1x1x64xf32> to vector<1x64xf32>
    %181 = vector.shape_cast %178 : vector<1x64xf32> to vector<1x1x64xf32>
    tpu.vector_store %arg50[%c1_90, %c0_91, %c0_92], %181 {strides = array<i32>} : memref<2x1x64xf32, #tpu.memory_space<vmem>>, vector<1x1x64xf32>,
    %c127_i32_93 = arith.constant 127 : i32
    %182 = tpu.dynamic_rotate %173 by %c127_i32_93 dim 1 : vector<1x128xf32>, i32 -> vector<1x128xf32>
    %c0_94 = arith.constant 0 : index
    %c0_95 = arith.constant 0 : index
    %183 = vector.load %arg20[%c0_94, %c0_95] : memref<1x1xf32, #tpu.memory_space<vmem>>, vector<1x1xf32>
    %184 = vector.broadcast %183 : vector<1x1xf32> to vector<1x128xf32>
    %185 = arith.mulf %184, %173 : vector<1x128xf32>
    %c0_96 = arith.constant 0 : index
    %c0_97 = arith.constant 0 : index
    %186 = vector.load %arg21[%c0_96, %c0_97] : memref<1x1xf32, #tpu.memory_space<vmem>>, vector<1x1xf32>
    %187 = vector.broadcast %186 : vector<1x1xf32> to vector<1x128xf32>
    %188 = arith.mulf %187, %182 : vector<1x128xf32>
    %189 = arith.addf %185, %188 : vector<1x128xf32>
    %c0_98 = arith.constant 0 : index
    %c0_99 = arith.constant 0 : index
    %190 = vector.load %arg22[%c0_98, %c0_99] : memref<1x1xf32, #tpu.memory_space<vmem>>, vector<1x1xf32>
    %191 = vector.broadcast %190 : vector<1x1xf32> to vector<1x128xf32>
    %192 = arith.addf %189, %191 : vector<1x128xf32>
    %193 = arith.mulf %192, %2 : vector<1x128xf32>
    %cst_100 = arith.constant dense<0.000000e+00> : vector<1xf32>
    %194 = vector.multi_reduction <add>, %193, %cst_100 [1] : vector<1x128xf32> to vector<1xf32>
    %195 = vector.shape_cast %194 : vector<1xf32> to vector<1x1xf32>
    %196 = arith.mulf %193, %192 : vector<1x128xf32>
    %cst_101 = arith.constant dense<0.000000e+00> : vector<1xf32>
    %197 = vector.multi_reduction <add>, %196, %cst_101 [1] : vector<1x128xf32> to vector<1xf32>
    %198 = vector.shape_cast %197 : vector<1xf32> to vector<1x1xf32>
    %cst_102 = arith.constant 1.562500e-02 : f32
    %199 = vector.broadcast %cst_102 : f32 to vector<1x1xf32>
    %200 = arith.mulf %195, %199 : vector<1x1xf32>
    %cst_103 = arith.constant 1.562500e-02 : f32
    %201 = vector.broadcast %cst_103 : f32 to vector<1x1xf32>
    %202 = arith.mulf %198, %201 : vector<1x1xf32>
    %203 = arith.mulf %200, %200 : vector<1x1xf32>
    %204 = arith.subf %202, %203 : vector<1x1xf32>
    %cst_104 = arith.constant 0.000000e+00 : f32
    %205 = vector.broadcast %cst_104 : f32 to vector<1x1xf32>
    %206 = arith.maximumf %204, %205 : vector<1x1xf32>
    %c0_105 = arith.constant 0 : index
    %c0_106 = arith.constant 0 : index
    %207 = vector.load %arg23[%c0_105, %c0_106] : memref<1x1xf32, #tpu.memory_space<vmem>>, vector<1x1xf32>
    %cst_107 = arith.constant 9.99999974E-6 : f32
    %208 = vector.broadcast %cst_107 : f32 to vector<1x1xf32>
    %209 = arith.addf %206, %208 : vector<1x1xf32>
    %210 = math.rsqrt %209 : vector<1x1xf32>
    %211 = arith.mulf %207, %210 : vector<1x1xf32>
    %c0_108 = arith.constant 0 : index
    %c0_109 = arith.constant 0 : index
    %212 = vector.load %arg24[%c0_108, %c0_109] : memref<1x1xf32, #tpu.memory_space<vmem>>, vector<1x1xf32>
    %213 = arith.mulf %200, %211 : vector<1x1xf32>
    %214 = arith.subf %212, %213 : vector<1x1xf32>
    %215 = vector.broadcast %211 : vector<1x1xf32> to vector<1x128xf32>
    %216 = arith.mulf %192, %215 : vector<1x128xf32>
    %217 = vector.broadcast %214 : vector<1x1xf32> to vector<1x128xf32>
    %218 = arith.addf %216, %217 : vector<1x128xf32>
    %cst_110 = arith.constant 5.000000e-01 : f32
    %219 = vector.broadcast %cst_110 : f32 to vector<1x128xf32>
    %220 = arith.mulf %219, %218 : vector<1x128xf32>
    %221 = math.tanh %220 : vector<1x128xf32>
    %cst_111 = arith.constant 5.000000e-01 : f32
    %222 = vector.broadcast %cst_111 : f32 to vector<1x128xf32>
    %223 = arith.mulf %222, %221 : vector<1x128xf32>
    %cst_112 = arith.constant 5.000000e-01 : f32
    %224 = vector.broadcast %cst_112 : f32 to vector<1x128xf32>
    %225 = arith.addf %223, %224 : vector<1x128xf32>
    %226 = vector.extract_strided_slice %225 {offsets = [0, 0], sizes = [1, 64], strides = [1, 1]} : vector<1x128xf32> to vector<1x64xf32>
    %c0_113 = arith.constant 0 : index
    %c0_114 = arith.constant 0 : index
    %c0_115 = arith.constant 0 : index
    %227 = vector.load %arg51[%c0_113, %c0_114, %c0_115] : memref<2x1x64xf32, #tpu.memory_space<vmem>>, vector<1x1x64xf32>
    %228 = vector.shape_cast %227 : vector<1x1x64xf32> to vector<1x64xf32>
    %229 = vector.shape_cast %226 : vector<1x64xf32> to vector<1x1x64xf32>
    tpu.vector_store %arg51[%c0_113, %c0_114, %c0_115], %229 {strides = array<i32>} : memref<2x1x64xf32, #tpu.memory_space<vmem>>, vector<1x1x64xf32>,
    %230 = vector.extract_strided_slice %225 {offsets = [0, 64], sizes = [1, 64], strides = [1, 1]} : vector<1x128xf32> to vector<1x64xf32>
    %c1_116 = arith.constant 1 : index
    %c0_117 = arith.constant 0 : index
    %c0_118 = arith.constant 0 : index
    %231 = vector.load %arg51[%c1_116, %c0_117, %c0_118] : memref<2x1x64xf32, #tpu.memory_space<vmem>>, vector<1x1x64xf32>
    %232 = vector.shape_cast %231 : vector<1x1x64xf32> to vector<1x64xf32>
    %233 = vector.shape_cast %230 : vector<1x64xf32> to vector<1x1x64xf32>
    tpu.vector_store %arg51[%c1_116, %c0_117, %c0_118], %233 {strides = array<i32>} : memref<2x1x64xf32, #tpu.memory_space<vmem>>, vector<1x1x64xf32>,
    %234 = vector.extract_strided_slice %225 {offsets = [0, 0], sizes = [1, 64], strides = [1, 1]} : vector<1x128xf32> to vector<1x64xf32>
    %235 = vector.extract_strided_slice %225 {offsets = [0, 64], sizes = [1, 64], strides = [1, 1]} : vector<1x128xf32> to vector<1x64xf32>
    %236 = tpu.concatenate %234, %235 in 0 : vector<1x64xf32>, vector<1x64xf32> -> vector<2x64xf32>
    %c0_119 = arith.constant 0 : index
    %c0_120 = arith.constant 0 : index
    %237 = vector.load %arg46[%c0_119, %c0_120] : memref<64x4xf32, #tpu.memory_space<vmem>>, vector<64x4xf32>
    %cst_121 = arith.constant dense<0.000000e+00> : vector<2x4xf32>
    %238 = tpu.matmul %236, %237, %cst_121 {dimension_numbers = #tpu.dot_dimension_numbers<[1], [0], [0], [1], [0, 0, 1, 1], [], []>} : vector<2x64xf32>, vector<64x4xf32>, vector<2x4xf32> -> vector<2x4xf32>
    %c0_122 = arith.constant 0 : index
    %c0_123 = arith.constant 0 : index
    %239 = vector.load %arg47[%c0_122, %c0_123] : memref<1x4xf32, #tpu.memory_space<vmem>>, vector<1x4xf32>
    %240 = vector.broadcast %239 : vector<1x4xf32> to vector<2x4xf32>
    %241 = arith.addf %238, %240 : vector<2x4xf32>
    %cst_124 = arith.constant dense<0xFF800000> : vector<2xf32>
    %242 = vector.multi_reduction <maximumf>, %241, %cst_124 [1] : vector<2x4xf32> to vector<2xf32>
    %243 = vector.shape_cast %242 : vector<2xf32> to vector<2x1xf32>
    %244 = vector.broadcast %243 : vector<2x1xf32> to vector<2x4xf32>
    %245 = arith.subf %241, %244 : vector<2x4xf32>
    %246 = math.exp %245 : vector<2x4xf32>
    %cst_125 = arith.constant dense<0.000000e+00> : vector<2xf32>
    %247 = vector.multi_reduction <add>, %246, %cst_125 [1] : vector<2x4xf32> to vector<2xf32>
    %248 = vector.shape_cast %247 : vector<2xf32> to vector<2x1xf32>
    %249 = vector.broadcast %248 : vector<2x1xf32> to vector<2x4xf32>
    %250 = arith.divf %246, %249 : vector<2x4xf32>
    %c0_126 = arith.constant 0 : index
    %c0_127 = arith.constant 0 : index
    %251 = vector.load %arg56[%c0_126, %c0_127] : memref<2x4xf32, #tpu.memory_space<vmem>>, vector<2x4xf32>
    tpu.vector_store %arg56[%c0_126, %c0_127], %250 {strides = array<i32>} : memref<2x4xf32, #tpu.memory_space<vmem>>, vector<2x4xf32>,
    %c1_i32_128 = arith.constant 1 : i32
    %252 = tpu.dynamic_rotate %225 by %c1_i32_128 dim 1 : vector<1x128xf32>, i32 -> vector<1x128xf32>
    %c0_129 = arith.constant 0 : index
    %c0_130 = arith.constant 0 : index
    %253 = vector.load %arg25[%c0_129, %c0_130] : memref<1x1xf32, #tpu.memory_space<vmem>>, vector<1x1xf32>
    %254 = vector.broadcast %253 : vector<1x1xf32> to vector<1x128xf32>
    %255 = arith.mulf %254, %225 : vector<1x128xf32>
    %256 = arith.mulf %2, %255 : vector<1x128xf32>
    %c0_131 = arith.constant 0 : index
    %c0_132 = arith.constant 0 : index
    %257 = vector.load %arg26[%c0_131, %c0_132] : memref<1x1xf32, #tpu.memory_space<vmem>>, vector<1x1xf32>
    %258 = vector.broadcast %257 : vector<1x1xf32> to vector<1x128xf32>
    %259 = arith.mulf %258, %252 : vector<1x128xf32>
    %260 = arith.mulf %4, %259 : vector<1x128xf32>
    %261 = arith.addf %256, %260 : vector<1x128xf32>
    %c0_133 = arith.constant 0 : index
    %c0_134 = arith.constant 0 : index
    %262 = vector.load %arg27[%c0_133, %c0_134] : memref<1x1xf32, #tpu.memory_space<vmem>>, vector<1x1xf32>
    %263 = vector.broadcast %262 : vector<1x1xf32> to vector<1x128xf32>
    %264 = arith.addf %261, %263 : vector<1x128xf32>
    %cst_135 = arith.constant dense<0.000000e+00> : vector<1xf32>
    %265 = vector.multi_reduction <add>, %264, %cst_135 [1] : vector<1x128xf32> to vector<1xf32>
    %266 = vector.shape_cast %265 : vector<1xf32> to vector<1x1xf32>
    %267 = arith.mulf %264, %264 : vector<1x128xf32>
    %cst_136 = arith.constant dense<0.000000e+00> : vector<1xf32>
    %268 = vector.multi_reduction <add>, %267, %cst_136 [1] : vector<1x128xf32> to vector<1xf32>
    %269 = vector.shape_cast %268 : vector<1xf32> to vector<1x1xf32>
    %cst_137 = arith.constant 7.812500e-03 : f32
    %270 = vector.broadcast %cst_137 : f32 to vector<1x1xf32>
    %271 = arith.mulf %266, %270 : vector<1x1xf32>
    %cst_138 = arith.constant 7.812500e-03 : f32
    %272 = vector.broadcast %cst_138 : f32 to vector<1x1xf32>
    %273 = arith.mulf %269, %272 : vector<1x1xf32>
    %274 = arith.mulf %271, %271 : vector<1x1xf32>
    %275 = arith.subf %273, %274 : vector<1x1xf32>
    %cst_139 = arith.constant 0.000000e+00 : f32
    %276 = vector.broadcast %cst_139 : f32 to vector<1x1xf32>
    %277 = arith.maximumf %275, %276 : vector<1x1xf32>
    %c0_140 = arith.constant 0 : index
    %c0_141 = arith.constant 0 : index
    %278 = vector.load %arg28[%c0_140, %c0_141] : memref<1x1xf32, #tpu.memory_space<vmem>>, vector<1x1xf32>
    %cst_142 = arith.constant 9.99999974E-6 : f32
    %279 = vector.broadcast %cst_142 : f32 to vector<1x1xf32>
    %280 = arith.addf %277, %279 : vector<1x1xf32>
    %281 = math.rsqrt %280 : vector<1x1xf32>
    %282 = arith.mulf %278, %281 : vector<1x1xf32>
    %c0_143 = arith.constant 0 : index
    %c0_144 = arith.constant 0 : index
    %283 = vector.load %arg29[%c0_143, %c0_144] : memref<1x1xf32, #tpu.memory_space<vmem>>, vector<1x1xf32>
    %284 = arith.mulf %271, %282 : vector<1x1xf32>
    %285 = arith.subf %283, %284 : vector<1x1xf32>
    %286 = vector.broadcast %282 : vector<1x1xf32> to vector<1x128xf32>
    %287 = arith.mulf %264, %286 : vector<1x128xf32>
    %288 = vector.broadcast %285 : vector<1x1xf32> to vector<1x128xf32>
    %289 = arith.addf %287, %288 : vector<1x128xf32>
    %cst_145 = arith.constant 5.000000e-01 : f32
    %290 = vector.broadcast %cst_145 : f32 to vector<1x128xf32>
    %291 = arith.mulf %290, %289 : vector<1x128xf32>
    %292 = math.tanh %291 : vector<1x128xf32>
    %cst_146 = arith.constant 5.000000e-01 : f32
    %293 = vector.broadcast %cst_146 : f32 to vector<1x128xf32>
    %294 = arith.mulf %293, %292 : vector<1x128xf32>
    %cst_147 = arith.constant 5.000000e-01 : f32
    %295 = vector.broadcast %cst_147 : f32 to vector<1x128xf32>
    %296 = arith.addf %294, %295 : vector<1x128xf32>
    %297 = vector.extract_strided_slice %296 {offsets = [0, 0], sizes = [1, 64], strides = [1, 1]} : vector<1x128xf32> to vector<1x64xf32>
    %c0_148 = arith.constant 0 : index
    %c0_149 = arith.constant 0 : index
    %c0_150 = arith.constant 0 : index
    %298 = vector.load %arg52[%c0_148, %c0_149, %c0_150] : memref<2x1x64xf32, #tpu.memory_space<vmem>>, vector<1x1x64xf32>
    %299 = vector.shape_cast %298 : vector<1x1x64xf32> to vector<1x64xf32>
    %300 = vector.shape_cast %297 : vector<1x64xf32> to vector<1x1x64xf32>
    tpu.vector_store %arg52[%c0_148, %c0_149, %c0_150], %300 {strides = array<i32>} : memref<2x1x64xf32, #tpu.memory_space<vmem>>, vector<1x1x64xf32>,
    %301 = vector.extract_strided_slice %296 {offsets = [0, 64], sizes = [1, 64], strides = [1, 1]} : vector<1x128xf32> to vector<1x64xf32>
    %c1_151 = arith.constant 1 : index
    %c0_152 = arith.constant 0 : index
    %c0_153 = arith.constant 0 : index
    %302 = vector.load %arg52[%c1_151, %c0_152, %c0_153] : memref<2x1x64xf32, #tpu.memory_space<vmem>>, vector<1x1x64xf32>
    %303 = vector.shape_cast %302 : vector<1x1x64xf32> to vector<1x64xf32>
    %304 = vector.shape_cast %301 : vector<1x64xf32> to vector<1x1x64xf32>
    tpu.vector_store %arg52[%c1_151, %c0_152, %c0_153], %304 {strides = array<i32>} : memref<2x1x64xf32, #tpu.memory_space<vmem>>, vector<1x1x64xf32>,
    %c1_i32_154 = arith.constant 1 : i32
    %305 = tpu.dynamic_rotate %296 by %c1_i32_154 dim 1 : vector<1x128xf32>, i32 -> vector<1x128xf32>
    %306 = arith.mulf %305, %0 : vector<1x128xf32>
    %c127_i32_155 = arith.constant 127 : i32
    %307 = tpu.dynamic_rotate %296 by %c127_i32_155 dim 1 : vector<1x128xf32>, i32 -> vector<1x128xf32>
    %308 = arith.mulf %307, %1 : vector<1x128xf32>
    %c0_156 = arith.constant 0 : index
    %c0_157 = arith.constant 0 : index
    %309 = vector.load %arg30[%c0_156, %c0_157] : memref<64x3xf32, #tpu.memory_space<vmem>>, vector<64x3xf32>
    %310 = vector.extract_strided_slice %309 {offsets = [0, 0], sizes = [64, 1], strides = [1, 1]} : vector<64x3xf32> to vector<64x1xf32>
    %311 = vector.broadcast %310 : vector<64x1xf32> to vector<64x128xf32>
    %312 = vector.broadcast %306 : vector<1x128xf32> to vector<64x128xf32>
    %313 = arith.mulf %311, %312 : vector<64x128xf32>
    %314 = vector.extract_strided_slice %309 {offsets = [0, 1], sizes = [64, 1], strides = [1, 1]} : vector<64x3xf32> to vector<64x1xf32>
    %315 = vector.broadcast %314 : vector<64x1xf32> to vector<64x128xf32>
    %316 = vector.broadcast %296 : vector<1x128xf32> to vector<64x128xf32>
    %317 = arith.mulf %315, %316 : vector<64x128xf32>
    %318 = arith.addf %313, %317 : vector<64x128xf32>
    %319 = vector.extract_strided_slice %309 {offsets = [0, 2], sizes = [64, 1], strides = [1, 1]} : vector<64x3xf32> to vector<64x1xf32>
    %320 = vector.broadcast %319 : vector<64x1xf32> to vector<64x128xf32>
    %321 = vector.broadcast %308 : vector<1x128xf32> to vector<64x128xf32>
    %322 = arith.mulf %320, %321 : vector<64x128xf32>
    %323 = arith.addf %318, %322 : vector<64x128xf32>
    %c0_158 = arith.constant 0 : index
    %c0_159 = arith.constant 0 : index
    %324 = vector.load %arg31[%c0_158, %c0_159] : memref<64x1xf32, #tpu.memory_space<vmem>>, vector<64x1xf32>
    %325 = vector.broadcast %324 : vector<64x1xf32> to vector<64x128xf32>
    %326 = arith.addf %323, %325 : vector<64x128xf32>
    %cst_160 = arith.constant dense<0.000000e+00> : vector<64xf32>
    %327 = vector.multi_reduction <add>, %326, %cst_160 [1] : vector<64x128xf32> to vector<64xf32>
    %328 = vector.shape_cast %327 : vector<64xf32> to vector<64x1xf32>
    %329 = arith.mulf %326, %326 : vector<64x128xf32>
    %cst_161 = arith.constant dense<0.000000e+00> : vector<64xf32>
    %330 = vector.multi_reduction <add>, %329, %cst_161 [1] : vector<64x128xf32> to vector<64xf32>
    %331 = vector.shape_cast %330 : vector<64xf32> to vector<64x1xf32>
    %cst_162 = arith.constant 7.812500e-03 : f32
    %332 = vector.broadcast %cst_162 : f32 to vector<64x1xf32>
    %333 = arith.mulf %328, %332 : vector<64x1xf32>
    %cst_163 = arith.constant 7.812500e-03 : f32
    %334 = vector.broadcast %cst_163 : f32 to vector<64x1xf32>
    %335 = arith.mulf %331, %334 : vector<64x1xf32>
    %336 = arith.mulf %333, %333 : vector<64x1xf32>
    %337 = arith.subf %335, %336 : vector<64x1xf32>
    %cst_164 = arith.constant 0.000000e+00 : f32
    %338 = vector.broadcast %cst_164 : f32 to vector<64x1xf32>
    %339 = arith.maximumf %337, %338 : vector<64x1xf32>
    %c0_165 = arith.constant 0 : index
    %c0_166 = arith.constant 0 : index
    %340 = vector.load %arg32[%c0_165, %c0_166] : memref<64x1xf32, #tpu.memory_space<vmem>>, vector<64x1xf32>
    %cst_167 = arith.constant 9.99999974E-6 : f32
    %341 = vector.broadcast %cst_167 : f32 to vector<64x1xf32>
    %342 = arith.addf %339, %341 : vector<64x1xf32>
    %343 = math.rsqrt %342 : vector<64x1xf32>
    %344 = arith.mulf %340, %343 : vector<64x1xf32>
    %c0_168 = arith.constant 0 : index
    %c0_169 = arith.constant 0 : index
    %345 = vector.load %arg33[%c0_168, %c0_169] : memref<64x1xf32, #tpu.memory_space<vmem>>, vector<64x1xf32>
    %346 = arith.mulf %333, %344 : vector<64x1xf32>
    %347 = arith.subf %345, %346 : vector<64x1xf32>
    %348 = vector.broadcast %344 : vector<64x1xf32> to vector<64x128xf32>
    %349 = arith.mulf %326, %348 : vector<64x128xf32>
    %350 = vector.broadcast %347 : vector<64x1xf32> to vector<64x128xf32>
    %351 = arith.addf %349, %350 : vector<64x128xf32>
    %cst_170 = arith.constant 5.000000e-01 : f32
    %352 = vector.broadcast %cst_170 : f32 to vector<64x128xf32>
    %353 = arith.mulf %352, %351 : vector<64x128xf32>
    %354 = math.tanh %353 : vector<64x128xf32>
    %cst_171 = arith.constant 5.000000e-01 : f32
    %355 = vector.broadcast %cst_171 : f32 to vector<64x128xf32>
    %356 = arith.mulf %355, %354 : vector<64x128xf32>
    %cst_172 = arith.constant 5.000000e-01 : f32
    %357 = vector.broadcast %cst_172 : f32 to vector<64x128xf32>
    %358 = arith.addf %356, %357 : vector<64x128xf32>
    %359 = vector.extract_strided_slice %358 {offsets = [0, 0], sizes = [64, 64], strides = [1, 1]} : vector<64x128xf32> to vector<64x64xf32>
    %c0_173 = arith.constant 0 : index
    %c0_174 = arith.constant 0 : index
    %c0_175 = arith.constant 0 : index
    %360 = vector.load %arg53[%c0_173, %c0_174, %c0_175] : memref<2x64x64xf32, #tpu.memory_space<vmem>>, vector<1x64x64xf32>
    %361 = vector.shape_cast %360 : vector<1x64x64xf32> to vector<64x64xf32>
    %362 = vector.shape_cast %359 : vector<64x64xf32> to vector<1x64x64xf32>
    tpu.vector_store %arg53[%c0_173, %c0_174, %c0_175], %362 {strides = array<i32>} : memref<2x64x64xf32, #tpu.memory_space<vmem>>, vector<1x64x64xf32>,
    %363 = vector.extract_strided_slice %358 {offsets = [0, 64], sizes = [64, 64], strides = [1, 1]} : vector<64x128xf32> to vector<64x64xf32>
    %c1_176 = arith.constant 1 : index
    %c0_177 = arith.constant 0 : index
    %c0_178 = arith.constant 0 : index
    %364 = vector.load %arg53[%c1_176, %c0_177, %c0_178] : memref<2x64x64xf32, #tpu.memory_space<vmem>>, vector<1x64x64xf32>
    %365 = vector.shape_cast %364 : vector<1x64x64xf32> to vector<64x64xf32>
    %366 = vector.shape_cast %363 : vector<64x64xf32> to vector<1x64x64xf32>
    tpu.vector_store %arg53[%c1_176, %c0_177, %c0_178], %366 {strides = array<i32>} : memref<2x64x64xf32, #tpu.memory_space<vmem>>, vector<1x64x64xf32>,
    %c1_i32_179 = arith.constant 1 : i32
    %367 = tpu.dynamic_rotate %358 by %c1_i32_179 dim 1 : vector<64x128xf32>, i32 -> vector<64x128xf32>
    %368 = vector.broadcast %0 : vector<1x128xf32> to vector<64x128xf32>
    %369 = arith.mulf %367, %368 : vector<64x128xf32>
    %c127_i32_180 = arith.constant 127 : i32
    %370 = tpu.dynamic_rotate %358 by %c127_i32_180 dim 1 : vector<64x128xf32>, i32 -> vector<64x128xf32>
    %371 = vector.broadcast %1 : vector<1x128xf32> to vector<64x128xf32>
    %372 = arith.mulf %370, %371 : vector<64x128xf32>
    %c0_181 = arith.constant 0 : index
    %c0_182 = arith.constant 0 : index
    %373 = vector.load %arg35[%c0_181, %c0_182] : memref<64x64xf32, #tpu.memory_space<vmem>>, vector<64x64xf32>
    %cst_183 = arith.constant dense<0.000000e+00> : vector<64x128xf32>
    %374 = tpu.matmul %373, %358, %cst_183 {dimension_numbers = #tpu.dot_dimension_numbers<[1], [0], [0], [1], [0, 0, 1, 1], [], []>} : vector<64x64xf32>, vector<64x128xf32>, vector<64x128xf32> -> vector<64x128xf32>
    %c0_184 = arith.constant 0 : index
    %c0_185 = arith.constant 0 : index
    %375 = vector.load %arg34[%c0_184, %c0_185] : memref<64x64xf32, #tpu.memory_space<vmem>>, vector<64x64xf32>
    %cst_186 = arith.constant dense<0.000000e+00> : vector<64x128xf32>
    %376 = tpu.matmul %375, %369, %cst_186 {dimension_numbers = #tpu.dot_dimension_numbers<[1], [0], [0], [1], [0, 0, 1, 1], [], []>} : vector<64x64xf32>, vector<64x128xf32>, vector<64x128xf32> -> vector<64x128xf32>
    %377 = arith.addf %374, %376 : vector<64x128xf32>
    %c0_187 = arith.constant 0 : index
    %c0_188 = arith.constant 0 : index
    %378 = vector.load %arg36[%c0_187, %c0_188] : memref<64x64xf32, #tpu.memory_space<vmem>>, vector<64x64xf32>
    %cst_189 = arith.constant dense<0.000000e+00> : vector<64x128xf32>
    %379 = tpu.matmul %378, %372, %cst_189 {dimension_numbers = #tpu.dot_dimension_numbers<[1], [0], [0], [1], [0, 0, 1, 1], [], []>} : vector<64x64xf32>, vector<64x128xf32>, vector<64x128xf32> -> vector<64x128xf32>
    %380 = arith.addf %377, %379 : vector<64x128xf32>
    %c0_190 = arith.constant 0 : index
    %c0_191 = arith.constant 0 : index
    %381 = vector.load %arg37[%c0_190, %c0_191] : memref<64x1xf32, #tpu.memory_space<vmem>>, vector<64x1xf32>
    %382 = vector.broadcast %381 : vector<64x1xf32> to vector<64x128xf32>
    %383 = arith.addf %380, %382 : vector<64x128xf32>
    %cst_192 = arith.constant dense<0.000000e+00> : vector<64xf32>
    %384 = vector.multi_reduction <add>, %383, %cst_192 [1] : vector<64x128xf32> to vector<64xf32>
    %385 = vector.shape_cast %384 : vector<64xf32> to vector<64x1xf32>
    %386 = arith.mulf %383, %383 : vector<64x128xf32>
    %cst_193 = arith.constant dense<0.000000e+00> : vector<64xf32>
    %387 = vector.multi_reduction <add>, %386, %cst_193 [1] : vector<64x128xf32> to vector<64xf32>
    %388 = vector.shape_cast %387 : vector<64xf32> to vector<64x1xf32>
    %cst_194 = arith.constant 7.812500e-03 : f32
    %389 = vector.broadcast %cst_194 : f32 to vector<64x1xf32>
    %390 = arith.mulf %385, %389 : vector<64x1xf32>
    %cst_195 = arith.constant 7.812500e-03 : f32
    %391 = vector.broadcast %cst_195 : f32 to vector<64x1xf32>
    %392 = arith.mulf %388, %391 : vector<64x1xf32>
    %393 = arith.mulf %390, %390 : vector<64x1xf32>
    %394 = arith.subf %392, %393 : vector<64x1xf32>
    %cst_196 = arith.constant 0.000000e+00 : f32
    %395 = vector.broadcast %cst_196 : f32 to vector<64x1xf32>
    %396 = arith.maximumf %394, %395 : vector<64x1xf32>
    %c0_197 = arith.constant 0 : index
    %c0_198 = arith.constant 0 : index
    %397 = vector.load %arg38[%c0_197, %c0_198] : memref<64x1xf32, #tpu.memory_space<vmem>>, vector<64x1xf32>
    %cst_199 = arith.constant 9.99999974E-6 : f32
    %398 = vector.broadcast %cst_199 : f32 to vector<64x1xf32>
    %399 = arith.addf %396, %398 : vector<64x1xf32>
    %400 = math.rsqrt %399 : vector<64x1xf32>
    %401 = arith.mulf %397, %400 : vector<64x1xf32>
    %c0_200 = arith.constant 0 : index
    %c0_201 = arith.constant 0 : index
    %402 = vector.load %arg39[%c0_200, %c0_201] : memref<64x1xf32, #tpu.memory_space<vmem>>, vector<64x1xf32>
    %403 = arith.mulf %390, %401 : vector<64x1xf32>
    %404 = arith.subf %402, %403 : vector<64x1xf32>
    %405 = vector.broadcast %401 : vector<64x1xf32> to vector<64x128xf32>
    %406 = arith.mulf %383, %405 : vector<64x128xf32>
    %407 = vector.broadcast %404 : vector<64x1xf32> to vector<64x128xf32>
    %408 = arith.addf %406, %407 : vector<64x128xf32>
    %cst_202 = arith.constant 5.000000e-01 : f32
    %409 = vector.broadcast %cst_202 : f32 to vector<64x128xf32>
    %410 = arith.mulf %409, %408 : vector<64x128xf32>
    %411 = math.tanh %410 : vector<64x128xf32>
    %cst_203 = arith.constant 5.000000e-01 : f32
    %412 = vector.broadcast %cst_203 : f32 to vector<64x128xf32>
    %413 = arith.mulf %412, %411 : vector<64x128xf32>
    %cst_204 = arith.constant 5.000000e-01 : f32
    %414 = vector.broadcast %cst_204 : f32 to vector<64x128xf32>
    %415 = arith.addf %413, %414 : vector<64x128xf32>
    %416 = vector.extract_strided_slice %415 {offsets = [0, 0], sizes = [64, 64], strides = [1, 1]} : vector<64x128xf32> to vector<64x64xf32>
    %c0_205 = arith.constant 0 : index
    %c0_206 = arith.constant 0 : index
    %c0_207 = arith.constant 0 : index
    %417 = vector.load %arg54[%c0_205, %c0_206, %c0_207] : memref<2x64x64xf32, #tpu.memory_space<vmem>>, vector<1x64x64xf32>
    %418 = vector.shape_cast %417 : vector<1x64x64xf32> to vector<64x64xf32>
    %419 = vector.shape_cast %416 : vector<64x64xf32> to vector<1x64x64xf32>
    tpu.vector_store %arg54[%c0_205, %c0_206, %c0_207], %419 {strides = array<i32>} : memref<2x64x64xf32, #tpu.memory_space<vmem>>, vector<1x64x64xf32>,
    %420 = vector.extract_strided_slice %415 {offsets = [0, 64], sizes = [64, 64], strides = [1, 1]} : vector<64x128xf32> to vector<64x64xf32>
    %c1_208 = arith.constant 1 : index
    %c0_209 = arith.constant 0 : index
    %c0_210 = arith.constant 0 : index
    %421 = vector.load %arg54[%c1_208, %c0_209, %c0_210] : memref<2x64x64xf32, #tpu.memory_space<vmem>>, vector<1x64x64xf32>
    %422 = vector.shape_cast %421 : vector<1x64x64xf32> to vector<64x64xf32>
    %423 = vector.shape_cast %420 : vector<64x64xf32> to vector<1x64x64xf32>
    tpu.vector_store %arg54[%c1_208, %c0_209, %c0_210], %423 {strides = array<i32>} : memref<2x64x64xf32, #tpu.memory_space<vmem>>, vector<1x64x64xf32>,
    %c1_i32_211 = arith.constant 1 : i32
    %424 = tpu.dynamic_rotate %415 by %c1_i32_211 dim 1 : vector<64x128xf32>, i32 -> vector<64x128xf32>
    %425 = vector.broadcast %0 : vector<1x128xf32> to vector<64x128xf32>
    %426 = arith.mulf %424, %425 : vector<64x128xf32>
    %c127_i32_212 = arith.constant 127 : i32
    %427 = tpu.dynamic_rotate %415 by %c127_i32_212 dim 1 : vector<64x128xf32>, i32 -> vector<64x128xf32>
    %428 = vector.broadcast %1 : vector<1x128xf32> to vector<64x128xf32>
    %429 = arith.mulf %427, %428 : vector<64x128xf32>
    %c0_213 = arith.constant 0 : index
    %c0_214 = arith.constant 0 : index
    %430 = vector.load %arg41[%c0_213, %c0_214] : memref<1x64xf32, #tpu.memory_space<vmem>>, vector<1x64xf32>
    %cst_215 = arith.constant dense<0.000000e+00> : vector<1x128xf32>
    %431 = tpu.matmul %430, %415, %cst_215 {dimension_numbers = #tpu.dot_dimension_numbers<[1], [0], [0], [1], [0, 0, 1, 1], [], []>} : vector<1x64xf32>, vector<64x128xf32>, vector<1x128xf32> -> vector<1x128xf32>
    %c0_216 = arith.constant 0 : index
    %c0_217 = arith.constant 0 : index
    %432 = vector.load %arg40[%c0_216, %c0_217] : memref<1x64xf32, #tpu.memory_space<vmem>>, vector<1x64xf32>
    %cst_218 = arith.constant dense<0.000000e+00> : vector<1x128xf32>
    %433 = tpu.matmul %432, %426, %cst_218 {dimension_numbers = #tpu.dot_dimension_numbers<[1], [0], [0], [1], [0, 0, 1, 1], [], []>} : vector<1x64xf32>, vector<64x128xf32>, vector<1x128xf32> -> vector<1x128xf32>
    %434 = arith.addf %431, %433 : vector<1x128xf32>
    %c0_219 = arith.constant 0 : index
    %c0_220 = arith.constant 0 : index
    %435 = vector.load %arg42[%c0_219, %c0_220] : memref<1x64xf32, #tpu.memory_space<vmem>>, vector<1x64xf32>
    %cst_221 = arith.constant dense<0.000000e+00> : vector<1x128xf32>
    %436 = tpu.matmul %435, %429, %cst_221 {dimension_numbers = #tpu.dot_dimension_numbers<[1], [0], [0], [1], [0, 0, 1, 1], [], []>} : vector<1x64xf32>, vector<64x128xf32>, vector<1x128xf32> -> vector<1x128xf32>
    %437 = arith.addf %434, %436 : vector<1x128xf32>
    %c0_222 = arith.constant 0 : index
    %c0_223 = arith.constant 0 : index
    %438 = vector.load %arg43[%c0_222, %c0_223] : memref<1x1xf32, #tpu.memory_space<vmem>>, vector<1x1xf32>
    %439 = vector.broadcast %438 : vector<1x1xf32> to vector<1x128xf32>
    %440 = arith.addf %437, %439 : vector<1x128xf32>
    %cst_224 = arith.constant dense<0.000000e+00> : vector<1xf32>
    %441 = vector.multi_reduction <add>, %440, %cst_224 [1] : vector<1x128xf32> to vector<1xf32>
    %442 = vector.shape_cast %441 : vector<1xf32> to vector<1x1xf32>
    %443 = arith.mulf %440, %440 : vector<1x128xf32>
    %cst_225 = arith.constant dense<0.000000e+00> : vector<1xf32>
    %444 = vector.multi_reduction <add>, %443, %cst_225 [1] : vector<1x128xf32> to vector<1xf32>
    %445 = vector.shape_cast %444 : vector<1xf32> to vector<1x1xf32>
    %cst_226 = arith.constant 7.812500e-03 : f32
    %446 = vector.broadcast %cst_226 : f32 to vector<1x1xf32>
    %447 = arith.mulf %442, %446 : vector<1x1xf32>
    %cst_227 = arith.constant 7.812500e-03 : f32
    %448 = vector.broadcast %cst_227 : f32 to vector<1x1xf32>
    %449 = arith.mulf %445, %448 : vector<1x1xf32>
    %450 = arith.mulf %447, %447 : vector<1x1xf32>
    %451 = arith.subf %449, %450 : vector<1x1xf32>
    %cst_228 = arith.constant 0.000000e+00 : f32
    %452 = vector.broadcast %cst_228 : f32 to vector<1x1xf32>
    %453 = arith.maximumf %451, %452 : vector<1x1xf32>
    %c0_229 = arith.constant 0 : index
    %c0_230 = arith.constant 0 : index
    %454 = vector.load %arg44[%c0_229, %c0_230] : memref<1x1xf32, #tpu.memory_space<vmem>>, vector<1x1xf32>
    %cst_231 = arith.constant 9.99999974E-6 : f32
    %455 = vector.broadcast %cst_231 : f32 to vector<1x1xf32>
    %456 = arith.addf %453, %455 : vector<1x1xf32>
    %457 = math.rsqrt %456 : vector<1x1xf32>
    %458 = arith.mulf %454, %457 : vector<1x1xf32>
    %c0_232 = arith.constant 0 : index
    %c0_233 = arith.constant 0 : index
    %459 = vector.load %arg45[%c0_232, %c0_233] : memref<1x1xf32, #tpu.memory_space<vmem>>, vector<1x1xf32>
    %460 = arith.mulf %447, %458 : vector<1x1xf32>
    %461 = arith.subf %459, %460 : vector<1x1xf32>
    %462 = vector.broadcast %458 : vector<1x1xf32> to vector<1x128xf32>
    %463 = arith.mulf %440, %462 : vector<1x128xf32>
    %464 = vector.broadcast %461 : vector<1x1xf32> to vector<1x128xf32>
    %465 = arith.addf %463, %464 : vector<1x128xf32>
    %cst_234 = arith.constant 5.000000e-01 : f32
    %466 = vector.broadcast %cst_234 : f32 to vector<1x128xf32>
    %467 = arith.mulf %466, %465 : vector<1x128xf32>
    %468 = math.tanh %467 : vector<1x128xf32>
    %cst_235 = arith.constant 5.000000e-01 : f32
    %469 = vector.broadcast %cst_235 : f32 to vector<1x128xf32>
    %470 = arith.mulf %469, %468 : vector<1x128xf32>
    %cst_236 = arith.constant 5.000000e-01 : f32
    %471 = vector.broadcast %cst_236 : f32 to vector<1x128xf32>
    %472 = arith.addf %470, %471 : vector<1x128xf32>
    %473 = vector.extract_strided_slice %472 {offsets = [0, 0], sizes = [1, 64], strides = [1, 1]} : vector<1x128xf32> to vector<1x64xf32>
    %c0_237 = arith.constant 0 : index
    %c0_238 = arith.constant 0 : index
    %c0_239 = arith.constant 0 : index
    %474 = vector.load %arg55[%c0_237, %c0_238, %c0_239] : memref<2x1x64xf32, #tpu.memory_space<vmem>>, vector<1x1x64xf32>
    %475 = vector.shape_cast %474 : vector<1x1x64xf32> to vector<1x64xf32>
    %476 = vector.shape_cast %473 : vector<1x64xf32> to vector<1x1x64xf32>
    tpu.vector_store %arg55[%c0_237, %c0_238, %c0_239], %476 {strides = array<i32>} : memref<2x1x64xf32, #tpu.memory_space<vmem>>, vector<1x1x64xf32>,
    %477 = vector.extract_strided_slice %472 {offsets = [0, 64], sizes = [1, 64], strides = [1, 1]} : vector<1x128xf32> to vector<1x64xf32>
    %c1_240 = arith.constant 1 : index
    %c0_241 = arith.constant 0 : index
    %c0_242 = arith.constant 0 : index
    %478 = vector.load %arg55[%c1_240, %c0_241, %c0_242] : memref<2x1x64xf32, #tpu.memory_space<vmem>>, vector<1x1x64xf32>
    %479 = vector.shape_cast %478 : vector<1x1x64xf32> to vector<1x64xf32>
    %480 = vector.shape_cast %477 : vector<1x64xf32> to vector<1x1x64xf32>
    tpu.vector_store %arg55[%c1_240, %c0_241, %c0_242], %480 {strides = array<i32>} : memref<2x1x64xf32, #tpu.memory_space<vmem>>, vector<1x1x64xf32>,
    return
  }
}

</mosaic_0001>

<llo_original>
// kernel: tpu_custom_call.1
$region0: #{tpu_custom_call.1}
  #allocation0 [shape = 'u32[]', space=smem, size = 0x4, offset = 0x4, fixed_abs, tag = 'smem constant byte address 0x4 - core index']
  #allocation1 [shape = 'u32[144,128]{1,0:T(1,128)}', space=vmem, size = 0x12000, scoped, tag = 'internal scratch']
  #allocation2 [shape = 'f32[1,1]{1,0:T(1,128)S(1)}', space=vmem, size = 0x200, scoped, tag = 'scoped memory for tpu_custom_call.1']
  #allocation3 [shape = 'f32[1,1]{1,0:T(1,128)S(1)}', space=vmem, size = 0x200, scoped, tag = 'scoped memory for tpu_custom_call.1']
  #allocation4 [shape = 'f32[1,1]{1,0:T(1,128)S(1)}', space=vmem, size = 0x200, scoped, tag = 'scoped memory for tpu_custom_call.1']
  #allocation5 [shape = 'f32[1,1]{1,0:T(1,128)S(1)}', space=vmem, size = 0x200, scoped, tag = 'scoped memory for tpu_custom_call.1']
  #allocation6 [shape = 'f32[1,1]{1,0:T(1,128)S(1)}', space=vmem, size = 0x200, scoped, tag = 'scoped memory for tpu_custom_call.1']
  #allocation7 [shape = 'f32[1,1]{1,0:T(1,128)S(1)}', space=vmem, size = 0x200, scoped, tag = 'scoped memory for tpu_custom_call.1']
  #allocation8 [shape = 'f32[1,1]{1,0:T(1,128)S(1)}', space=vmem, size = 0x200, scoped, tag = 'scoped memory for tpu_custom_call.1']
  #allocation9 [shape = 'f32[1,1]{1,0:T(1,128)S(1)}', space=vmem, size = 0x200, scoped, tag = 'scoped memory for tpu_custom_call.1']
  #allocation10 [shape = 'f32[1,1]{1,0:T(1,128)S(1)}', space=vmem, size = 0x200, scoped, tag = 'scoped memory for tpu_custom_call.1']
  #allocation11 [shape = 'f32[1,1]{1,0:T(1,128)S(1)}', space=vmem, size = 0x200, scoped, tag = 'scoped memory for tpu_custom_call.1']
  #allocation12 [shape = 'f32[1,1]{1,0:T(1,128)S(1)}', space=vmem, size = 0x200, scoped, tag = 'scoped memory for tpu_custom_call.1']
  #allocation13 [shape = 'f32[1,1]{1,0:T(1,128)S(1)}', space=vmem, size = 0x200, scoped, tag = 'scoped memory for tpu_custom_call.1']
  #allocation14 [shape = 'f32[1,1]{1,0:T(1,128)S(1)}', space=vmem, size = 0x200, scoped, tag = 'scoped memory for tpu_custom_call.1']
  #allocation15 [shape = 'f32[1,1]{1,0:T(1,128)S(1)}', space=vmem, size = 0x200, scoped, tag = 'scoped memory for tpu_custom_call.1']
  #allocation16 [shape = 'f32[1,1]{1,0:T(1,128)S(1)}', space=vmem, size = 0x200, scoped, tag = 'scoped memory for tpu_custom_call.1']
  #allocation17 [shape = 'f32[1,1]{1,0:T(1,128)S(1)}', space=vmem, size = 0x200, scoped, tag = 'scoped memory for tpu_custom_call.1']
  %s0 = inlined_call_operand.smem [shape: u32[57], index: -1, kind: input, shape index: {}]
  %s1 = sld [smem:[%s0]]
  %s2 = scalar_lea.smem %s0, 1
  %s3 = sld [smem:[%s2]]
  %s4 = scalar_lea.smem %s0, 2
  %s5 = sld [smem:[%s4]]
  %s6 = scalar_lea.smem %s0, 3
  %s7 = sld [smem:[%s6]]
  %s8 = scalar_lea.smem %s0, 4
  %s9 = sld [smem:[%s8]]
  %s10 = scalar_lea.smem %s0, 5
  %s11 = sld [smem:[%s10]]
  %s12 = scalar_lea.smem %s0, 6
  %s13 = sld [smem:[%s12]]
  %s14 = scalar_lea.smem %s0, 7
  %s15 = sld [smem:[%s14]]
  %s16 = scalar_lea.smem %s0, 8
  %s17 = sld [smem:[%s16]]
  %s18 = scalar_lea.smem %s0, 9
  %s19 = sld [smem:[%s18]]
  %s20 = scalar_lea.smem %s0, 10
  %s21 = sld [smem:[%s20]]
  %s22 = scalar_lea.smem %s0, 11
  %s23 = sld [smem:[%s22]]
  %s24 = scalar_lea.smem %s0, 12
  %s25 = sld [smem:[%s24]]
  %s26 = scalar_lea.smem %s0, 13
  %s27 = sld [smem:[%s26]]
  %s28 = scalar_lea.smem %s0, 14
  %s29 = sld [smem:[%s28]]
  %s30 = scalar_lea.smem %s0, 15
  %s31 = sld [smem:[%s30]]
  %s32 = scalar_lea.smem %s0, 16
  %s33 = sld [smem:[%s32]]
  %s34 = scalar_lea.smem %s0, 17
  %s35 = sld [smem:[%s34]]
  %s36 = scalar_lea.smem %s0, 18
  %s37 = sld [smem:[%s36]]
  %s38 = scalar_lea.smem %s0, 19
  %s39 = sld [smem:[%s38]]
  %s40 = scalar_lea.smem %s0, 20
  %s41 = sld [smem:[%s40]]
  %s42 = scalar_lea.smem %s0, 21
  %s43 = sld [smem:[%s42]]
  %s44 = scalar_lea.smem %s0, 22
  %s45 = sld [smem:[%s44]]
  %s46 = scalar_lea.smem %s0, 23
  %s47 = sld [smem:[%s46]]
  %s48 = scalar_lea.smem %s0, 24
  %s49 = sld [smem:[%s48]]
  %s50 = scalar_lea.smem %s0, 25
  %s51 = sld [smem:[%s50]]
  %s52 = scalar_lea.smem %s0, 26
  %s53 = sld [smem:[%s52]]
  %s54 = scalar_lea.smem %s0, 27
  %s55 = sld [smem:[%s54]]
  %s56 = scalar_lea.smem %s0, 28
  %s57 = sld [smem:[%s56]]
  %s58 = scalar_lea.smem %s0, 29
  %s59 = sld [smem:[%s58]]
  %s60 = scalar_lea.smem %s0, 30
  %s61 = sld [smem:[%s60]]
  %s62 = scalar_lea.smem %s0, 31
  %s63 = sld [smem:[%s62]]
  %s64 = scalar_lea.smem %s0, 32
  %s65 = sld [smem:[%s64]]
  %s66 = scalar_lea.smem %s0, 33
  %s67 = sld [smem:[%s66]]
  %s68 = scalar_lea.smem %s0, 34
  %s69 = sld [smem:[%s68]]
  %s70 = scalar_lea.smem %s0, 35
  %s71 = sld [smem:[%s70]]
  %s72 = scalar_lea.smem %s0, 36
  %s73 = sld [smem:[%s72]]
  %s74 = scalar_lea.smem %s0, 37
  %s75 = sld [smem:[%s74]]
  %s76 = scalar_lea.smem %s0, 38
  %s77 = sld [smem:[%s76]]
  %s78 = scalar_lea.smem %s0, 39
  %s79 = sld [smem:[%s78]]
  %s80 = scalar_lea.smem %s0, 40
  %s81 = sld [smem:[%s80]]
  %s82 = scalar_lea.smem %s0, 41
  %s83 = sld [smem:[%s82]]
  %s84 = scalar_lea.smem %s0, 42
  %s85 = sld [smem:[%s84]]
  %s86 = scalar_lea.smem %s0, 43
  %s87 = sld [smem:[%s86]]
  %s88 = scalar_lea.smem %s0, 44
  %s89 = sld [smem:[%s88]]
  %s90 = scalar_lea.smem %s0, 45
  %s91 = sld [smem:[%s90]]
  %s92 = scalar_lea.smem %s0, 46
  %s93 = sld [smem:[%s92]]
  %s94 = scalar_lea.smem %s0, 47
  %s95 = sld [smem:[%s94]]
  %s96 = scalar_lea.smem %s0, 48
  %s97 = sld [smem:[%s96]]
  %s98 = scalar_lea.smem %s0, 49
  %s99 = sld [smem:[%s98]]
  %s100 = scalar_lea.smem %s0, 50
  %s101 = sld [smem:[%s100]]
  %s102 = scalar_lea.smem %s0, 51
  %s103 = sld [smem:[%s102]]
  %s104 = scalar_lea.smem %s0, 52
  %s105 = sld [smem:[%s104]]
  %s106 = scalar_lea.smem %s0, 53
  %s107 = sld [smem:[%s106]]
  %s108 = scalar_lea.smem %s0, 54
  %s109 = sld [smem:[%s108]]
  %s110 = scalar_lea.smem %s0, 55
  %s111 = sld [smem:[%s110]]
  %s112 = scalar_lea.smem %s0, 56
  %s113 = sld [smem:[%s112]]
  %114 = xla_tuple %s97, %s99, %s101, %s103, %s105, %s107, %s109, %s111, %s113
  %s115 = sld [smem:[#allocation0]]
  $region266: #{tpu_custom_call.1} parent=0
    _
  %s117 = ssub.s32 1, %s115
  %s118 = scalar_select 0, %s117, %s115
  %v119 = vstv %s35
  %120 = vst [vmem:[#allocation2] sm:$0x1] %v119
  %v121 = vstv %s37
  %122 = vst [vmem:[#allocation3] sm:$0x1] %v121
  %v123 = vstv %s39
  %124 = vst [vmem:[#allocation4] sm:$0x1] %v123
  %v125 = vstv %s41
  %126 = vst [vmem:[#allocation5] sm:$0x1] %v125
  %v127 = vstv %s43
  %128 = vst [vmem:[#allocation6] sm:$0x1] %v127
  %v129 = vstv %s45
  %130 = vst [vmem:[#allocation7] sm:$0x1] %v129
  %v131 = vstv %s47
  %132 = vst [vmem:[#allocation8] sm:$0x1] %v131
  %v133 = vstv %s49
  %134 = vst [vmem:[#allocation9] sm:$0x1] %v133
  %v135 = vstv %s51
  %136 = vst [vmem:[#allocation10] sm:$0x1] %v135
  %v137 = vstv %s53
  %138 = vst [vmem:[#allocation11] sm:$0x1] %v137
  %v139 = vstv %s55
  %140 = vst [vmem:[#allocation12] sm:$0x1] %v139
  %v141 = vstv %s57
  %142 = vst [vmem:[#allocation13] sm:$0x1] %v141
  %v143 = vstv %s59
  %144 = vst [vmem:[#allocation14] sm:$0x1] %v143
  %v145 = vstv %s87
  %146 = vst [vmem:[#allocation15] sm:$0x1] %v145
  %v147 = vstv %s89
  %148 = vst [vmem:[#allocation16] sm:$0x1] %v147
  %v149 = vstv %s91
  %150 = vst [vmem:[#allocation17] sm:$0x1] %v149
  $region1: #{tpu_custom_call.1} parent=0
    #allocation18 [shape = 'u8[65536]{0}', space=vmem, size = 0x10000, scoped, tag = 'output window, operand 0, single buffered']
    #allocation19 [shape = 's32[1]{0}', space=sflag, size = 0x4, scoped, tag = 'scoped memory for tpu_custom_call.1']
    #allocation20 [shape = 'u8[65536]{0}', space=vmem, size = 0x10000, scoped, tag = 'output window, operand 1, single buffered']
    #allocation21 [shape = 's32[1]{0}', space=sflag, size = 0x4, scoped, tag = 'scoped memory for tpu_custom_call.1']
    #allocation22 [shape = 'u8[1024]{0}', space=vmem, size = 0x400, scoped, tag = 'output window, operand 2, single buffered']
    #allocation23 [shape = 'u8[1024]{0}', space=vmem, size = 0x400, scoped, tag = 'output window, operand 3, single buffered']
    #allocation24 [shape = 's32[1]{0}', space=sflag, size = 0x4, scoped, tag = 'scoped memory for tpu_custom_call.1']
    #allocation25 [shape = 'u8[1024]{0}', space=vmem, size = 0x400, scoped, tag = 'output window, operand 4, single buffered']
    #allocation26 [shape = 'u8[65536]{0}', space=vmem, size = 0x10000, scoped, tag = 'output window, operand 5, single buffered']
    #allocation27 [shape = 's32[1]{0}', space=sflag, size = 0x4, scoped, tag = 'scoped memory for tpu_custom_call.1']
    #allocation28 [shape = 'u8[65536]{0}', space=vmem, size = 0x10000, scoped, tag = 'output window, operand 6, single buffered']
    #allocation29 [shape = 'u8[1024]{0}', space=vmem, size = 0x400, scoped, tag = 'output window, operand 7, single buffered']
    #allocation30 [shape = 's32[1]{0}', space=sflag, size = 0x4, scoped, tag = 'scoped memory for tpu_custom_call.1']
    #allocation31 [shape = 'u8[1024]{0}', space=vmem, size = 0x400, scoped, tag = 'output window, operand 8, single buffered']
    %151 = vsyncpa [#allocation19], 0
    %152 = vsyncpa [#allocation21], 0
    %153 = vsyncpa [#allocation24], 0
    %154 = vsyncpa [#allocation27], 0
    %155 = vsyncpa [#allocation30], 0
    // Predicated region
    $region2: #{tpu_custom_call.1} parent=1 // pred_check
      _
    $region3: #{tpu_custom_call.1} parent=1 // pred_check_branch
      %157 = sbr.rel (0) target = $region5
    $region4: #{tpu_custom_call.1} parent=1 // pred_region
      _
    $region5: #{tpu_custom_call.1} parent=1 // pred_fallthru
      _
    // Predicated region
    $region6: #{tpu_custom_call.1} parent=1 // pred_check
      _
    $region7: #{tpu_custom_call.1} parent=1 // pred_check_branch
      %159 = sbr.rel (0) target = $region9
    $region8: #{tpu_custom_call.1} parent=1 // pred_region
      _
    $region9: #{tpu_custom_call.1} parent=1 // pred_fallthru
      _
    // Predicated region
    $region10: #{tpu_custom_call.1} parent=1 // pred_check
      _
    $region11: #{tpu_custom_call.1} parent=1 // pred_check_branch
      %161 = sbr.rel (0) target = $region13
    $region12: #{tpu_custom_call.1} parent=1 // pred_region
      _
    $region13: #{tpu_custom_call.1} parent=1 // pred_fallthru
      _
    // Predicated region
    $region14: #{tpu_custom_call.1} parent=1 // pred_check
      _
    $region15: #{tpu_custom_call.1} parent=1 // pred_check_branch
      %163 = sbr.rel (0) target = $region17
    $region16: #{tpu_custom_call.1} parent=1 // pred_region
      _
    $region17: #{tpu_custom_call.1} parent=1 // pred_fallthru
      _
    // Predicated region
    $region18: #{tpu_custom_call.1} parent=1 // pred_check
      _
    $region19: #{tpu_custom_call.1} parent=1 // pred_check_branch
      %165 = sbr.rel (0) target = $region21
    $region20: #{tpu_custom_call.1} parent=1 // pred_region
      _
    $region21: #{tpu_custom_call.1} parent=1 // pred_fallthru
      _
    // Predicated region
    $region22: #{tpu_custom_call.1} parent=1 // pred_check
      _
    $region23: #{tpu_custom_call.1} parent=1 // pred_check_branch
      %167 = sbr.rel (0) target = $region25
    $region24: #{tpu_custom_call.1} parent=1 // pred_region
      _
    $region25: #{tpu_custom_call.1} parent=1 // pred_fallthru
      _
    // Predicated region
    $region26: #{tpu_custom_call.1} parent=1 // pred_check
      _
    $region27: #{tpu_custom_call.1} parent=1 // pred_check_branch
      %169 = sbr.rel (0) target = $region29
    $region28: #{tpu_custom_call.1} parent=1 // pred_region
      _
    $region29: #{tpu_custom_call.1} parent=1 // pred_fallthru
      _
    // Predicated region
    $region30: #{tpu_custom_call.1} parent=1 // pred_check
      _
    $region31: #{tpu_custom_call.1} parent=1 // pred_check_branch
      %171 = sbr.rel (0) target = $region33
    $region32: #{tpu_custom_call.1} parent=1 // pred_region
      _
    $region33: #{tpu_custom_call.1} parent=1 // pred_fallthru
      _
    // Predicated region
    $region34: #{tpu_custom_call.1} parent=1 // pred_check
      _
    $region35: #{tpu_custom_call.1} parent=1 // pred_check_branch
      %173 = sbr.rel (0) target = $region37
    $region36: #{tpu_custom_call.1} parent=1 // pred_region
      _
    $region37: #{tpu_custom_call.1} parent=1 // pred_fallthru
      _
    // Predicated region
    $region38: #{tpu_custom_call.1} parent=1 // pred_check
      _
    $region39: #{tpu_custom_call.1} parent=1 // pred_check_branch
      %175 = sbr.rel (0) target = $region41
    $region40: #{tpu_custom_call.1} parent=1 // pred_region
      _
    $region41: #{tpu_custom_call.1} parent=1 // pred_fallthru
      _
    // Predicated region
    $region42: #{tpu_custom_call.1} parent=1 // pred_check
      _
    $region43: #{tpu_custom_call.1} parent=1 // pred_check_branch
      %177 = sbr.rel (0) target = $region45
    $region44: #{tpu_custom_call.1} parent=1 // pred_region
      _
    $region45: #{tpu_custom_call.1} parent=1 // pred_fallthru
      _
    // Predicated region
    $region46: #{tpu_custom_call.1} parent=1 // pred_check
      _
    $region47: #{tpu_custom_call.1} parent=1 // pred_check_branch
      %179 = sbr.rel (0) target = $region49
    $region48: #{tpu_custom_call.1} parent=1 // pred_region
      _
    $region49: #{tpu_custom_call.1} parent=1 // pred_fallthru
      _
    // Predicated region
    $region50: #{tpu_custom_call.1} parent=1 // pred_check
      _
    $region51: #{tpu_custom_call.1} parent=1 // pred_check_branch
      %181 = sbr.rel (0) target = $region53
    $region52: #{tpu_custom_call.1} parent=1 // pred_region
      _
    $region53: #{tpu_custom_call.1} parent=1 // pred_fallthru
      _
    // Predicated region
    $region54: #{tpu_custom_call.1} parent=1 // pred_check
      _
    $region55: #{tpu_custom_call.1} parent=1 // pred_check_branch
      %183 = sbr.rel (0) target = $region57
    $region56: #{tpu_custom_call.1} parent=1 // pred_region
      _
    $region57: #{tpu_custom_call.1} parent=1 // pred_fallthru
      _
    // Predicated region
    $region58: #{tpu_custom_call.1} parent=1 // pred_check
      _
    $region59: #{tpu_custom_call.1} parent=1 // pred_check_branch
      %185 = sbr.rel (0) target = $region61
    $region60: #{tpu_custom_call.1} parent=1 // pred_region
      _
    $region61: #{tpu_custom_call.1} parent=1 // pred_fallthru
      _
    // Predicated region
    $region62: #{tpu_custom_call.1} parent=1 // pred_check
      _
    $region63: #{tpu_custom_call.1} parent=1 // pred_check_branch
      %187 = sbr.rel (0) target = $region65
    $region64: #{tpu_custom_call.1} parent=1 // pred_region
      _
    $region65: #{tpu_custom_call.1} parent=1 // pred_fallthru
      _
    // Predicated region
    $region66: #{tpu_custom_call.1} parent=1 // pred_check
      _
    $region67: #{tpu_custom_call.1} parent=1 // pred_check_branch
      %189 = sbr.rel (0) target = $region69
    $region68: #{tpu_custom_call.1} parent=1 // pred_region
      _
    $region69: #{tpu_custom_call.1} parent=1 // pred_fallthru
      _
    // Predicated region
    $region70: #{tpu_custom_call.1} parent=1 // pred_check
      _
    $region71: #{tpu_custom_call.1} parent=1 // pred_check_branch
      %191 = sbr.rel (0) target = $region73
    $region72: #{tpu_custom_call.1} parent=1 // pred_region
      _
    $region73: #{tpu_custom_call.1} parent=1 // pred_fallthru
      _
    // Predicated region
    $region74: #{tpu_custom_call.1} parent=1 // pred_check
      _
    $region75: #{tpu_custom_call.1} parent=1 // pred_check_branch
      %193 = sbr.rel (0) target = $region77
    $region76: #{tpu_custom_call.1} parent=1 // pred_region
      _
    $region77: #{tpu_custom_call.1} parent=1 // pred_fallthru
      _
    // Predicated region
    $region78: #{tpu_custom_call.1} parent=1 // pred_check
      _
    $region79: #{tpu_custom_call.1} parent=1 // pred_check_branch
      %195 = sbr.rel (0) target = $region81
    $region80: #{tpu_custom_call.1} parent=1 // pred_region
      _
    $region81: #{tpu_custom_call.1} parent=1 // pred_fallthru
      _
    // Predicated region
    $region82: #{tpu_custom_call.1} parent=1 // pred_check
      _
    $region83: #{tpu_custom_call.1} parent=1 // pred_check_branch
      %197 = sbr.rel (0) target = $region85
    $region84: #{tpu_custom_call.1} parent=1 // pred_region
      _
    $region85: #{tpu_custom_call.1} parent=1 // pred_fallthru
      _
    // Predicated region
    $region86: #{tpu_custom_call.1} parent=1 // pred_check
      _
    $region87: #{tpu_custom_call.1} parent=1 // pred_check_branch
      %199 = sbr.rel (0) target = $region89
    $region88: #{tpu_custom_call.1} parent=1 // pred_region
      _
    $region89: #{tpu_custom_call.1} parent=1 // pred_fallthru
      _
    // Predicated region
    $region90: #{tpu_custom_call.1} parent=1 // pred_check
      _
    $region91: #{tpu_custom_call.1} parent=1 // pred_check_branch
      %201 = sbr.rel (0) target = $region93
    $region92: #{tpu_custom_call.1} parent=1 // pred_region
      _
    $region93: #{tpu_custom_call.1} parent=1 // pred_fallthru
      _
    // Predicated region
    $region94: #{tpu_custom_call.1} parent=1 // pred_check
      _
    $region95: #{tpu_custom_call.1} parent=1 // pred_check_branch
      %203 = sbr.rel (0) target = $region97
    $region96: #{tpu_custom_call.1} parent=1 // pred_region
      _
    $region97: #{tpu_custom_call.1} parent=1 // pred_fallthru
      _
    // Predicated region
    $region98: #{tpu_custom_call.1} parent=1 // pred_check
      _
    $region99: #{tpu_custom_call.1} parent=1 // pred_check_branch
      %205 = sbr.rel (0) target = $region101
    $region100: #{tpu_custom_call.1} parent=1 // pred_region
      _
    $region101: #{tpu_custom_call.1} parent=1 // pred_fallthru
      _
    // Predicated region
    $region102: #{tpu_custom_call.1} parent=1 // pred_check
      _
    $region103: #{tpu_custom_call.1} parent=1 // pred_check_branch
      %207 = sbr.rel (0) target = $region105
    $region104: #{tpu_custom_call.1} parent=1 // pred_region
      _
    $region105: #{tpu_custom_call.1} parent=1 // pred_fallthru
      _
    // Predicated region
    $region106: #{tpu_custom_call.1} parent=1 // pred_check
      _
    $region107: #{tpu_custom_call.1} parent=1 // pred_check_branch
      %209 = sbr.rel (0) target = $region109
    $region108: #{tpu_custom_call.1} parent=1 // pred_region
      _
    $region109: #{tpu_custom_call.1} parent=1 // pred_fallthru
      _
    // Predicated region
    $region110: #{tpu_custom_call.1} parent=1 // pred_check
      _
    $region111: #{tpu_custom_call.1} parent=1 // pred_check_branch
      %211 = sbr.rel (0) target = $region113
    $region112: #{tpu_custom_call.1} parent=1 // pred_region
      _
    $region113: #{tpu_custom_call.1} parent=1 // pred_fallthru
      _
    // Predicated region
    $region114: #{tpu_custom_call.1} parent=1 // pred_check
      _
    $region115: #{tpu_custom_call.1} parent=1 // pred_check_branch
      %213 = sbr.rel (0) target = $region117
    $region116: #{tpu_custom_call.1} parent=1 // pred_region
      _
    $region117: #{tpu_custom_call.1} parent=1 // pred_fallthru
      _
    // Predicated region
    $region118: #{tpu_custom_call.1} parent=1 // pred_check
      _
    $region119: #{tpu_custom_call.1} parent=1 // pred_check_branch
      %215 = sbr.rel (0) target = $region121
    $region120: #{tpu_custom_call.1} parent=1 // pred_region
      _
    $region121: #{tpu_custom_call.1} parent=1 // pred_fallthru
      _
    // Predicated region
    $region122: #{tpu_custom_call.1} parent=1 // pred_check
      _
    $region123: #{tpu_custom_call.1} parent=1 // pred_check_branch
      %217 = sbr.rel (0) target = $region125
    $region124: #{tpu_custom_call.1} parent=1 // pred_region
      _
    $region125: #{tpu_custom_call.1} parent=1 // pred_fallthru
      _
    // Predicated region
    $region126: #{tpu_custom_call.1} parent=1 // pred_check
      _
    $region127: #{tpu_custom_call.1} parent=1 // pred_check_branch
      %219 = sbr.rel (0) target = $region129
    $region128: #{tpu_custom_call.1} parent=1 // pred_region
      _
    $region129: #{tpu_custom_call.1} parent=1 // pred_fallthru
      _
    // Predicated region
    $region130: #{tpu_custom_call.1} parent=1 // pred_check
      _
    $region131: #{tpu_custom_call.1} parent=1 // pred_check_branch
      %221 = sbr.rel (0) target = $region133
    $region132: #{tpu_custom_call.1} parent=1 // pred_region
      _
    $region133: #{tpu_custom_call.1} parent=1 // pred_fallthru
      _
    // Predicated region
    $region134: #{tpu_custom_call.1} parent=1 // pred_check
      _
    $region135: #{tpu_custom_call.1} parent=1 // pred_check_branch
      %223 = sbr.rel (0) target = $region137
    $region136: #{tpu_custom_call.1} parent=1 // pred_region
      _
    $region137: #{tpu_custom_call.1} parent=1 // pred_fallthru
      _
    // Predicated region
    $region138: #{tpu_custom_call.1} parent=1 // pred_check
      _
    $region139: #{tpu_custom_call.1} parent=1 // pred_check_branch
      %225 = sbr.rel (0) target = $region141
    $region140: #{tpu_custom_call.1} parent=1 // pred_region
      _
    $region141: #{tpu_custom_call.1} parent=1 // pred_fallthru
      _
    // Predicated region
    $region142: #{tpu_custom_call.1} parent=1 // pred_check
      _
    $region143: #{tpu_custom_call.1} parent=1 // pred_check_branch
      %227 = sbr.rel (0) target = $region145
    $region144: #{tpu_custom_call.1} parent=1 // pred_region
      _
    $region145: #{tpu_custom_call.1} parent=1 // pred_fallthru
      _
    // Predicated region
    $region146: #{tpu_custom_call.1} parent=1 // pred_check
      _
    $region147: #{tpu_custom_call.1} parent=1 // pred_check_branch
      %229 = sbr.rel (0) target = $region149
    $region148: #{tpu_custom_call.1} parent=1 // pred_region
      _
    $region149: #{tpu_custom_call.1} parent=1 // pred_fallthru
      _
    // Predicated region
    $region150: #{tpu_custom_call.1} parent=1 // pred_check
      _
    $region151: #{tpu_custom_call.1} parent=1 // pred_check_branch
      %231 = sbr.rel (0) target = $region153
    $region152: #{tpu_custom_call.1} parent=1 // pred_region
      _
    $region153: #{tpu_custom_call.1} parent=1 // pred_fallthru
      _
    // Predicated region
    $region154: #{tpu_custom_call.1} parent=1 // pred_check
      _
    $region155: #{tpu_custom_call.1} parent=1 // pred_check_branch
      %233 = sbr.rel (0) target = $region157
    $region156: #{tpu_custom_call.1} parent=1 // pred_region
      _
    $region157: #{tpu_custom_call.1} parent=1 // pred_fallthru
      _
    // Predicated region
    $region158: #{tpu_custom_call.1} parent=1 // pred_check
      _
    $region159: #{tpu_custom_call.1} parent=1 // pred_check_branch
      %235 = sbr.rel (0) target = $region161
    $region160: #{tpu_custom_call.1} parent=1 // pred_region
      _
    $region161: #{tpu_custom_call.1} parent=1 // pred_fallthru
      _
    // Predicated region
    $region162: #{tpu_custom_call.1} parent=1 // pred_check
      _
    $region163: #{tpu_custom_call.1} parent=1 // pred_check_branch
      %237 = sbr.rel (0) target = $region165
    $region164: #{tpu_custom_call.1} parent=1 // pred_region
      _
    $region165: #{tpu_custom_call.1} parent=1 // pred_fallthru
      _
    // Predicated region
    $region166: #{tpu_custom_call.1} parent=1 // pred_check
      _
    $region167: #{tpu_custom_call.1} parent=1 // pred_check_branch
      %239 = sbr.rel (0) target = $region169
    $region168: #{tpu_custom_call.1} parent=1 // pred_region
      _
    $region169: #{tpu_custom_call.1} parent=1 // pred_fallthru
      _
    // Predicated region
    $region170: #{tpu_custom_call.1} parent=1 // pred_check
      _
    $region171: #{tpu_custom_call.1} parent=1 // pred_check_branch
      %241 = sbr.rel (0) target = $region173
    $region172: #{tpu_custom_call.1} parent=1 // pred_region
      _
    $region173: #{tpu_custom_call.1} parent=1 // pred_fallthru
      _
    // Predicated region
    $region174: #{tpu_custom_call.1} parent=1 // pred_check
      _
    $region175: #{tpu_custom_call.1} parent=1 // pred_check_branch
      %243 = sbr.rel (0) target = $region177
    $region176: #{tpu_custom_call.1} parent=1 // pred_region
      _
    $region177: #{tpu_custom_call.1} parent=1 // pred_fallthru
      _
    // Predicated region
    $region178: #{tpu_custom_call.1} parent=1 // pred_check
      _
    $region179: #{tpu_custom_call.1} parent=1 // pred_check_branch
      %245 = sbr.rel (0) target = $region181
    $region180: #{tpu_custom_call.1} parent=1 // pred_region
      _
    $region181: #{tpu_custom_call.1} parent=1 // pred_fallthru
      _
    // Predicated region
    $region182: #{tpu_custom_call.1} parent=1 // pred_check
      _
    $region183: #{tpu_custom_call.1} parent=1 // pred_check_branch
      %247 = sbr.rel (0) target = $region185
    $region184: #{tpu_custom_call.1} parent=1 // pred_region
      _
    $region185: #{tpu_custom_call.1} parent=1 // pred_fallthru
      _
    // Predicated region
    $region186: #{tpu_custom_call.1} parent=1 // pred_check
      _
    $region187: #{tpu_custom_call.1} parent=1 // pred_check_branch
      %249 = sbr.rel (0) target = $region189
    $region188: #{tpu_custom_call.1} parent=1 // pred_region
      _
    $region189: #{tpu_custom_call.1} parent=1 // pred_fallthru
      _
    // Predicated region
    $region190: #{tpu_custom_call.1} parent=1 // pred_check
      _
    $region191: #{tpu_custom_call.1} parent=1 // pred_check_branch
      %251 = sbr.rel (0) target = $region193
    $region192: #{tpu_custom_call.1} parent=1 // pred_region
      _
    $region193: #{tpu_custom_call.1} parent=1 // pred_fallthru
      _
    %v252 = vld [vmem:[%s3] sm:$0x1]
    %v253 = vld [vmem:[%s5] sm:$0x1]
    %v254 = vld [vmem:[%s7] sm:$0x1]
    %v255 = vsub.f32 1.0, %v254
    %v256 = vld [vmem:[%s1] sm:$0x1]
    %257 = vrot.lane.b32.xlu0 %v256, 1
    %v258 = vpop.permute.xlu0 %257
    %v259 = vmul.f32 %v258, %v252
    %260 = vrot.lane.b32.xlu0 %v256, 127
    %v261 = vpop.permute.xlu0 %260
    %v262 = vmul.f32 %v261, %v253
    %v263 = vld [vmem:[%s9] sm:$0xff]
    %v264 = vld [vmem:[%s9 + $0x8] sm:$0xff]
    %v265 = vld [vmem:[%s9 + $0x10] sm:$0xff]
    %v266 = vld [vmem:[%s9 + $0x18] sm:$0xff]
    %v267 = vld [vmem:[%s9 + $0x20] sm:$0xff]
    %v268 = vld [vmem:[%s9 + $0x28] sm:$0xff]
    %v269 = vld [vmem:[%s9 + $0x30] sm:$0xff]
    %v270 = vld [vmem:[%s9 + $0x38] sm:$0xff]
    %272 = vset.pattern.permute.xlu0 0
    %273 = vperm.xlu0 %272, %v263
    %v274 = vpop.permute.xlu0 %273
    %277 = vset.pattern.permute.xlu0 0
    %278 = vperm.xlu0 %277, %v264
    %v279 = vpop.permute.xlu0 %278
    %282 = vset.pattern.permute.xlu0 0
    %283 = vperm.xlu0 %282, %v265
    %v284 = vpop.permute.xlu0 %283
    %287 = vset.pattern.permute.xlu0 0
    %288 = vperm.xlu0 %287, %v266
    %v289 = vpop.permute.xlu0 %288
    %292 = vset.pattern.permute.xlu0 0
    %293 = vperm.xlu0 %292, %v267
    %v294 = vpop.permute.xlu0 %293
    %297 = vset.pattern.permute.xlu0 0
    %298 = vperm.xlu0 %297, %v268
    %v299 = vpop.permute.xlu0 %298
    %302 = vset.pattern.permute.xlu0 0
    %303 = vperm.xlu0 %302, %v269
    %v304 = vpop.permute.xlu0 %303
    %307 = vset.pattern.permute.xlu0 0
    %308 = vperm.xlu0 %307, %v270
    %v309 = vpop.permute.xlu0 %308
    %v311 = vlaneseq
    %v312 = vshrl.u32 %v311, 7
    %v313 = vsub.s32 0, %v312
    %v314 = vrot.slane %v259, %v313
    %v315 = vmul.f32 %v274, %v314
    %v316 = vmul.f32 %v279, %v314
    %v317 = vmul.f32 %v284, %v314
    %v318 = vmul.f32 %v289, %v314
    %v319 = vmul.f32 %v294, %v314
    %v320 = vmul.f32 %v299, %v314
    %v321 = vmul.f32 %v304, %v314
    %v322 = vmul.f32 %v309, %v314
    %323 = vset.pattern.permute.xlu0 1
    %324 = vperm.xlu0 %323, %v263
    %v325 = vpop.permute.xlu0 %324
    %327 = vset.pattern.permute.xlu0 1
    %328 = vperm.xlu0 %327, %v264
    %v329 = vpop.permute.xlu0 %328
    %331 = vset.pattern.permute.xlu0 1
    %332 = vperm.xlu0 %331, %v265
    %v333 = vpop.permute.xlu0 %332
    %335 = vset.pattern.permute.xlu0 1
    %336 = vperm.xlu0 %335, %v266
    %v337 = vpop.permute.xlu0 %336
    %339 = vset.pattern.permute.xlu0 1
    %340 = vperm.xlu0 %339, %v267
    %v341 = vpop.permute.xlu0 %340
    %343 = vset.pattern.permute.xlu0 1
    %344 = vperm.xlu0 %343, %v268
    %v345 = vpop.permute.xlu0 %344
    %347 = vset.pattern.permute.xlu0 1
    %348 = vperm.xlu0 %347, %v269
    %v349 = vpop.permute.xlu0 %348
    %351 = vset.pattern.permute.xlu0 1
    %352 = vperm.xlu0 %351, %v270
    %v353 = vpop.permute.xlu0 %352
    %v356 = vlaneseq
    %v357 = vshrl.u32 %v356, 7
    %v358 = vsub.s32 0, %v357
    %v359 = vrot.slane %v256, %v358
    %v361 = vmul.f32 %v325, %v359
    %v362 = vmul.f32 %v329, %v359
    %v363 = vmul.f32 %v333, %v359
    %v364 = vmul.f32 %v337, %v359
    %v365 = vmul.f32 %v341, %v359
    %v366 = vmul.f32 %v345, %v359
    %v367 = vmul.f32 %v349, %v359
    %v368 = vmul.f32 %v353, %v359
    %v369 = vadd.f32 %v315, %v361
    %v370 = vadd.f32 %v316, %v362
    %v371 = vadd.f32 %v317, %v363
    %v372 = vadd.f32 %v318, %v364
    %v373 = vadd.f32 %v319, %v365
    %v374 = vadd.f32 %v320, %v366
    %v375 = vadd.f32 %v321, %v367
    %v376 = vadd.f32 %v322, %v368
    %377 = vset.pattern.permute.xlu0 2
    %378 = vperm.xlu0 %377, %v263
    %v379 = vpop.permute.xlu0 %378
    %381 = vset.pattern.permute.xlu0 2
    %382 = vperm.xlu0 %381, %v264
    %v383 = vpop.permute.xlu0 %382
    %385 = vset.pattern.permute.xlu0 2
    %386 = vperm.xlu0 %385, %v265
    %v387 = vpop.permute.xlu0 %386
    %389 = vset.pattern.permute.xlu0 2
    %390 = vperm.xlu0 %389, %v266
    %v391 = vpop.permute.xlu0 %390
    %393 = vset.pattern.permute.xlu0 2
    %394 = vperm.xlu0 %393, %v267
    %v395 = vpop.permute.xlu0 %394
    %397 = vset.pattern.permute.xlu0 2
    %398 = vperm.xlu0 %397, %v268
    %v399 = vpop.permute.xlu0 %398
    %401 = vset.pattern.permute.xlu0 2
    %402 = vperm.xlu0 %401, %v269
    %v403 = vpop.permute.xlu0 %402
    %405 = vset.pattern.permute.xlu0 2
    %406 = vperm.xlu0 %405, %v270
    %v407 = vpop.permute.xlu0 %406
    %v409 = vlaneseq
    %v410 = vshrl.u32 %v409, 7
    %v411 = vsub.s32 0, %v410
    %v412 = vrot.slane %v262, %v411
    %v413 = vmul.f32 %v379, %v412
    %v414 = vmul.f32 %v383, %v412
    %v415 = vmul.f32 %v387, %v412
    %v416 = vmul.f32 %v391, %v412
    %v417 = vmul.f32 %v395, %v412
    %v418 = vmul.f32 %v399, %v412
    %v419 = vmul.f32 %v403, %v412
    %v420 = vmul.f32 %v407, %v412
    %v421 = vadd.f32 %v369, %v413
    %v422 = vadd.f32 %v370, %v414
    %v423 = vadd.f32 %v371, %v415
    %v424 = vadd.f32 %v372, %v416
    %v425 = vadd.f32 %v373, %v417
    %v426 = vadd.f32 %v374, %v418
    %v427 = vadd.f32 %v375, %v419
    %v428 = vadd.f32 %v376, %v420
    %v429 = vld [vmem:[%s11] sm:$0xff]
    %v430 = vld [vmem:[%s11 + $0x8] sm:$0xff]
    %v431 = vld [vmem:[%s11 + $0x10] sm:$0xff]
    %v432 = vld [vmem:[%s11 + $0x18] sm:$0xff]
    %v433 = vld [vmem:[%s11 + $0x20] sm:$0xff]
    %v434 = vld [vmem:[%s11 + $0x28] sm:$0xff]
    %v435 = vld [vmem:[%s11 + $0x30] sm:$0xff]
    %v436 = vld [vmem:[%s11 + $0x38] sm:$0xff]
    %438 = vset.pattern.permute.xlu0 0
    %439 = vperm.xlu0 %438, %v429
    %v440 = vpop.permute.xlu0 %439
    %443 = vset.pattern.permute.xlu0 0
    %444 = vperm.xlu0 %443, %v430
    %v445 = vpop.permute.xlu0 %444
    %448 = vset.pattern.permute.xlu0 0
    %449 = vperm.xlu0 %448, %v431
    %v450 = vpop.permute.xlu0 %449
    %453 = vset.pattern.permute.xlu0 0
    %454 = vperm.xlu0 %453, %v432
    %v455 = vpop.permute.xlu0 %454
    %458 = vset.pattern.permute.xlu0 0
    %459 = vperm.xlu0 %458, %v433
    %v460 = vpop.permute.xlu0 %459
    %463 = vset.pattern.permute.xlu0 0
    %464 = vperm.xlu0 %463, %v434
    %v465 = vpop.permute.xlu0 %464
    %468 = vset.pattern.permute.xlu0 0
    %469 = vperm.xlu0 %468, %v435
    %v470 = vpop.permute.xlu0 %469
    %473 = vset.pattern.permute.xlu0 0
    %474 = vperm.xlu0 %473, %v436
    %v475 = vpop.permute.xlu0 %474
    %v477 = vadd.f32 %v421, %v440
    %v478 = vadd.f32 %v422, %v445
    %v479 = vadd.f32 %v423, %v450
    %v480 = vadd.f32 %v424, %v455
    %v481 = vadd.f32 %v425, %v460
    %v482 = vadd.f32 %v426, %v465
    %v483 = vadd.f32 %v427, %v470
    %v484 = vadd.f32 %v428, %v475
    %485 = vadd.xlane.f32.xlu0 %v477
    %v486 = vpop.xlane.xlu0 %485
    %487 = vadd.xlane.f32.xlu0 %v478
    %v488 = vpop.xlane.xlu0 %487
    %489 = vadd.xlane.f32.xlu0 %v479
    %v490 = vpop.xlane.xlu0 %489
    %491 = vadd.xlane.f32.xlu0 %v480
    %v492 = vpop.xlane.xlu0 %491
    %493 = vadd.xlane.f32.xlu0 %v481
    %v494 = vpop.xlane.xlu0 %493
    %495 = vadd.xlane.f32.xlu0 %v482
    %v496 = vpop.xlane.xlu0 %495
    %497 = vadd.xlane.f32.xlu0 %v483
    %v498 = vpop.xlane.xlu0 %497
    %499 = vadd.xlane.f32.xlu0 %v484
    %v500 = vpop.xlane.xlu0 %499
    %v501 = vmul.f32 %v477, %v477
    %v502 = vmul.f32 %v478, %v478
    %v503 = vmul.f32 %v479, %v479
    %v504 = vmul.f32 %v480, %v480
    %v505 = vmul.f32 %v481, %v481
    %v506 = vmul.f32 %v482, %v482
    %v507 = vmul.f32 %v483, %v483
    %v508 = vmul.f32 %v484, %v484
    %509 = vadd.xlane.f32.xlu0 %v501
    %v510 = vpop.xlane.xlu0 %509
    %511 = vadd.xlane.f32.xlu0 %v502
    %v512 = vpop.xlane.xlu0 %511
    %513 = vadd.xlane.f32.xlu0 %v503
    %v514 = vpop.xlane.xlu0 %513
    %515 = vadd.xlane.f32.xlu0 %v504
    %v516 = vpop.xlane.xlu0 %515
    %517 = vadd.xlane.f32.xlu0 %v505
    %v518 = vpop.xlane.xlu0 %517
    %519 = vadd.xlane.f32.xlu0 %v506
    %v520 = vpop.xlane.xlu0 %519
    %521 = vadd.xlane.f32.xlu0 %v507
    %v522 = vpop.xlane.xlu0 %521
    %523 = vadd.xlane.f32.xlu0 %v508
    %v524 = vpop.xlane.xlu0 %523
    %v525 = vmul.f32 %v486, 0.0078125
    %v526 = vmul.f32 %v488, 0.0078125
    %v527 = vmul.f32 %v490, 0.0078125
    %v528 = vmul.f32 %v492, 0.0078125
    %v529 = vmul.f32 %v494, 0.0078125
    %v530 = vmul.f32 %v496, 0.0078125
    %v531 = vmul.f32 %v498, 0.0078125
    %v532 = vmul.f32 %v500, 0.0078125
    %v533 = vmul.f32 %v510, 0.0078125
    %v534 = vmul.f32 %v512, 0.0078125
    %v535 = vmul.f32 %v514, 0.0078125
    %v536 = vmul.f32 %v516, 0.0078125
    %v537 = vmul.f32 %v518, 0.0078125
    %v538 = vmul.f32 %v520, 0.0078125
    %v539 = vmul.f32 %v522, 0.0078125
    %v540 = vmul.f32 %v524, 0.0078125
    %v541 = vmul.f32 %v525, %v525
    %v542 = vmul.f32 %v526, %v526
    %v543 = vmul.f32 %v527, %v527
    %v544 = vmul.f32 %v528, %v528
    %v545 = vmul.f32 %v529, %v529
    %v546 = vmul.f32 %v530, %v530
    %v547 = vmul.f32 %v531, %v531
    %v548 = vmul.f32 %v532, %v532
    %v549 = vsub.f32 %v533, %v541
    %v550 = vsub.f32 %v534, %v542
    %v551 = vsub.f32 %v535, %v543
    %v552 = vsub.f32 %v536, %v544
    %v553 = vsub.f32 %v537, %v545
    %v554 = vsub.f32 %v538, %v546
    %v555 = vsub.f32 %v539, %v547
    %v556 = vsub.f32 %v540, %v548
    %v557 = vmax.f32 %v549, 0.0
    %v558 = vmax.f32 %v550, 0.0
    %v559 = vmax.f32 %v551, 0.0
    %v560 = vmax.f32 %v552, 0.0
    %v561 = vmax.f32 %v553, 0.0
    %v562 = vmax.f32 %v554, 0.0
    %v563 = vmax.f32 %v555, 0.0
    %v564 = vmax.f32 %v556, 0.0
    %v565 = vld [vmem:[%s13] sm:$0xff]
    %v566 = vld [vmem:[%s13 + $0x8] sm:$0xff]
    %v567 = vld [vmem:[%s13 + $0x10] sm:$0xff]
    %v568 = vld [vmem:[%s13 + $0x18] sm:$0xff]
    %v569 = vld [vmem:[%s13 + $0x20] sm:$0xff]
    %v570 = vld [vmem:[%s13 + $0x28] sm:$0xff]
    %v571 = vld [vmem:[%s13 + $0x30] sm:$0xff]
    %v572 = vld [vmem:[%s13 + $0x38] sm:$0xff]
    %v573 = vadd.f32 %v557, 1e-05
    %v574 = vadd.f32 %v558, 1e-05
    %v575 = vadd.f32 %v559, 1e-05
    %v576 = vadd.f32 %v560, 1e-05
    %v577 = vadd.f32 %v561, 1e-05
    %v578 = vadd.f32 %v562, 1e-05
    %v579 = vadd.f32 %v563, 1e-05
    %v580 = vadd.f32 %v564, 1e-05
    %v581 = vrsqrt.pop %v573
    %v582 = vrsqrt.pop %v574
    %v583 = vrsqrt.pop %v575
    %v584 = vrsqrt.pop %v576
    %v585 = vrsqrt.pop %v577
    %v586 = vrsqrt.pop %v578
    %v587 = vrsqrt.pop %v579
    %v588 = vrsqrt.pop %v580
    %v589 = vmul.f32 %v565, %v581
    %v590 = vmul.f32 %v566, %v582
    %v591 = vmul.f32 %v567, %v583
    %v592 = vmul.f32 %v568, %v584
    %v593 = vmul.f32 %v569, %v585
    %v594 = vmul.f32 %v570, %v586
    %v595 = vmul.f32 %v571, %v587
    %v596 = vmul.f32 %v572, %v588
    %v597 = vld [vmem:[%s15] sm:$0xff]
    %v598 = vld [vmem:[%s15 + $0x8] sm:$0xff]
    %v599 = vld [vmem:[%s15 + $0x10] sm:$0xff]
    %v600 = vld [vmem:[%s15 + $0x18] sm:$0xff]
    %v601 = vld [vmem:[%s15 + $0x20] sm:$0xff]
    %v602 = vld [vmem:[%s15 + $0x28] sm:$0xff]
    %v603 = vld [vmem:[%s15 + $0x30] sm:$0xff]
    %v604 = vld [vmem:[%s15 + $0x38] sm:$0xff]
    %v605 = vmul.f32 %v525, %v589
    %v606 = vmul.f32 %v526, %v590
    %v607 = vmul.f32 %v527, %v591
    %v608 = vmul.f32 %v528, %v592
    %v609 = vmul.f32 %v529, %v593
    %v610 = vmul.f32 %v530, %v594
    %v611 = vmul.f32 %v531, %v595
    %v612 = vmul.f32 %v532, %v596
    %v613 = vsub.f32 %v597, %v605
    %v614 = vsub.f32 %v598, %v606
    %v615 = vsub.f32 %v599, %v607
    %v616 = vsub.f32 %v600, %v608
    %v617 = vsub.f32 %v601, %v609
    %v618 = vsub.f32 %v602, %v610
    %v619 = vsub.f32 %v603, %v611
    %v620 = vsub.f32 %v604, %v612
    %622 = vset.pattern.permute.xlu0 0
    %623 = vperm.xlu0 %622, %v589
    %v624 = vpop.permute.xlu0 %623
    %627 = vset.pattern.permute.xlu0 0
    %628 = vperm.xlu0 %627, %v590
    %v629 = vpop.permute.xlu0 %628
    %632 = vset.pattern.permute.xlu0 0
    %633 = vperm.xlu0 %632, %v591
    %v634 = vpop.permute.xlu0 %633
    %637 = vset.pattern.permute.xlu0 0
    %638 = vperm.xlu0 %637, %v592
    %v639 = vpop.permute.xlu0 %638
    %642 = vset.pattern.permute.xlu0 0
    %643 = vperm.xlu0 %642, %v593
    %v644 = vpop.permute.xlu0 %643
    %647 = vset.pattern.permute.xlu0 0
    %648 = vperm.xlu0 %647, %v594
    %v649 = vpop.permute.xlu0 %648
    %652 = vset.pattern.permute.xlu0 0
    %653 = vperm.xlu0 %652, %v595
    %v654 = vpop.permute.xlu0 %653
    %657 = vset.pattern.permute.xlu0 0
    %658 = vperm.xlu0 %657, %v596
    %v659 = vpop.permute.xlu0 %658
    %v661 = vmul.f32 %v477, %v624
    %v662 = vmul.f32 %v478, %v629
    %v663 = vmul.f32 %v479, %v634
    %v664 = vmul.f32 %v480, %v639
    %v665 = vmul.f32 %v481, %v644
    %v666 = vmul.f32 %v482, %v649
    %v667 = vmul.f32 %v483, %v654
    %v668 = vmul.f32 %v484, %v659
    %670 = vset.pattern.permute.xlu0 0
    %671 = vperm.xlu0 %670, %v613
    %v672 = vpop.permute.xlu0 %671
    %675 = vset.pattern.permute.xlu0 0
    %676 = vperm.xlu0 %675, %v614
    %v677 = vpop.permute.xlu0 %676
    %680 = vset.pattern.permute.xlu0 0
    %681 = vperm.xlu0 %680, %v615
    %v682 = vpop.permute.xlu0 %681
    %685 = vset.pattern.permute.xlu0 0
    %686 = vperm.xlu0 %685, %v616
    %v687 = vpop.permute.xlu0 %686
    %690 = vset.pattern.permute.xlu0 0
    %691 = vperm.xlu0 %690, %v617
    %v692 = vpop.permute.xlu0 %691
    %695 = vset.pattern.permute.xlu0 0
    %696 = vperm.xlu0 %695, %v618
    %v697 = vpop.permute.xlu0 %696
    %700 = vset.pattern.permute.xlu0 0
    %701 = vperm.xlu0 %700, %v619
    %v702 = vpop.permute.xlu0 %701
    %705 = vset.pattern.permute.xlu0 0
    %706 = vperm.xlu0 %705, %v620
    %v707 = vpop.permute.xlu0 %706
    %v709 = vadd.f32 %v661, %v672
    %v710 = vadd.f32 %v662, %v677
    %v711 = vadd.f32 %v663, %v682
    %v712 = vadd.f32 %v664, %v687
    %v713 = vadd.f32 %v665, %v692
    %v714 = vadd.f32 %v666, %v697
    %v715 = vadd.f32 %v667, %v702
    %v716 = vadd.f32 %v668, %v707
    %v717 = vmul.f32 %v709, 0.5
    %v718 = vmul.f32 %v710, 0.5
    %v719 = vmul.f32 %v711, 0.5
    %v720 = vmul.f32 %v712, 0.5
    %v721 = vmul.f32 %v713, 0.5
    %v722 = vmul.f32 %v714, 0.5
    %v723 = vmul.f32 %v715, 0.5
    %v724 = vmul.f32 %v716, 0.5
    %v725 = vtanh.pop %v717
    %v726 = vtanh.pop %v718
    %v727 = vtanh.pop %v719
    %v728 = vtanh.pop %v720
    %v729 = vtanh.pop %v721
    %v730 = vtanh.pop %v722
    %v731 = vtanh.pop %v723
    %v732 = vtanh.pop %v724
    %v733 = vmul.f32 %v725, 0.5
    %v734 = vmul.f32 %v726, 0.5
    %v735 = vmul.f32 %v727, 0.5
    %v736 = vmul.f32 %v728, 0.5
    %v737 = vmul.f32 %v729, 0.5
    %v738 = vmul.f32 %v730, 0.5
    %v739 = vmul.f32 %v731, 0.5
    %v740 = vmul.f32 %v732, 0.5
    %v741 = vadd.f32 %v733, 0.5
    %v742 = vadd.f32 %v734, 0.5
    %v743 = vadd.f32 %v735, 0.5
    %v744 = vadd.f32 %v736, 0.5
    %v745 = vadd.f32 %v737, 0.5
    %v746 = vadd.f32 %v738, 0.5
    %v747 = vadd.f32 %v739, 0.5
    %v748 = vadd.f32 %v740, 0.5
    %vm749 = vcmask 523264
    %750 = vst.msk [vmem:[#allocation18] sm:$0xff] %vm749, %v741
    %751 = vst.msk [vmem:[#allocation18 + $0x8] sm:$0xff] %vm749, %v742
    %752 = vst.msk [vmem:[#allocation18 + $0x10] sm:$0xff] %vm749, %v743
    %753 = vst.msk [vmem:[#allocation18 + $0x18] sm:$0xff] %vm749, %v744
    %754 = vst.msk [vmem:[#allocation18 + $0x20] sm:$0xff] %vm749, %v745
    %755 = vst.msk [vmem:[#allocation18 + $0x28] sm:$0xff] %vm749, %v746
    %756 = vst.msk [vmem:[#allocation18 + $0x30] sm:$0xff] %vm749, %v747
    %757 = vst.msk [vmem:[#allocation18 + $0x38] sm:$0xff] %vm749, %v748
    %766 = vrot.lane.b32.xlu0 %v741, 64
    %v767 = vpop.permute.xlu0 %766
    %768 = vrot.lane.b32.xlu0 %v742, 64
    %v769 = vpop.permute.xlu0 %768
    %770 = vrot.lane.b32.xlu0 %v743, 64
    %v771 = vpop.permute.xlu0 %770
    %772 = vrot.lane.b32.xlu0 %v744, 64
    %v773 = vpop.permute.xlu0 %772
    %774 = vrot.lane.b32.xlu0 %v745, 64
    %v775 = vpop.permute.xlu0 %774
    %776 = vrot.lane.b32.xlu0 %v746, 64
    %v777 = vpop.permute.xlu0 %776
    %778 = vrot.lane.b32.xlu0 %v747, 64
    %v779 = vpop.permute.xlu0 %778
    %780 = vrot.lane.b32.xlu0 %v748, 64
    %v781 = vpop.permute.xlu0 %780
    %s790 = scalar_lea.vmem [#allocation18], 64
    %791 = vst.msk [vmem:[%s790] sm:$0xff] %vm749, %v767
    %792 = vst.msk [vmem:[%s790 + $0x8] sm:$0xff] %vm749, %v769
    %793 = vst.msk [vmem:[%s790 + $0x10] sm:$0xff] %vm749, %v771
    %794 = vst.msk [vmem:[%s790 + $0x18] sm:$0xff] %vm749, %v773
    %795 = vst.msk [vmem:[%s790 + $0x20] sm:$0xff] %vm749, %v775
    %796 = vst.msk [vmem:[%s790 + $0x28] sm:$0xff] %vm749, %v777
    %797 = vst.msk [vmem:[%s790 + $0x30] sm:$0xff] %vm749, %v779
    %798 = vst.msk [vmem:[%s790 + $0x38] sm:$0xff] %vm749, %v781
    %799 = vrot.lane.b32.xlu0 %v741, 1
    %v800 = vpop.permute.xlu0 %799
    %801 = vrot.lane.b32.xlu0 %v742, 1
    %v802 = vpop.permute.xlu0 %801
    %803 = vrot.lane.b32.xlu0 %v743, 1
    %v804 = vpop.permute.xlu0 %803
    %805 = vrot.lane.b32.xlu0 %v744, 1
    %v806 = vpop.permute.xlu0 %805
    %807 = vrot.lane.b32.xlu0 %v745, 1
    %v808 = vpop.permute.xlu0 %807
    %809 = vrot.lane.b32.xlu0 %v746, 1
    %v810 = vpop.permute.xlu0 %809
    %811 = vrot.lane.b32.xlu0 %v747, 1
    %v812 = vpop.permute.xlu0 %811
    %813 = vrot.lane.b32.xlu0 %v748, 1
    %v814 = vpop.permute.xlu0 %813
    %v816 = vlaneseq
    %v817 = vshrl.u32 %v816, 7
    %v818 = vsub.s32 0, %v817
    %v819 = vrot.slane %v252, %v818
    %v821 = vmul.f32 %v800, %v819
    %v822 = vmul.f32 %v802, %v819
    %v823 = vmul.f32 %v804, %v819
    %v824 = vmul.f32 %v806, %v819
    %v825 = vmul.f32 %v808, %v819
    %v826 = vmul.f32 %v810, %v819
    %v827 = vmul.f32 %v812, %v819
    %v828 = vmul.f32 %v814, %v819
    %829 = vrot.lane.b32.xlu0 %v741, 127
    %v830 = vpop.permute.xlu0 %829
    %831 = vrot.lane.b32.xlu0 %v742, 127
    %v832 = vpop.permute.xlu0 %831
    %833 = vrot.lane.b32.xlu0 %v743, 127
    %v834 = vpop.permute.xlu0 %833
    %835 = vrot.lane.b32.xlu0 %v744, 127
    %v836 = vpop.permute.xlu0 %835
    %837 = vrot.lane.b32.xlu0 %v745, 127
    %v838 = vpop.permute.xlu0 %837
    %839 = vrot.lane.b32.xlu0 %v746, 127
    %v840 = vpop.permute.xlu0 %839
    %841 = vrot.lane.b32.xlu0 %v747, 127
    %v842 = vpop.permute.xlu0 %841
    %843 = vrot.lane.b32.xlu0 %v748, 127
    %v844 = vpop.permute.xlu0 %843
    %v846 = vlaneseq
    %v847 = vshrl.u32 %v846, 7
    %v848 = vsub.s32 0, %v847
    %v849 = vrot.slane %v253, %v848
    %v851 = vmul.f32 %v830, %v849
    %v852 = vmul.f32 %v832, %v849
    %v853 = vmul.f32 %v834, %v849
    %v854 = vmul.f32 %v836, %v849
    %v855 = vmul.f32 %v838, %v849
    %v856 = vmul.f32 %v840, %v849
    %v857 = vmul.f32 %v842, %v849
    %v858 = vmul.f32 %v844, %v849
    %v859 = vld [vmem:[%s19] sm:$0xff]
    %v860 = vld [vmem:[%s19 + $0x8] sm:$0xff]
    %v861 = vld [vmem:[%s19 + $0x10] sm:$0xff]
    %v862 = vld [vmem:[%s19 + $0x18] sm:$0xff]
    %v863 = vld [vmem:[%s19 + $0x20] sm:$0xff]
    %v864 = vld [vmem:[%s19 + $0x28] sm:$0xff]
    %v865 = vld [vmem:[%s19 + $0x30] sm:$0xff]
    %v866 = vld [vmem:[%s19 + $0x38] sm:$0xff]
    %v867 = vld [vmem:[%s17] sm:$0xff]
    %v868 = vld [vmem:[%s17 + $0x8] sm:$0xff]
    %v869 = vld [vmem:[%s17 + $0x10] sm:$0xff]
    %v870 = vld [vmem:[%s17 + $0x18] sm:$0xff]
    %v871 = vld [vmem:[%s17 + $0x20] sm:$0xff]
    %v872 = vld [vmem:[%s17 + $0x28] sm:$0xff]
    %v873 = vld [vmem:[%s17 + $0x30] sm:$0xff]
    %v874 = vld [vmem:[%s17 + $0x38] sm:$0xff]
    %v876 = vsel %vm749, %v867, 0
    %v879 = vsel %vm749, %v868, 0
    %v882 = vsel %vm749, %v869, 0
    %v885 = vsel %vm749, %v870, 0
    %v888 = vsel %vm749, %v871, 0
    %v891 = vsel %vm749, %v872, 0
    %v894 = vsel %vm749, %v873, 0
    %v897 = vsel %vm749, %v874, 0
    %899 = vmatprep.subr.mxu0 0.0
    %900 = vmatpush1.msra.mxu0 %v821
    %901 = vmatprep.subr.mxu0 0.0
    %902 = vmatpush1.msra.mxu0 %v822
    %903 = vmatprep.subr.mxu0 0.0
    %904 = vmatpush1.msra.mxu0 %v823
    %905 = vmatprep.subr.mxu0 0.0
    %906 = vmatpush1.msra.mxu0 %v824
    %907 = vmatprep.subr.mxu0 0.0
    %908 = vmatpush1.msra.mxu0 %v825
    %909 = vmatprep.subr.mxu0 0.0
    %910 = vmatpush1.msra.mxu0 %v826
    %911 = vmatprep.subr.mxu0 0.0
    %912 = vmatpush1.msra.mxu0 %v827
    %913 = vmatprep.subr.mxu0 0.0
    %914 = vmatpush1.msra.mxu0 %v828
    %915 = vmatprep.subr.mxu0 0.0
    %916 = vmatpush1.msra.mxu0 0.0
    %917 = vmatprep.subr.mxu0 0.0
    %918 = vmatpush1.msra.mxu0 0.0
    %919 = vmatprep.subr.mxu0 0.0
    %920 = vmatpush1.msra.mxu0 0.0
    %921 = vmatprep.subr.mxu0 0.0
    %922 = vmatpush1.msra.mxu0 0.0
    %923 = vmatprep.subr.mxu0 0.0
    %924 = vmatpush1.msra.mxu0 0.0
    %925 = vmatprep.subr.mxu0 0.0
    %926 = vmatpush1.msra.mxu0 0.0
    %927 = vmatprep.subr.mxu0 0.0
    %928 = vmatpush1.msra.mxu0 0.0
    %929 = vmatprep.subr.mxu0 0.0
    %930 = vmatpush1.msra.mxu0 0.0
    %931 = vmatprep.subr.mxu0 0.0
    %932 = vmatpush1.msra.mxu0 0.0
    %933 = vmatprep.subr.mxu0 0.0
    %934 = vmatpush1.msra.mxu0 0.0
    %935 = vmatprep.subr.mxu0 0.0
    %936 = vmatpush1.msra.mxu0 0.0
    %937 = vmatprep.subr.mxu0 0.0
    %938 = vmatpush1.msra.mxu0 0.0
    %939 = vmatprep.subr.mxu0 0.0
    %940 = vmatpush1.msra.mxu0 0.0
    %941 = vmatprep.subr.mxu0 0.0
    %942 = vmatpush1.msra.mxu0 0.0
    %943 = vmatprep.subr.mxu0 0.0
    %944 = vmatpush1.msra.mxu0 0.0
    %945 = vmatprep.subr.mxu0 0.0
    %946 = vmatpush1.msra.mxu0 0.0
    %947 = vmatprep.subr.mxu0 0.0
    %948 = vmatpush1.msra.mxu0 0.0
    %949 = vmatprep.subr.mxu0 0.0
    %950 = vmatpush1.msra.mxu0 0.0
    %951 = vmatprep.subr.mxu0 0.0
    %952 = vmatpush1.msra.mxu0 0.0
    %953 = vmatprep.subr.mxu0 0.0
    %954 = vmatpush1.msra.mxu0 0.0
    %955 = vmatprep.subr.mxu0 0.0
    %956 = vmatpush1.msra.mxu0 0.0
    %957 = vmatprep.subr.mxu0 0.0
    %958 = vmatpush1.msra.mxu0 0.0
    %959 = vmatprep.subr.mxu0 0.0
    %960 = vmatpush1.msra.mxu0 0.0
    %961 = vmatprep.subr.mxu0 0.0
    %962 = vmatpush1.msra.mxu0 0.0
    %963 = vmatprep.mubr.f32.mxu0 0.0
    %964 = vmatmul.mubr.f32.gmra.mrb[0].mxu0 %v876
    %v965 = vpop.f32.mrb[0].mxu0
    %v966 = vadd.f32 0.0, %v965
    %v967 = vpop.f32.mrb[0].mxu0
    %968 = vmatprep.mubr.f32.mxu0 0.0
    %969 = vmatmul.mubr.f32.gmra.mrb[0].mxu0 %v879
    %v970 = vpop.f32.mrb[0].mxu0
    %v971 = vadd.f32 0.0, %v970
    %v972 = vpop.f32.mrb[0].mxu0
    %973 = vmatprep.mubr.f32.mxu0 0.0
    %974 = vmatmul.mubr.f32.gmra.mrb[0].mxu0 %v882
    %v975 = vpop.f32.mrb[0].mxu0
    %v976 = vadd.f32 0.0, %v975
    %v977 = vpop.f32.mrb[0].mxu0
    %978 = vmatprep.mubr.f32.mxu0 0.0
    %979 = vmatmul.mubr.f32.gmra.mrb[0].mxu0 %v885
    %v980 = vpop.f32.mrb[0].mxu0
    %v981 = vadd.f32 0.0, %v980
    %v982 = vpop.f32.mrb[0].mxu0
    %983 = vmatprep.mubr.f32.mxu0 0.0
    %984 = vmatmul.mubr.f32.gmra.mrb[0].mxu0 %v888
    %v985 = vpop.f32.mrb[0].mxu0
    %v986 = vadd.f32 0.0, %v985
    %v987 = vpop.f32.mrb[0].mxu0
    %988 = vmatprep.mubr.f32.mxu0 0.0
    %989 = vmatmul.mubr.f32.gmra.mrb[0].mxu0 %v891
    %v990 = vpop.f32.mrb[0].mxu0
    %v991 = vadd.f32 0.0, %v990
    %v992 = vpop.f32.mrb[0].mxu0
    %993 = vmatprep.mubr.f32.mxu0 0.0
    %994 = vmatmul.mubr.f32.gmra.mrb[0].mxu0 %v894
    %v995 = vpop.f32.mrb[0].mxu0
    %v996 = vadd.f32 0.0, %v995
    %v997 = vpop.f32.mrb[0].mxu0
    %998 = vmatprep.mubr.f32.mxu0 0.0
    %999 = vmatmul.mubr.f32.gmra.mrb[0].mxu0 %v897
    %v1000 = vpop.f32.mrb[0].mxu0
    %v1001 = vadd.f32 0.0, %v1000
    %v1002 = vpop.f32.mrb[0].mxu0
    %1003 = vdwg.mxu0
    %v1005 = vsel %vm749, %v859, 0
    %v1008 = vsel %vm749, %v860, 0
    %v1011 = vsel %vm749, %v861, 0
    %v1014 = vsel %vm749, %v862, 0
    %v1017 = vsel %vm749, %v863, 0
    %v1020 = vsel %vm749, %v864, 0
    %v1023 = vsel %vm749, %v865, 0
    %v1026 = vsel %vm749, %v866, 0
    %1028 = vmatprep.subr.mxu0 0.0
    %1029 = vmatpush1.msra.mxu0 %v741
    %1030 = vmatprep.subr.mxu0 0.0
    %1031 = vmatpush1.msra.mxu0 %v742
    %1032 = vmatprep.subr.mxu0 0.0
    %1033 = vmatpush1.msra.mxu0 %v743
    %1034 = vmatprep.subr.mxu0 0.0
    %1035 = vmatpush1.msra.mxu0 %v744
    %1036 = vmatprep.subr.mxu0 0.0
    %1037 = vmatpush1.msra.mxu0 %v745
    %1038 = vmatprep.subr.mxu0 0.0
    %1039 = vmatpush1.msra.mxu0 %v746
    %1040 = vmatprep.subr.mxu0 0.0
    %1041 = vmatpush1.msra.mxu0 %v747
    %1042 = vmatprep.subr.mxu0 0.0
    %1043 = vmatpush1.msra.mxu0 %v748
    %1044 = vmatprep.subr.mxu0 0.0
    %1045 = vmatpush1.msra.mxu0 0.0
    %1046 = vmatprep.subr.mxu0 0.0
    %1047 = vmatpush1.msra.mxu0 0.0
    %1048 = vmatprep.subr.mxu0 0.0
    %1049 = vmatpush1.msra.mxu0 0.0
    %1050 = vmatprep.subr.mxu0 0.0
    %1051 = vmatpush1.msra.mxu0 0.0
    %1052 = vmatprep.subr.mxu0 0.0
    %1053 = vmatpush1.msra.mxu0 0.0
    %1054 = vmatprep.subr.mxu0 0.0
    %1055 = vmatpush1.msra.mxu0 0.0
    %1056 = vmatprep.subr.mxu0 0.0
    %1057 = vmatpush1.msra.mxu0 0.0
    %1058 = vmatprep.subr.mxu0 0.0
    %1059 = vmatpush1.msra.mxu0 0.0
    %1060 = vmatprep.subr.mxu0 0.0
    %1061 = vmatpush1.msra.mxu0 0.0
    %1062 = vmatprep.subr.mxu0 0.0
    %1063 = vmatpush1.msra.mxu0 0.0
    %1064 = vmatprep.subr.mxu0 0.0
    %1065 = vmatpush1.msra.mxu0 0.0
    %1066 = vmatprep.subr.mxu0 0.0
    %1067 = vmatpush1.msra.mxu0 0.0
    %1068 = vmatprep.subr.mxu0 0.0
    %1069 = vmatpush1.msra.mxu0 0.0
    %1070 = vmatprep.subr.mxu0 0.0
    %1071 = vmatpush1.msra.mxu0 0.0
    %1072 = vmatprep.subr.mxu0 0.0
    %1073 = vmatpush1.msra.mxu0 0.0
    %1074 = vmatprep.subr.mxu0 0.0
    %1075 = vmatpush1.msra.mxu0 0.0
    %1076 = vmatprep.subr.mxu0 0.0
    %1077 = vmatpush1.msra.mxu0 0.0
    %1078 = vmatprep.subr.mxu0 0.0
    %1079 = vmatpush1.msra.mxu0 0.0
    %1080 = vmatprep.subr.mxu0 0.0
    %1081 = vmatpush1.msra.mxu0 0.0
    %1082 = vmatprep.subr.mxu0 0.0
    %1083 = vmatpush1.msra.mxu0 0.0
    %1084 = vmatprep.subr.mxu0 0.0
    %1085 = vmatpush1.msra.mxu0 0.0
    %1086 = vmatprep.subr.mxu0 0.0
    %1087 = vmatpush1.msra.mxu0 0.0
    %1088 = vmatprep.subr.mxu0 0.0
    %1089 = vmatpush1.msra.mxu0 0.0
    %1090 = vmatprep.subr.mxu0 0.0
    %1091 = vmatpush1.msra.mxu0 0.0
    %1092 = vmatprep.mubr.f32.mxu0 0.0
    %1093 = vmatmul.mubr.f32.gmra.mrb[0].mxu0 %v1005
    %v1094 = vpop.f32.mrb[0].mxu0
    %v1095 = vadd.f32 %v966, %v1094
    %v1096 = vpop.f32.mrb[0].mxu0
    %1097 = vmatprep.mubr.f32.mxu0 0.0
    %1098 = vmatmul.mubr.f32.gmra.mrb[0].mxu0 %v1008
    %v1099 = vpop.f32.mrb[0].mxu0
    %v1100 = vadd.f32 %v971, %v1099
    %v1101 = vpop.f32.mrb[0].mxu0
    %1102 = vmatprep.mubr.f32.mxu0 0.0
    %1103 = vmatmul.mubr.f32.gmra.mrb[0].mxu0 %v1011
    %v1104 = vpop.f32.mrb[0].mxu0
    %v1105 = vadd.f32 %v976, %v1104
    %v1106 = vpop.f32.mrb[0].mxu0
    %1107 = vmatprep.mubr.f32.mxu0 0.0
    %1108 = vmatmul.mubr.f32.gmra.mrb[0].mxu0 %v1014
    %v1109 = vpop.f32.mrb[0].mxu0
    %v1110 = vadd.f32 %v981, %v1109
    %v1111 = vpop.f32.mrb[0].mxu0
    %1112 = vmatprep.mubr.f32.mxu0 0.0
    %1113 = vmatmul.mubr.f32.gmra.mrb[0].mxu0 %v1017
    %v1114 = vpop.f32.mrb[0].mxu0
    %v1115 = vadd.f32 %v986, %v1114
    %v1116 = vpop.f32.mrb[0].mxu0
    %1117 = vmatprep.mubr.f32.mxu0 0.0
    %1118 = vmatmul.mubr.f32.gmra.mrb[0].mxu0 %v1020
    %v1119 = vpop.f32.mrb[0].mxu0
    %v1120 = vadd.f32 %v991, %v1119
    %v1121 = vpop.f32.mrb[0].mxu0
    %1122 = vmatprep.mubr.f32.mxu0 0.0
    %1123 = vmatmul.mubr.f32.gmra.mrb[0].mxu0 %v1023
    %v1124 = vpop.f32.mrb[0].mxu0
    %v1125 = vadd.f32 %v996, %v1124
    %v1126 = vpop.f32.mrb[0].mxu0
    %1127 = vmatprep.mubr.f32.mxu0 0.0
    %1128 = vmatmul.mubr.f32.gmra.mrb[0].mxu0 %v1026
    %v1129 = vpop.f32.mrb[0].mxu0
    %v1130 = vadd.f32 %v1001, %v1129
    %v1131 = vpop.f32.mrb[0].mxu0
    %1132 = vdwg.mxu0
    %v1133 = vld [vmem:[%s21] sm:$0xff]
    %v1134 = vld [vmem:[%s21 + $0x8] sm:$0xff]
    %v1135 = vld [vmem:[%s21 + $0x10] sm:$0xff]
    %v1136 = vld [vmem:[%s21 + $0x18] sm:$0xff]
    %v1137 = vld [vmem:[%s21 + $0x20] sm:$0xff]
    %v1138 = vld [vmem:[%s21 + $0x28] sm:$0xff]
    %v1139 = vld [vmem:[%s21 + $0x30] sm:$0xff]
    %v1140 = vld [vmem:[%s21 + $0x38] sm:$0xff]
    %v1142 = vsel %vm749, %v1133, 0
    %v1145 = vsel %vm749, %v1134, 0
    %v1148 = vsel %vm749, %v1135, 0
    %v1151 = vsel %vm749, %v1136, 0
    %v1154 = vsel %vm749, %v1137, 0
    %v1157 = vsel %vm749, %v1138, 0
    %v1160 = vsel %vm749, %v1139, 0
    %v1163 = vsel %vm749, %v1140, 0
    %1165 = vmatprep.subr.mxu0 0.0
    %1166 = vmatpush1.msra.mxu0 %v851
    %1167 = vmatprep.subr.mxu0 0.0
    %1168 = vmatpush1.msra.mxu0 %v852
    %1169 = vmatprep.subr.mxu0 0.0
    %1170 = vmatpush1.msra.mxu0 %v853
    %1171 = vmatprep.subr.mxu0 0.0
    %1172 = vmatpush1.msra.mxu0 %v854
    %1173 = vmatprep.subr.mxu0 0.0
    %1174 = vmatpush1.msra.mxu0 %v855
    %1175 = vmatprep.subr.mxu0 0.0
    %1176 = vmatpush1.msra.mxu0 %v856
    %1177 = vmatprep.subr.mxu0 0.0
    %1178 = vmatpush1.msra.mxu0 %v857
    %1179 = vmatprep.subr.mxu0 0.0
    %1180 = vmatpush1.msra.mxu0 %v858
    %1181 = vmatprep.subr.mxu0 0.0
    %1182 = vmatpush1.msra.mxu0 0.0
    %1183 = vmatprep.subr.mxu0 0.0
    %1184 = vmatpush1.msra.mxu0 0.0
    %1185 = vmatprep.subr.mxu0 0.0
    %1186 = vmatpush1.msra.mxu0 0.0
    %1187 = vmatprep.subr.mxu0 0.0
    %1188 = vmatpush1.msra.mxu0 0.0
    %1189 = vmatprep.subr.mxu0 0.0
    %1190 = vmatpush1.msra.mxu0 0.0
    %1191 = vmatprep.subr.mxu0 0.0
    %1192 = vmatpush1.msra.mxu0 0.0
    %1193 = vmatprep.subr.mxu0 0.0
    %1194 = vmatpush1.msra.mxu0 0.0
    %1195 = vmatprep.subr.mxu0 0.0
    %1196 = vmatpush1.msra.mxu0 0.0
    %1197 = vmatprep.subr.mxu0 0.0
    %1198 = vmatpush1.msra.mxu0 0.0
    %1199 = vmatprep.subr.mxu0 0.0
    %1200 = vmatpush1.msra.mxu0 0.0
    %1201 = vmatprep.subr.mxu0 0.0
    %1202 = vmatpush1.msra.mxu0 0.0
    %1203 = vmatprep.subr.mxu0 0.0
    %1204 = vmatpush1.msra.mxu0 0.0
    %1205 = vmatprep.subr.mxu0 0.0
    %1206 = vmatpush1.msra.mxu0 0.0
    %1207 = vmatprep.subr.mxu0 0.0
    %1208 = vmatpush1.msra.mxu0 0.0
    %1209 = vmatprep.subr.mxu0 0.0
    %1210 = vmatpush1.msra.mxu0 0.0
    %1211 = vmatprep.subr.mxu0 0.0
    %1212 = vmatpush1.msra.mxu0 0.0
    %1213 = vmatprep.subr.mxu0 0.0
    %1214 = vmatpush1.msra.mxu0 0.0
    %1215 = vmatprep.subr.mxu0 0.0
    %1216 = vmatpush1.msra.mxu0 0.0
    %1217 = vmatprep.subr.mxu0 0.0
    %1218 = vmatpush1.msra.mxu0 0.0
    %1219 = vmatprep.subr.mxu0 0.0
    %1220 = vmatpush1.msra.mxu0 0.0
    %1221 = vmatprep.subr.mxu0 0.0
    %1222 = vmatpush1.msra.mxu0 0.0
    %1223 = vmatprep.subr.mxu0 0.0
    %1224 = vmatpush1.msra.mxu0 0.0
    %1225 = vmatprep.subr.mxu0 0.0
    %1226 = vmatpush1.msra.mxu0 0.0
    %1227 = vmatprep.subr.mxu0 0.0
    %1228 = vmatpush1.msra.mxu0 0.0
    %1229 = vmatprep.mubr.f32.mxu0 0.0
    %1230 = vmatmul.mubr.f32.gmra.mrb[0].mxu0 %v1142
    %v1231 = vpop.f32.mrb[0].mxu0
    %v1232 = vadd.f32 0.0, %v1231
    %v1233 = vpop.f32.mrb[0].mxu0
    %1234 = vmatprep.mubr.f32.mxu0 0.0
    %1235 = vmatmul.mubr.f32.gmra.mrb[0].mxu0 %v1145
    %v1236 = vpop.f32.mrb[0].mxu0
    %v1237 = vadd.f32 0.0, %v1236
    %v1238 = vpop.f32.mrb[0].mxu0
    %1239 = vmatprep.mubr.f32.mxu0 0.0
    %1240 = vmatmul.mubr.f32.gmra.mrb[0].mxu0 %v1148
    %v1241 = vpop.f32.mrb[0].mxu0
    %v1242 = vadd.f32 0.0, %v1241
    %v1243 = vpop.f32.mrb[0].mxu0
    %1244 = vmatprep.mubr.f32.mxu0 0.0
    %1245 = vmatmul.mubr.f32.gmra.mrb[0].mxu0 %v1151
    %v1246 = vpop.f32.mrb[0].mxu0
    %v1247 = vadd.f32 0.0, %v1246
    %v1248 = vpop.f32.mrb[0].mxu0
    %1249 = vmatprep.mubr.f32.mxu0 0.0
    %1250 = vmatmul.mubr.f32.gmra.mrb[0].mxu0 %v1154
    %v1251 = vpop.f32.mrb[0].mxu0
    %v1252 = vadd.f32 0.0, %v1251
    %v1253 = vpop.f32.mrb[0].mxu0
    %1254 = vmatprep.mubr.f32.mxu0 0.0
    %1255 = vmatmul.mubr.f32.gmra.mrb[0].mxu0 %v1157
    %v1256 = vpop.f32.mrb[0].mxu0
    %v1257 = vadd.f32 0.0, %v1256
    %v1258 = vpop.f32.mrb[0].mxu0
    %1259 = vmatprep.mubr.f32.mxu0 0.0
    %1260 = vmatmul.mubr.f32.gmra.mrb[0].mxu0 %v1160
    %v1261 = vpop.f32.mrb[0].mxu0
    %v1262 = vadd.f32 0.0, %v1261
    %v1263 = vpop.f32.mrb[0].mxu0
    %1264 = vmatprep.mubr.f32.mxu0 0.0
    %1265 = vmatmul.mubr.f32.gmra.mrb[0].mxu0 %v1163
    %v1266 = vpop.f32.mrb[0].mxu0
    %v1267 = vadd.f32 0.0, %v1266
    %v1268 = vpop.f32.mrb[0].mxu0
    %1269 = vdwg.mxu0
    %v1270 = vadd.f32 %v1095, %v1232
    %v1271 = vadd.f32 %v1100, %v1237
    %v1272 = vadd.f32 %v1105, %v1242
    %v1273 = vadd.f32 %v1110, %v1247
    %v1274 = vadd.f32 %v1115, %v1252
    %v1275 = vadd.f32 %v1120, %v1257
    %v1276 = vadd.f32 %v1125, %v1262
    %v1277 = vadd.f32 %v1130, %v1267
    %v1278 = vld [vmem:[%s23] sm:$0xff]
    %v1279 = vld [vmem:[%s23 + $0x8] sm:$0xff]
    %v1280 = vld [vmem:[%s23 + $0x10] sm:$0xff]
    %v1281 = vld [vmem:[%s23 + $0x18] sm:$0xff]
    %v1282 = vld [vmem:[%s23 + $0x20] sm:$0xff]
    %v1283 = vld [vmem:[%s23 + $0x28] sm:$0xff]
    %v1284 = vld [vmem:[%s23 + $0x30] sm:$0xff]
    %v1285 = vld [vmem:[%s23 + $0x38] sm:$0xff]
    %1287 = vset.pattern.permute.xlu0 0
    %1288 = vperm.xlu0 %1287, %v1278
    %v1289 = vpop.permute.xlu0 %1288
    %1292 = vset.pattern.permute.xlu0 0
    %1293 = vperm.xlu0 %1292, %v1279
    %v1294 = vpop.permute.xlu0 %1293
    %1297 = vset.pattern.permute.xlu0 0
    %1298 = vperm.xlu0 %1297, %v1280
    %v1299 = vpop.permute.xlu0 %1298
    %1302 = vset.pattern.permute.xlu0 0
    %1303 = vperm.xlu0 %1302, %v1281
    %v1304 = vpop.permute.xlu0 %1303
    %1307 = vset.pattern.permute.xlu0 0
    %1308 = vperm.xlu0 %1307, %v1282
    %v1309 = vpop.permute.xlu0 %1308
    %1312 = vset.pattern.permute.xlu0 0
    %1313 = vperm.xlu0 %1312, %v1283
    %v1314 = vpop.permute.xlu0 %1313
    %1317 = vset.pattern.permute.xlu0 0
    %1318 = vperm.xlu0 %1317, %v1284
    %v1319 = vpop.permute.xlu0 %1318
    %1322 = vset.pattern.permute.xlu0 0
    %1323 = vperm.xlu0 %1322, %v1285
    %v1324 = vpop.permute.xlu0 %1323
    %v1326 = vadd.f32 %v1270, %v1289
    %v1327 = vadd.f32 %v1271, %v1294
    %v1328 = vadd.f32 %v1272, %v1299
    %v1329 = vadd.f32 %v1273, %v1304
    %v1330 = vadd.f32 %v1274, %v1309
    %v1331 = vadd.f32 %v1275, %v1314
    %v1332 = vadd.f32 %v1276, %v1319
    %v1333 = vadd.f32 %v1277, %v1324
    %1334 = vadd.xlane.f32.xlu0 %v1326
    %v1335 = vpop.xlane.xlu0 %1334
    %1336 = vadd.xlane.f32.xlu0 %v1327
    %v1337 = vpop.xlane.xlu0 %1336
    %1338 = vadd.xlane.f32.xlu0 %v1328
    %v1339 = vpop.xlane.xlu0 %1338
    %1340 = vadd.xlane.f32.xlu0 %v1329
    %v1341 = vpop.xlane.xlu0 %1340
    %1342 = vadd.xlane.f32.xlu0 %v1330
    %v1343 = vpop.xlane.xlu0 %1342
    %1344 = vadd.xlane.f32.xlu0 %v1331
    %v1345 = vpop.xlane.xlu0 %1344
    %1346 = vadd.xlane.f32.xlu0 %v1332
    %v1347 = vpop.xlane.xlu0 %1346
    %1348 = vadd.xlane.f32.xlu0 %v1333
    %v1349 = vpop.xlane.xlu0 %1348
    %v1350 = vmul.f32 %v1326, %v1326
    %v1351 = vmul.f32 %v1327, %v1327
    %v1352 = vmul.f32 %v1328, %v1328
    %v1353 = vmul.f32 %v1329, %v1329
    %v1354 = vmul.f32 %v1330, %v1330
    %v1355 = vmul.f32 %v1331, %v1331
    %v1356 = vmul.f32 %v1332, %v1332
    %v1357 = vmul.f32 %v1333, %v1333
    %1358 = vadd.xlane.f32.xlu0 %v1350
    %v1359 = vpop.xlane.xlu0 %1358
    %1360 = vadd.xlane.f32.xlu0 %v1351
    %v1361 = vpop.xlane.xlu0 %1360
    %1362 = vadd.xlane.f32.xlu0 %v1352
    %v1363 = vpop.xlane.xlu0 %1362
    %1364 = vadd.xlane.f32.xlu0 %v1353
    %v1365 = vpop.xlane.xlu0 %1364
    %1366 = vadd.xlane.f32.xlu0 %v1354
    %v1367 = vpop.xlane.xlu0 %1366
    %1368 = vadd.xlane.f32.xlu0 %v1355
    %v1369 = vpop.xlane.xlu0 %1368
    %1370 = vadd.xlane.f32.xlu0 %v1356
    %v1371 = vpop.xlane.xlu0 %1370
    %1372 = vadd.xlane.f32.xlu0 %v1357
    %v1373 = vpop.xlane.xlu0 %1372
    %v1374 = vmul.f32 %v1335, 0.0078125
    %v1375 = vmul.f32 %v1337, 0.0078125
    %v1376 = vmul.f32 %v1339, 0.0078125
    %v1377 = vmul.f32 %v1341, 0.0078125
    %v1378 = vmul.f32 %v1343, 0.0078125
    %v1379 = vmul.f32 %v1345, 0.0078125
    %v1380 = vmul.f32 %v1347, 0.0078125
    %v1381 = vmul.f32 %v1349, 0.0078125
    %v1382 = vmul.f32 %v1359, 0.0078125
    %v1383 = vmul.f32 %v1361, 0.0078125
    %v1384 = vmul.f32 %v1363, 0.0078125
    %v1385 = vmul.f32 %v1365, 0.0078125
    %v1386 = vmul.f32 %v1367, 0.0078125
    %v1387 = vmul.f32 %v1369, 0.0078125
    %v1388 = vmul.f32 %v1371, 0.0078125
    %v1389 = vmul.f32 %v1373, 0.0078125
    %v1390 = vmul.f32 %v1374, %v1374
    %v1391 = vmul.f32 %v1375, %v1375
    %v1392 = vmul.f32 %v1376, %v1376
    %v1393 = vmul.f32 %v1377, %v1377
    %v1394 = vmul.f32 %v1378, %v1378
    %v1395 = vmul.f32 %v1379, %v1379
    %v1396 = vmul.f32 %v1380, %v1380
    %v1397 = vmul.f32 %v1381, %v1381
    %v1398 = vsub.f32 %v1382, %v1390
    %v1399 = vsub.f32 %v1383, %v1391
    %v1400 = vsub.f32 %v1384, %v1392
    %v1401 = vsub.f32 %v1385, %v1393
    %v1402 = vsub.f32 %v1386, %v1394
    %v1403 = vsub.f32 %v1387, %v1395
    %v1404 = vsub.f32 %v1388, %v1396
    %v1405 = vsub.f32 %v1389, %v1397
    %v1406 = vmax.f32 %v1398, 0.0
    %v1407 = vmax.f32 %v1399, 0.0
    %v1408 = vmax.f32 %v1400, 0.0
    %v1409 = vmax.f32 %v1401, 0.0
    %v1410 = vmax.f32 %v1402, 0.0
    %v1411 = vmax.f32 %v1403, 0.0
    %v1412 = vmax.f32 %v1404, 0.0
    %v1413 = vmax.f32 %v1405, 0.0
    %v1414 = vld [vmem:[%s25] sm:$0xff]
    %v1415 = vld [vmem:[%s25 + $0x8] sm:$0xff]
    %v1416 = vld [vmem:[%s25 + $0x10] sm:$0xff]
    %v1417 = vld [vmem:[%s25 + $0x18] sm:$0xff]
    %v1418 = vld [vmem:[%s25 + $0x20] sm:$0xff]
    %v1419 = vld [vmem:[%s25 + $0x28] sm:$0xff]
    %v1420 = vld [vmem:[%s25 + $0x30] sm:$0xff]
    %v1421 = vld [vmem:[%s25 + $0x38] sm:$0xff]
    %v1422 = vadd.f32 %v1406, 1e-05
    %v1423 = vadd.f32 %v1407, 1e-05
    %v1424 = vadd.f32 %v1408, 1e-05
    %v1425 = vadd.f32 %v1409, 1e-05
    %v1426 = vadd.f32 %v1410, 1e-05
    %v1427 = vadd.f32 %v1411, 1e-05
    %v1428 = vadd.f32 %v1412, 1e-05
    %v1429 = vadd.f32 %v1413, 1e-05
    %v1430 = vrsqrt.pop %v1422
    %v1431 = vrsqrt.pop %v1423
    %v1432 = vrsqrt.pop %v1424
    %v1433 = vrsqrt.pop %v1425
    %v1434 = vrsqrt.pop %v1426
    %v1435 = vrsqrt.pop %v1427
    %v1436 = vrsqrt.pop %v1428
    %v1437 = vrsqrt.pop %v1429
    %v1438 = vmul.f32 %v1414, %v1430
    %v1439 = vmul.f32 %v1415, %v1431
    %v1440 = vmul.f32 %v1416, %v1432
    %v1441 = vmul.f32 %v1417, %v1433
    %v1442 = vmul.f32 %v1418, %v1434
    %v1443 = vmul.f32 %v1419, %v1435
    %v1444 = vmul.f32 %v1420, %v1436
    %v1445 = vmul.f32 %v1421, %v1437
    %v1446 = vld [vmem:[%s27] sm:$0xff]
    %v1447 = vld [vmem:[%s27 + $0x8] sm:$0xff]
    %v1448 = vld [vmem:[%s27 + $0x10] sm:$0xff]
    %v1449 = vld [vmem:[%s27 + $0x18] sm:$0xff]
    %v1450 = vld [vmem:[%s27 + $0x20] sm:$0xff]
    %v1451 = vld [vmem:[%s27 + $0x28] sm:$0xff]
    %v1452 = vld [vmem:[%s27 + $0x30] sm:$0xff]
    %v1453 = vld [vmem:[%s27 + $0x38] sm:$0xff]
    %v1454 = vmul.f32 %v1374, %v1438
    %v1455 = vmul.f32 %v1375, %v1439
    %v1456 = vmul.f32 %v1376, %v1440
    %v1457 = vmul.f32 %v1377, %v1441
    %v1458 = vmul.f32 %v1378, %v1442
    %v1459 = vmul.f32 %v1379, %v1443
    %v1460 = vmul.f32 %v1380, %v1444
    %v1461 = vmul.f32 %v1381, %v1445
    %v1462 = vsub.f32 %v1446, %v1454
    %v1463 = vsub.f32 %v1447, %v1455
    %v1464 = vsub.f32 %v1448, %v1456
    %v1465 = vsub.f32 %v1449, %v1457
    %v1466 = vsub.f32 %v1450, %v1458
    %v1467 = vsub.f32 %v1451, %v1459
    %v1468 = vsub.f32 %v1452, %v1460
    %v1469 = vsub.f32 %v1453, %v1461
    %1471 = vset.pattern.permute.xlu0 0
    %1472 = vperm.xlu0 %1471, %v1438
    %v1473 = vpop.permute.xlu0 %1472
    %1476 = vset.pattern.permute.xlu0 0
    %1477 = vperm.xlu0 %1476, %v1439
    %v1478 = vpop.permute.xlu0 %1477
    %1481 = vset.pattern.permute.xlu0 0
    %1482 = vperm.xlu0 %1481, %v1440
    %v1483 = vpop.permute.xlu0 %1482
    %1486 = vset.pattern.permute.xlu0 0
    %1487 = vperm.xlu0 %1486, %v1441
    %v1488 = vpop.permute.xlu0 %1487
    %1491 = vset.pattern.permute.xlu0 0
    %1492 = vperm.xlu0 %1491, %v1442
    %v1493 = vpop.permute.xlu0 %1492
    %1496 = vset.pattern.permute.xlu0 0
    %1497 = vperm.xlu0 %1496, %v1443
    %v1498 = vpop.permute.xlu0 %1497
    %1501 = vset.pattern.permute.xlu0 0
    %1502 = vperm.xlu0 %1501, %v1444
    %v1503 = vpop.permute.xlu0 %1502
    %1506 = vset.pattern.permute.xlu0 0
    %1507 = vperm.xlu0 %1506, %v1445
    %v1508 = vpop.permute.xlu0 %1507
    %v1510 = vmul.f32 %v1326, %v1473
    %v1511 = vmul.f32 %v1327, %v1478
    %v1512 = vmul.f32 %v1328, %v1483
    %v1513 = vmul.f32 %v1329, %v1488
    %v1514 = vmul.f32 %v1330, %v1493
    %v1515 = vmul.f32 %v1331, %v1498
    %v1516 = vmul.f32 %v1332, %v1503
    %v1517 = vmul.f32 %v1333, %v1508
    %1519 = vset.pattern.permute.xlu0 0
    %1520 = vperm.xlu0 %1519, %v1462
    %v1521 = vpop.permute.xlu0 %1520
    %1524 = vset.pattern.permute.xlu0 0
    %1525 = vperm.xlu0 %1524, %v1463
    %v1526 = vpop.permute.xlu0 %1525
    %1529 = vset.pattern.permute.xlu0 0
    %1530 = vperm.xlu0 %1529, %v1464
    %v1531 = vpop.permute.xlu0 %1530
    %1534 = vset.pattern.permute.xlu0 0
    %1535 = vperm.xlu0 %1534, %v1465
    %v1536 = vpop.permute.xlu0 %1535
    %1539 = vset.pattern.permute.xlu0 0
    %1540 = vperm.xlu0 %1539, %v1466
    %v1541 = vpop.permute.xlu0 %1540
    %1544 = vset.pattern.permute.xlu0 0
    %1545 = vperm.xlu0 %1544, %v1467
    %v1546 = vpop.permute.xlu0 %1545
    %1549 = vset.pattern.permute.xlu0 0
    %1550 = vperm.xlu0 %1549, %v1468
    %v1551 = vpop.permute.xlu0 %1550
    %1554 = vset.pattern.permute.xlu0 0
    %1555 = vperm.xlu0 %1554, %v1469
    %v1556 = vpop.permute.xlu0 %1555
    %v1558 = vadd.f32 %v1510, %v1521
    %v1559 = vadd.f32 %v1511, %v1526
    %v1560 = vadd.f32 %v1512, %v1531
    %v1561 = vadd.f32 %v1513, %v1536
    %v1562 = vadd.f32 %v1514, %v1541
    %v1563 = vadd.f32 %v1515, %v1546
    %v1564 = vadd.f32 %v1516, %v1551
    %v1565 = vadd.f32 %v1517, %v1556
    %v1566 = vmul.f32 %v1558, 0.5
    %v1567 = vmul.f32 %v1559, 0.5
    %v1568 = vmul.f32 %v1560, 0.5
    %v1569 = vmul.f32 %v1561, 0.5
    %v1570 = vmul.f32 %v1562, 0.5
    %v1571 = vmul.f32 %v1563, 0.5
    %v1572 = vmul.f32 %v1564, 0.5
    %v1573 = vmul.f32 %v1565, 0.5
    %v1574 = vtanh.pop %v1566
    %v1575 = vtanh.pop %v1567
    %v1576 = vtanh.pop %v1568
    %v1577 = vtanh.pop %v1569
    %v1578 = vtanh.pop %v1570
    %v1579 = vtanh.pop %v1571
    %v1580 = vtanh.pop %v1572
    %v1581 = vtanh.pop %v1573
    %v1582 = vmul.f32 %v1574, 0.5
    %v1583 = vmul.f32 %v1575, 0.5
    %v1584 = vmul.f32 %v1576, 0.5
    %v1585 = vmul.f32 %v1577, 0.5
    %v1586 = vmul.f32 %v1578, 0.5
    %v1587 = vmul.f32 %v1579, 0.5
    %v1588 = vmul.f32 %v1580, 0.5
    %v1589 = vmul.f32 %v1581, 0.5
    %v1590 = vadd.f32 %v1582, 0.5
    %v1591 = vadd.f32 %v1583, 0.5
    %v1592 = vadd.f32 %v1584, 0.5
    %v1593 = vadd.f32 %v1585, 0.5
    %v1594 = vadd.f32 %v1586, 0.5
    %v1595 = vadd.f32 %v1587, 0.5
    %v1596 = vadd.f32 %v1588, 0.5
    %v1597 = vadd.f32 %v1589, 0.5
    %1598 = vst.msk [vmem:[#allocation20] sm:$0xff] %vm749, %v1590
    %1599 = vst.msk [vmem:[#allocation20 + $0x8] sm:$0xff] %vm749, %v1591
    %1600 = vst.msk [vmem:[#allocation20 + $0x10] sm:$0xff] %vm749, %v1592
    %1601 = vst.msk [vmem:[#allocation20 + $0x18] sm:$0xff] %vm749, %v1593
    %1602 = vst.msk [vmem:[#allocation20 + $0x20] sm:$0xff] %vm749, %v1594
    %1603 = vst.msk [vmem:[#allocation20 + $0x28] sm:$0xff] %vm749, %v1595
    %1604 = vst.msk [vmem:[#allocation20 + $0x30] sm:$0xff] %vm749, %v1596
    %1605 = vst.msk [vmem:[#allocation20 + $0x38] sm:$0xff] %vm749, %v1597
    %1614 = vrot.lane.b32.xlu0 %v1590, 64
    %v1615 = vpop.permute.xlu0 %1614
    %1616 = vrot.lane.b32.xlu0 %v1591, 64
    %v1617 = vpop.permute.xlu0 %1616
    %1618 = vrot.lane.b32.xlu0 %v1592, 64
    %v1619 = vpop.permute.xlu0 %1618
    %1620 = vrot.lane.b32.xlu0 %v1593, 64
    %v1621 = vpop.permute.xlu0 %1620
    %1622 = vrot.lane.b32.xlu0 %v1594, 64
    %v1623 = vpop.permute.xlu0 %1622
    %1624 = vrot.lane.b32.xlu0 %v1595, 64
    %v1625 = vpop.permute.xlu0 %1624
    %1626 = vrot.lane.b32.xlu0 %v1596, 64
    %v1627 = vpop.permute.xlu0 %1626
    %1628 = vrot.lane.b32.xlu0 %v1597, 64
    %v1629 = vpop.permute.xlu0 %1628
    %s1638 = scalar_lea.vmem [#allocation20], 64
    %1639 = vst.msk [vmem:[%s1638] sm:$0xff] %vm749, %v1615
    %1640 = vst.msk [vmem:[%s1638 + $0x8] sm:$0xff] %vm749, %v1617
    %1641 = vst.msk [vmem:[%s1638 + $0x10] sm:$0xff] %vm749, %v1619
    %1642 = vst.msk [vmem:[%s1638 + $0x18] sm:$0xff] %vm749, %v1621
    %1643 = vst.msk [vmem:[%s1638 + $0x20] sm:$0xff] %vm749, %v1623
    %1644 = vst.msk [vmem:[%s1638 + $0x28] sm:$0xff] %vm749, %v1625
    %1645 = vst.msk [vmem:[%s1638 + $0x30] sm:$0xff] %vm749, %v1627
    %1646 = vst.msk [vmem:[%s1638 + $0x38] sm:$0xff] %vm749, %v1629
    %1647 = vrot.lane.b32.xlu0 %v1590, 1
    %v1648 = vpop.permute.xlu0 %1647
    %1649 = vrot.lane.b32.xlu0 %v1591, 1
    %v1650 = vpop.permute.xlu0 %1649
    %1651 = vrot.lane.b32.xlu0 %v1592, 1
    %v1652 = vpop.permute.xlu0 %1651
    %1653 = vrot.lane.b32.xlu0 %v1593, 1
    %v1654 = vpop.permute.xlu0 %1653
    %1655 = vrot.lane.b32.xlu0 %v1594, 1
    %v1656 = vpop.permute.xlu0 %1655
    %1657 = vrot.lane.b32.xlu0 %v1595, 1
    %v1658 = vpop.permute.xlu0 %1657
    %1659 = vrot.lane.b32.xlu0 %v1596, 1
    %v1660 = vpop.permute.xlu0 %1659
    %1661 = vrot.lane.b32.xlu0 %v1597, 1
    %v1662 = vpop.permute.xlu0 %1661
    %v1663 = vmul.f32 %v1648, %v819
    %v1664 = vmul.f32 %v1650, %v819
    %v1665 = vmul.f32 %v1652, %v819
    %v1666 = vmul.f32 %v1654, %v819
    %v1667 = vmul.f32 %v1656, %v819
    %v1668 = vmul.f32 %v1658, %v819
    %v1669 = vmul.f32 %v1660, %v819
    %v1670 = vmul.f32 %v1662, %v819
    %1671 = vrot.lane.b32.xlu0 %v1590, 127
    %v1672 = vpop.permute.xlu0 %1671
    %1673 = vrot.lane.b32.xlu0 %v1591, 127
    %v1674 = vpop.permute.xlu0 %1673
    %1675 = vrot.lane.b32.xlu0 %v1592, 127
    %v1676 = vpop.permute.xlu0 %1675
    %1677 = vrot.lane.b32.xlu0 %v1593, 127
    %v1678 = vpop.permute.xlu0 %1677
    %1679 = vrot.lane.b32.xlu0 %v1594, 127
    %v1680 = vpop.permute.xlu0 %1679
    %1681 = vrot.lane.b32.xlu0 %v1595, 127
    %v1682 = vpop.permute.xlu0 %1681
    %1683 = vrot.lane.b32.xlu0 %v1596, 127
    %v1684 = vpop.permute.xlu0 %1683
    %1685 = vrot.lane.b32.xlu0 %v1597, 127
    %v1686 = vpop.permute.xlu0 %1685
    %v1687 = vmul.f32 %v1672, %v849
    %v1688 = vmul.f32 %v1674, %v849
    %v1689 = vmul.f32 %v1676, %v849
    %v1690 = vmul.f32 %v1678, %v849
    %v1691 = vmul.f32 %v1680, %v849
    %v1692 = vmul.f32 %v1682, %v849
    %v1693 = vmul.f32 %v1684, %v849
    %v1694 = vmul.f32 %v1686, %v849
    %v1695 = vld [vmem:[%s31] sm:$0x1]
    %v1696 = vld [vmem:[%s29] sm:$0x1]
    %v1698 = vsel %vm749, %v1696, 0
    %1700 = vmatprep.subr.mxu0 0.0
    %1701 = vmatpush1.msra.mxu0 %v1663
    %1702 = vmatprep.subr.mxu0 0.0
    %1703 = vmatpush1.msra.mxu0 %v1664
    %1704 = vmatprep.subr.mxu0 0.0
    %1705 = vmatpush1.msra.mxu0 %v1665
    %1706 = vmatprep.subr.mxu0 0.0
    %1707 = vmatpush1.msra.mxu0 %v1666
    %1708 = vmatprep.subr.mxu0 0.0
    %1709 = vmatpush1.msra.mxu0 %v1667
    %1710 = vmatprep.subr.mxu0 0.0
    %1711 = vmatpush1.msra.mxu0 %v1668
    %1712 = vmatprep.subr.mxu0 0.0
    %1713 = vmatpush1.msra.mxu0 %v1669
    %1714 = vmatprep.subr.mxu0 0.0
    %1715 = vmatpush1.msra.mxu0 %v1670
    %1716 = vmatprep.subr.mxu0 0.0
    %1717 = vmatpush1.msra.mxu0 0.0
    %1718 = vmatprep.subr.mxu0 0.0
    %1719 = vmatpush1.msra.mxu0 0.0
    %1720 = vmatprep.subr.mxu0 0.0
    %1721 = vmatpush1.msra.mxu0 0.0
    %1722 = vmatprep.subr.mxu0 0.0
    %1723 = vmatpush1.msra.mxu0 0.0
    %1724 = vmatprep.subr.mxu0 0.0
    %1725 = vmatpush1.msra.mxu0 0.0
    %1726 = vmatprep.subr.mxu0 0.0
    %1727 = vmatpush1.msra.mxu0 0.0
    %1728 = vmatprep.subr.mxu0 0.0
    %1729 = vmatpush1.msra.mxu0 0.0
    %1730 = vmatprep.subr.mxu0 0.0
    %1731 = vmatpush1.msra.mxu0 0.0
    %1732 = vmatprep.subr.mxu0 0.0
    %1733 = vmatpush1.msra.mxu0 0.0
    %1734 = vmatprep.subr.mxu0 0.0
    %1735 = vmatpush1.msra.mxu0 0.0
    %1736 = vmatprep.subr.mxu0 0.0
    %1737 = vmatpush1.msra.mxu0 0.0
    %1738 = vmatprep.subr.mxu0 0.0
    %1739 = vmatpush1.msra.mxu0 0.0
    %1740 = vmatprep.subr.mxu0 0.0
    %1741 = vmatpush1.msra.mxu0 0.0
    %1742 = vmatprep.subr.mxu0 0.0
    %1743 = vmatpush1.msra.mxu0 0.0
    %1744 = vmatprep.subr.mxu0 0.0
    %1745 = vmatpush1.msra.mxu0 0.0
    %1746 = vmatprep.subr.mxu0 0.0
    %1747 = vmatpush1.msra.mxu0 0.0
    %1748 = vmatprep.subr.mxu0 0.0
    %1749 = vmatpush1.msra.mxu0 0.0
    %1750 = vmatprep.subr.mxu0 0.0
    %1751 = vmatpush1.msra.mxu0 0.0
    %1752 = vmatprep.subr.mxu0 0.0
    %1753 = vmatpush1.msra.mxu0 0.0
    %1754 = vmatprep.subr.mxu0 0.0
    %1755 = vmatpush1.msra.mxu0 0.0
    %1756 = vmatprep.subr.mxu0 0.0
    %1757 = vmatpush1.msra.mxu0 0.0
    %1758 = vmatprep.subr.mxu0 0.0
    %1759 = vmatpush1.msra.mxu0 0.0
    %1760 = vmatprep.subr.mxu0 0.0
    %1761 = vmatpush1.msra.mxu0 0.0
    %1762 = vmatprep.subr.mxu0 0.0
    %1763 = vmatpush1.msra.mxu0 0.0
    %1764 = vmatprep.mubr.f32.mxu0 0.0
    %1765 = vmatmul.mubr.f32.gmra.mrb[0].mxu0 %v1698
    %v1766 = vpop.f32.mrb[0].mxu0
    %v1767 = vadd.f32 0.0, %v1766
    %v1768 = vpop.f32.mrb[0].mxu0
    %1769 = vdwg.mxu0
    %v1771 = vsel %vm749, %v1695, 0
    %1773 = vmatprep.subr.mxu0 0.0
    %1774 = vmatpush1.msra.mxu0 %v1590
    %1775 = vmatprep.subr.mxu0 0.0
    %1776 = vmatpush1.msra.mxu0 %v1591
    %1777 = vmatprep.subr.mxu0 0.0
    %1778 = vmatpush1.msra.mxu0 %v1592
    %1779 = vmatprep.subr.mxu0 0.0
    %1780 = vmatpush1.msra.mxu0 %v1593
    %1781 = vmatprep.subr.mxu0 0.0
    %1782 = vmatpush1.msra.mxu0 %v1594
    %1783 = vmatprep.subr.mxu0 0.0
    %1784 = vmatpush1.msra.mxu0 %v1595
    %1785 = vmatprep.subr.mxu0 0.0
    %1786 = vmatpush1.msra.mxu0 %v1596
    %1787 = vmatprep.subr.mxu0 0.0
    %1788 = vmatpush1.msra.mxu0 %v1597
    %1789 = vmatprep.subr.mxu0 0.0
    %1790 = vmatpush1.msra.mxu0 0.0
    %1791 = vmatprep.subr.mxu0 0.0
    %1792 = vmatpush1.msra.mxu0 0.0
    %1793 = vmatprep.subr.mxu0 0.0
    %1794 = vmatpush1.msra.mxu0 0.0
    %1795 = vmatprep.subr.mxu0 0.0
    %1796 = vmatpush1.msra.mxu0 0.0
    %1797 = vmatprep.subr.mxu0 0.0
    %1798 = vmatpush1.msra.mxu0 0.0
    %1799 = vmatprep.subr.mxu0 0.0
    %1800 = vmatpush1.msra.mxu0 0.0
    %1801 = vmatprep.subr.mxu0 0.0
    %1802 = vmatpush1.msra.mxu0 0.0
    %1803 = vmatprep.subr.mxu0 0.0
    %1804 = vmatpush1.msra.mxu0 0.0
    %1805 = vmatprep.subr.mxu0 0.0
    %1806 = vmatpush1.msra.mxu0 0.0
    %1807 = vmatprep.subr.mxu0 0.0
    %1808 = vmatpush1.msra.mxu0 0.0
    %1809 = vmatprep.subr.mxu0 0.0
    %1810 = vmatpush1.msra.mxu0 0.0
    %1811 = vmatprep.subr.mxu0 0.0
    %1812 = vmatpush1.msra.mxu0 0.0
    %1813 = vmatprep.subr.mxu0 0.0
    %1814 = vmatpush1.msra.mxu0 0.0
    %1815 = vmatprep.subr.mxu0 0.0
    %1816 = vmatpush1.msra.mxu0 0.0
    %1817 = vmatprep.subr.mxu0 0.0
    %1818 = vmatpush1.msra.mxu0 0.0
    %1819 = vmatprep.subr.mxu0 0.0
    %1820 = vmatpush1.msra.mxu0 0.0
    %1821 = vmatprep.subr.mxu0 0.0
    %1822 = vmatpush1.msra.mxu0 0.0
    %1823 = vmatprep.subr.mxu0 0.0
    %1824 = vmatpush1.msra.mxu0 0.0
    %1825 = vmatprep.subr.mxu0 0.0
    %1826 = vmatpush1.msra.mxu0 0.0
    %1827 = vmatprep.subr.mxu0 0.0
    %1828 = vmatpush1.msra.mxu0 0.0
    %1829 = vmatprep.subr.mxu0 0.0
    %1830 = vmatpush1.msra.mxu0 0.0
    %1831 = vmatprep.subr.mxu0 0.0
    %1832 = vmatpush1.msra.mxu0 0.0
    %1833 = vmatprep.subr.mxu0 0.0
    %1834 = vmatpush1.msra.mxu0 0.0
    %1835 = vmatprep.subr.mxu0 0.0
    %1836 = vmatpush1.msra.mxu0 0.0
    %1837 = vmatprep.mubr.f32.mxu0 0.0
    %1838 = vmatmul.mubr.f32.gmra.mrb[0].mxu0 %v1771
    %v1839 = vpop.f32.mrb[0].mxu0
    %v1840 = vadd.f32 %v1767, %v1839
    %v1841 = vpop.f32.mrb[0].mxu0
    %1842 = vdwg.mxu0
    %v1843 = vld [vmem:[%s33] sm:$0x1]
    %v1845 = vsel %vm749, %v1843, 0
    %1847 = vmatprep.subr.mxu0 0.0
    %1848 = vmatpush1.msra.mxu0 %v1687
    %1849 = vmatprep.subr.mxu0 0.0
    %1850 = vmatpush1.msra.mxu0 %v1688
    %1851 = vmatprep.subr.mxu0 0.0
    %1852 = vmatpush1.msra.mxu0 %v1689
    %1853 = vmatprep.subr.mxu0 0.0
    %1854 = vmatpush1.msra.mxu0 %v1690
    %1855 = vmatprep.subr.mxu0 0.0
    %1856 = vmatpush1.msra.mxu0 %v1691
    %1857 = vmatprep.subr.mxu0 0.0
    %1858 = vmatpush1.msra.mxu0 %v1692
    %1859 = vmatprep.subr.mxu0 0.0
    %1860 = vmatpush1.msra.mxu0 %v1693
    %1861 = vmatprep.subr.mxu0 0.0
    %1862 = vmatpush1.msra.mxu0 %v1694
    %1863 = vmatprep.subr.mxu0 0.0
    %1864 = vmatpush1.msra.mxu0 0.0
    %1865 = vmatprep.subr.mxu0 0.0
    %1866 = vmatpush1.msra.mxu0 0.0
    %1867 = vmatprep.subr.mxu0 0.0
    %1868 = vmatpush1.msra.mxu0 0.0
    %1869 = vmatprep.subr.mxu0 0.0
    %1870 = vmatpush1.msra.mxu0 0.0
    %1871 = vmatprep.subr.mxu0 0.0
    %1872 = vmatpush1.msra.mxu0 0.0
    %1873 = vmatprep.subr.mxu0 0.0
    %1874 = vmatpush1.msra.mxu0 0.0
    %1875 = vmatprep.subr.mxu0 0.0
    %1876 = vmatpush1.msra.mxu0 0.0
    %1877 = vmatprep.subr.mxu0 0.0
    %1878 = vmatpush1.msra.mxu0 0.0
    %1879 = vmatprep.subr.mxu0 0.0
    %1880 = vmatpush1.msra.mxu0 0.0
    %1881 = vmatprep.subr.mxu0 0.0
    %1882 = vmatpush1.msra.mxu0 0.0
    %1883 = vmatprep.subr.mxu0 0.0
    %1884 = vmatpush1.msra.mxu0 0.0
    %1885 = vmatprep.subr.mxu0 0.0
    %1886 = vmatpush1.msra.mxu0 0.0
    %1887 = vmatprep.subr.mxu0 0.0
    %1888 = vmatpush1.msra.mxu0 0.0
    %1889 = vmatprep.subr.mxu0 0.0
    %1890 = vmatpush1.msra.mxu0 0.0
    %1891 = vmatprep.subr.mxu0 0.0
    %1892 = vmatpush1.msra.mxu0 0.0
    %1893 = vmatprep.subr.mxu0 0.0
    %1894 = vmatpush1.msra.mxu0 0.0
    %1895 = vmatprep.subr.mxu0 0.0
    %1896 = vmatpush1.msra.mxu0 0.0
    %1897 = vmatprep.subr.mxu0 0.0
    %1898 = vmatpush1.msra.mxu0 0.0
    %1899 = vmatprep.subr.mxu0 0.0
    %1900 = vmatpush1.msra.mxu0 0.0
    %1901 = vmatprep.subr.mxu0 0.0
    %1902 = vmatpush1.msra.mxu0 0.0
    %1903 = vmatprep.subr.mxu0 0.0
    %1904 = vmatpush1.msra.mxu0 0.0
    %1905 = vmatprep.subr.mxu0 0.0
    %1906 = vmatpush1.msra.mxu0 0.0
    %1907 = vmatprep.subr.mxu0 0.0
    %1908 = vmatpush1.msra.mxu0 0.0
    %1909 = vmatprep.subr.mxu0 0.0
    %1910 = vmatpush1.msra.mxu0 0.0
    %1911 = vmatprep.mubr.f32.mxu0 0.0
    %1912 = vmatmul.mubr.f32.gmra.mrb[0].mxu0 %v1845
    %v1913 = vpop.f32.mrb[0].mxu0
    %v1914 = vadd.f32 0.0, %v1913
    %v1915 = vpop.f32.mrb[0].mxu0
    %1916 = vdwg.mxu0
    %v1917 = vadd.f32 %v1840, %v1914
    %v1918 = vld [vmem:[#allocation2] sm:$0x1]
    %1920 = vset.pattern.permute.xlu0 0
    %1921 = vperm.xlu0 %1920, %v1918
    %v1922 = vpop.permute.xlu0 %1921
    %v1924 = vlaneseq
    %v1925 = vshrl.u32 %v1924, 7
    %v1926 = vsub.s32 0, %v1925
    %v1927 = vrot.slane %v1922, %v1926
    %v1928 = vadd.f32 %v1917, %v1927
    %vm1929 = vcmask 1040384
    %v1930 = vsel %vm1929, %v1928, 0.0
    %1931 = vadd.xlane.f32.xlu0 %v1930
    %v1932 = vpop.xlane.xlu0 %1931
    %v1933 = vmul.f32 %v1928, %v1928
    %v1934 = vsel %vm1929, %v1933, 0.0
    %1935 = vadd.xlane.f32.xlu0 %v1934
    %v1936 = vpop.xlane.xlu0 %1935
    %v1937 = vmul.f32 %v1932, 0.0078125
    %v1938 = vmul.f32 %v1936, 0.0078125
    %v1939 = vmul.f32 %v1937, %v1937
    %v1940 = vsub.f32 %v1938, %v1939
    %v1941 = vmax.f32 %v1940, 0.0
    %v1942 = vld [vmem:[#allocation3] sm:$0x1]
    %v1943 = vadd.f32 %v1941, 1e-05
    %v1944 = vrsqrt.pop %v1943
    %v1945 = vmul.f32 %v1942, %v1944
    %v1946 = vld [vmem:[#allocation4] sm:$0x1]
    %v1947 = vmul.f32 %v1937, %v1945
    %v1948 = vsub.f32 %v1946, %v1947
    %1950 = vset.pattern.permute.xlu0 0
    %1951 = vperm.xlu0 %1950, %v1945
    %v1952 = vpop.permute.xlu0 %1951
    %v1954 = vlaneseq
    %v1955 = vshrl.u32 %v1954, 7
    %v1956 = vsub.s32 0, %v1955
    %v1957 = vrot.slane %v1952, %v1956
    %v1958 = vmul.f32 %v1928, %v1957
    %1960 = vset.pattern.permute.xlu0 0
    %1961 = vperm.xlu0 %1960, %v1948
    %v1962 = vpop.permute.xlu0 %1961
    %v1964 = vlaneseq
    %v1965 = vshrl.u32 %v1964, 7
    %v1966 = vsub.s32 0, %v1965
    %v1967 = vrot.slane %v1962, %v1966
    %v1968 = vadd.f32 %v1958, %v1967
    %v1969 = vmul.f32 %v1968, 0.5
    %v1970 = vtanh.pop %v1969
    %v1971 = vmul.f32 %v1970, 0.5
    %v1972 = vadd.f32 %v1971, 0.5
    %vm1973 = vcmask 516096
    %1974 = vst.msk [vmem:[#allocation22] sm:$0x1] %vm1973, %v1972
    %1976 = vrot.lane.b32.xlu0 %v1972, 64
    %v1977 = vpop.permute.xlu0 %1976
    %s1979 = scalar_lea.vmem [#allocation22], 1
    %1980 = vst.msk [vmem:[%s1979] sm:$0x1] %vm1973, %v1977
    %1981 = vrot.lane.b32.xlu0 %v1972, 127
    %v1982 = vpop.permute.xlu0 %1981
    %v1983 = vld [vmem:[#allocation5] sm:$0x1]
    %1985 = vset.pattern.permute.xlu0 0
    %1986 = vperm.xlu0 %1985, %v1983
    %v1987 = vpop.permute.xlu0 %1986
    %v1989 = vlaneseq
    %v1990 = vshrl.u32 %v1989, 7
    %v1991 = vsub.s32 0, %v1990
    %v1992 = vrot.slane %v1987, %v1991
    %v1993 = vmul.f32 %v1992, %v1972
    %v1994 = vld [vmem:[#allocation6] sm:$0x1]
    %1996 = vset.pattern.permute.xlu0 0
    %1997 = vperm.xlu0 %1996, %v1994
    %v1998 = vpop.permute.xlu0 %1997
    %v2000 = vlaneseq
    %v2001 = vshrl.u32 %v2000, 7
    %v2002 = vsub.s32 0, %v2001
    %v2003 = vrot.slane %v1998, %v2002
    %v2004 = vmul.f32 %v2003, %v1982
    %v2005 = vadd.f32 %v1993, %v2004
    %v2006 = vld [vmem:[#allocation7] sm:$0x1]
    %2008 = vset.pattern.permute.xlu0 0
    %2009 = vperm.xlu0 %2008, %v2006
    %v2010 = vpop.permute.xlu0 %2009
    %v2012 = vlaneseq
    %v2013 = vshrl.u32 %v2012, 7
    %v2014 = vsub.s32 0, %v2013
    %v2015 = vrot.slane %v2010, %v2014
    %v2016 = vadd.f32 %v2005, %v2015
    %v2017 = vmul.f32 %v2016, %v254
    %v2018 = vsel %vm1929, %v2017, 0.0
    %2019 = vadd.xlane.f32.xlu0 %v2018
    %v2020 = vpop.xlane.xlu0 %2019
    %v2021 = vmul.f32 %v2017, %v2016
    %v2022 = vsel %vm1929, %v2021, 0.0
    %2023 = vadd.xlane.f32.xlu0 %v2022
    %v2024 = vpop.xlane.xlu0 %2023
    %v2025 = vmul.f32 %v2020, 0.015625
    %v2026 = vmul.f32 %v2024, 0.015625
    %v2027 = vmul.f32 %v2025, %v2025
    %v2028 = vsub.f32 %v2026, %v2027
    %v2029 = vmax.f32 %v2028, 0.0
    %v2030 = vld [vmem:[#allocation8] sm:$0x1]
    %v2031 = vadd.f32 %v2029, 1e-05
    %v2032 = vrsqrt.pop %v2031
    %v2033 = vmul.f32 %v2030, %v2032
    %v2034 = vld [vmem:[#allocation9] sm:$0x1]
    %v2035 = vmul.f32 %v2025, %v2033
    %v2036 = vsub.f32 %v2034, %v2035
    %2038 = vset.pattern.permute.xlu0 0
    %2039 = vperm.xlu0 %2038, %v2033
    %v2040 = vpop.permute.xlu0 %2039
    %v2042 = vlaneseq
    %v2043 = vshrl.u32 %v2042, 7
    %v2044 = vsub.s32 0, %v2043
    %v2045 = vrot.slane %v2040, %v2044
    %v2046 = vmul.f32 %v2016, %v2045
    %2048 = vset.pattern.permute.xlu0 0
    %2049 = vperm.xlu0 %2048, %v2036
    %v2050 = vpop.permute.xlu0 %2049
    %v2052 = vlaneseq
    %v2053 = vshrl.u32 %v2052, 7
    %v2054 = vsub.s32 0, %v2053
    %v2055 = vrot.slane %v2050, %v2054
    %v2056 = vadd.f32 %v2046, %v2055
    %v2057 = vmul.f32 %v2056, 0.5
    %v2058 = vtanh.pop %v2057
    %v2059 = vmul.f32 %v2058, 0.5
    %v2060 = vadd.f32 %v2059, 0.5
    %2061 = vst.msk [vmem:[#allocation23] sm:$0x1] %vm1973, %v2060
    %2063 = vrot.lane.b32.xlu0 %v2060, 64
    %v2064 = vpop.permute.xlu0 %2063
    %s2066 = scalar_lea.vmem [#allocation23], 1
    %2067 = vst.msk [vmem:[%s2066] sm:$0x1] %vm1973, %v2064
    %v2068 = vrot.slane %v2060, 7
    %2069 = vrot.lane.b32.xlu0 %v2068, 64
    %v2070 = vpop.permute.xlu0 %2069
    %v2072 = vsel %vm1929, %v2060, %v2070
    %v2073 = vld [vmem:[%s93] sm:$0xff]
    %v2074 = vld [vmem:[%s93 + $0x8] sm:$0xff]
    %v2075 = vld [vmem:[%s93 + $0x10] sm:$0xff]
    %v2076 = vld [vmem:[%s93 + $0x18] sm:$0xff]
    %v2077 = vld [vmem:[%s93 + $0x20] sm:$0xff]
    %v2078 = vld [vmem:[%s93 + $0x28] sm:$0xff]
    %v2079 = vld [vmem:[%s93 + $0x30] sm:$0xff]
    %v2080 = vld [vmem:[%s93 + $0x38] sm:$0xff]
    %v2081 = vld [vmem:[%s95] sm:$0x1]
    %v2083 = vlaneseq
    %v2084 = vshrl.u32 %v2083, 7
    %v2085 = vsub.s32 0, %v2084
    %v2086 = vrot.slane %v2081, %v2085
    %v2089 = vsel %vm749, %v2072, 0
    %2091 = vmatprep.subr.mxu0 0.0
    %2092 = vmatpush1.msra.mxu0 %v2073
    %2093 = vmatprep.subr.mxu0 0.0
    %2094 = vmatpush1.msra.mxu0 %v2074
    %2095 = vmatprep.subr.mxu0 0.0
    %2096 = vmatpush1.msra.mxu0 %v2075
    %2097 = vmatprep.subr.mxu0 0.0
    %2098 = vmatpush1.msra.mxu0 %v2076
    %2099 = vmatprep.subr.mxu0 0.0
    %2100 = vmatpush1.msra.mxu0 %v2077
    %2101 = vmatprep.subr.mxu0 0.0
    %2102 = vmatpush1.msra.mxu0 %v2078
    %2103 = vmatprep.subr.mxu0 0.0
    %2104 = vmatpush1.msra.mxu0 %v2079
    %2105 = vmatprep.subr.mxu0 0.0
    %2106 = vmatpush1.msra.mxu0 %v2080
    %2107 = vmatprep.subr.mxu0 0.0
    %2108 = vmatpush1.msra.mxu0 0.0
    %2109 = vmatprep.subr.mxu0 0.0
    %2110 = vmatpush1.msra.mxu0 0.0
    %2111 = vmatprep.subr.mxu0 0.0
    %2112 = vmatpush1.msra.mxu0 0.0
    %2113 = vmatprep.subr.mxu0 0.0
    %2114 = vmatpush1.msra.mxu0 0.0
    %2115 = vmatprep.subr.mxu0 0.0
    %2116 = vmatpush1.msra.mxu0 0.0
    %2117 = vmatprep.subr.mxu0 0.0
    %2118 = vmatpush1.msra.mxu0 0.0
    %2119 = vmatprep.subr.mxu0 0.0
    %2120 = vmatpush1.msra.mxu0 0.0
    %2121 = vmatprep.subr.mxu0 0.0
    %2122 = vmatpush1.msra.mxu0 0.0
    %2123 = vmatprep.subr.mxu0 0.0
    %2124 = vmatpush1.msra.mxu0 0.0
    %2125 = vmatprep.subr.mxu0 0.0
    %2126 = vmatpush1.msra.mxu0 0.0
    %2127 = vmatprep.subr.mxu0 0.0
    %2128 = vmatpush1.msra.mxu0 0.0
    %2129 = vmatprep.subr.mxu0 0.0
    %2130 = vmatpush1.msra.mxu0 0.0
    %2131 = vmatprep.subr.mxu0 0.0
    %2132 = vmatpush1.msra.mxu0 0.0
    %2133 = vmatprep.subr.mxu0 0.0
    %2134 = vmatpush1.msra.mxu0 0.0
    %2135 = vmatprep.subr.mxu0 0.0
    %2136 = vmatpush1.msra.mxu0 0.0
    %2137 = vmatprep.subr.mxu0 0.0
    %2138 = vmatpush1.msra.mxu0 0.0
    %2139 = vmatprep.subr.mxu0 0.0
    %2140 = vmatpush1.msra.mxu0 0.0
    %2141 = vmatprep.subr.mxu0 0.0
    %2142 = vmatpush1.msra.mxu0 0.0
    %2143 = vmatprep.subr.mxu0 0.0
    %2144 = vmatpush1.msra.mxu0 0.0
    %2145 = vmatprep.subr.mxu0 0.0
    %2146 = vmatpush1.msra.mxu0 0.0
    %2147 = vmatprep.subr.mxu0 0.0
    %2148 = vmatpush1.msra.mxu0 0.0
    %2149 = vmatprep.subr.mxu0 0.0
    %2150 = vmatpush1.msra.mxu0 0.0
    %2151 = vmatprep.subr.mxu0 0.0
    %2152 = vmatpush1.msra.mxu0 0.0
    %2153 = vmatprep.subr.mxu0 0.0
    %2154 = vmatpush1.msra.mxu0 0.0
    %2155 = vmatprep.mubr.f32.mxu0 0.0
    %2156 = vmatmul.mubr.f32.gmra.mrb[0].mxu0 %v2089
    %v2157 = vpop.f32.mrb[0].mxu0
    %v2158 = vadd.f32 %v2086, %v2157
    %v2159 = vpop.f32.mrb[0].mxu0
    %2160 = vdwg.mxu0
    %vm2161 = vcmask 25600
    %v2162 = vsel %vm2161, %v2158, -inf
    %2163 = vmax.xlane.f32.xlu0 %v2162
    %v2164 = vpop.xlane.xlu0 %2163
    %v2165 = vsub.f32 %v2158, %v2164
    %v2166 = vmul.f32 %v2165, 1.442695
    %v2167 = vpow.pop %v2166
    %v2168 = vsel %vm2161, %v2167, 0.0
    %2169 = vadd.xlane.f32.xlu0 %v2168
    %v2170 = vpop.xlane.xlu0 %2169
    %v2171 = vrcp.pop %v2170
    %v2172 = vmul.f32 %v2167, %v2171
    %2173 = vst.msk [vmem:[#allocation31] sm:$0x3] %vm2161, %v2172
    %2174 = vrot.lane.b32.xlu0 %v2060, 1
    %v2175 = vpop.permute.xlu0 %2174
    %v2176 = vld [vmem:[#allocation10] sm:$0x1]
    %2178 = vset.pattern.permute.xlu0 0
    %2179 = vperm.xlu0 %2178, %v2176
    %v2180 = vpop.permute.xlu0 %2179
    %v2182 = vlaneseq
    %v2183 = vshrl.u32 %v2182, 7
    %v2184 = vsub.s32 0, %v2183
    %v2185 = vrot.slane %v2180, %v2184
    %v2186 = vmul.f32 %v2185, %v2060
    %v2187 = vmul.f32 %v254, %v2186
    %v2188 = vld [vmem:[#allocation11] sm:$0x1]
    %2190 = vset.pattern.permute.xlu0 0
    %2191 = vperm.xlu0 %2190, %v2188
    %v2192 = vpop.permute.xlu0 %2191
    %v2194 = vlaneseq
    %v2195 = vshrl.u32 %v2194, 7
    %v2196 = vsub.s32 0, %v2195
    %v2197 = vrot.slane %v2192, %v2196
    %v2198 = vmul.f32 %v2197, %v2175
    %v2199 = vmul.f32 %v255, %v2198
    %v2200 = vadd.f32 %v2187, %v2199
    %v2201 = vld [vmem:[#allocation12] sm:$0x1]
    %2203 = vset.pattern.permute.xlu0 0
    %2204 = vperm.xlu0 %2203, %v2201
    %v2205 = vpop.permute.xlu0 %2204
    %v2207 = vlaneseq
    %v2208 = vshrl.u32 %v2207, 7
    %v2209 = vsub.s32 0, %v2208
    %v2210 = vrot.slane %v2205, %v2209
    %v2211 = vadd.f32 %v2200, %v2210
    %v2212 = vsel %vm1929, %v2211, 0.0
    %2213 = vadd.xlane.f32.xlu0 %v2212
    %v2214 = vpop.xlane.xlu0 %2213
    %v2215 = vmul.f32 %v2211, %v2211
    %v2216 = vsel %vm1929, %v2215, 0.0
    %2217 = vadd.xlane.f32.xlu0 %v2216
    %v2218 = vpop.xlane.xlu0 %2217
    %v2219 = vmul.f32 %v2214, 0.0078125
    %v2220 = vmul.f32 %v2218, 0.0078125
    %v2221 = vmul.f32 %v2219, %v2219
    %v2222 = vsub.f32 %v2220, %v2221
    %v2223 = vmax.f32 %v2222, 0.0
    %v2224 = vld [vmem:[#allocation13] sm:$0x1]
    %v2225 = vadd.f32 %v2223, 1e-05
    %v2226 = vrsqrt.pop %v2225
    %v2227 = vmul.f32 %v2224, %v2226
    %v2228 = vld [vmem:[#allocation14] sm:$0x1]
    %v2229 = vmul.f32 %v2219, %v2227
    %v2230 = vsub.f32 %v2228, %v2229
    %2232 = vset.pattern.permute.xlu0 0
    %2233 = vperm.xlu0 %2232, %v2227
    %v2234 = vpop.permute.xlu0 %2233
    %v2236 = vlaneseq
    %v2237 = vshrl.u32 %v2236, 7
    %v2238 = vsub.s32 0, %v2237
    %v2239 = vrot.slane %v2234, %v2238
    %v2240 = vmul.f32 %v2211, %v2239
    %2242 = vset.pattern.permute.xlu0 0
    %2243 = vperm.xlu0 %2242, %v2230
    %v2244 = vpop.permute.xlu0 %2243
    %v2246 = vlaneseq
    %v2247 = vshrl.u32 %v2246, 7
    %v2248 = vsub.s32 0, %v2247
    %v2249 = vrot.slane %v2244, %v2248
    %v2250 = vadd.f32 %v2240, %v2249
    %v2251 = vmul.f32 %v2250, 0.5
    %v2252 = vtanh.pop %v2251
    %v2253 = vmul.f32 %v2252, 0.5
    %v2254 = vadd.f32 %v2253, 0.5
    %2255 = vst.msk [vmem:[#allocation25] sm:$0x1] %vm1973, %v2254
    %v2257 = vlaneseq
    %v2258 = vshrl.u32 %v2257, 7
    %v2259 = vsub.s32 0, %v2258
    %v2260 = vrot.slane %v2254, %v2259
    %2261 = vrot.lane.b32.xlu0 %v2260, 64
    %v2262 = vpop.permute.xlu0 %2261
    %s2264 = scalar_lea.vmem [#allocation25], 1
    %2265 = vst.msk [vmem:[%s2264] sm:$0x1] %vm1973, %v2262
    %2266 = vrot.lane.b32.xlu0 %v2254, 1
    %v2267 = vpop.permute.xlu0 %2266
    %v2268 = vmul.f32 %v2267, %v252
    %2269 = vrot.lane.b32.xlu0 %v2254, 127
    %v2270 = vpop.permute.xlu0 %2269
    %v2271 = vmul.f32 %v2270, %v253
    %v2272 = vld [vmem:[%s61] sm:$0xff]
    %v2273 = vld [vmem:[%s61 + $0x8] sm:$0xff]
    %v2274 = vld [vmem:[%s61 + $0x10] sm:$0xff]
    %v2275 = vld [vmem:[%s61 + $0x18] sm:$0xff]
    %v2276 = vld [vmem:[%s61 + $0x20] sm:$0xff]
    %v2277 = vld [vmem:[%s61 + $0x28] sm:$0xff]
    %v2278 = vld [vmem:[%s61 + $0x30] sm:$0xff]
    %v2279 = vld [vmem:[%s61 + $0x38] sm:$0xff]
    %2281 = vset.pattern.permute.xlu0 0
    %2282 = vperm.xlu0 %2281, %v2272
    %v2283 = vpop.permute.xlu0 %2282
    %2286 = vset.pattern.permute.xlu0 0
    %2287 = vperm.xlu0 %2286, %v2273
    %v2288 = vpop.permute.xlu0 %2287
    %2291 = vset.pattern.permute.xlu0 0
    %2292 = vperm.xlu0 %2291, %v2274
    %v2293 = vpop.permute.xlu0 %2292
    %2296 = vset.pattern.permute.xlu0 0
    %2297 = vperm.xlu0 %2296, %v2275
    %v2298 = vpop.permute.xlu0 %2297
    %2301 = vset.pattern.permute.xlu0 0
    %2302 = vperm.xlu0 %2301, %v2276
    %v2303 = vpop.permute.xlu0 %2302
    %2306 = vset.pattern.permute.xlu0 0
    %2307 = vperm.xlu0 %2306, %v2277
    %v2308 = vpop.permute.xlu0 %2307
    %2311 = vset.pattern.permute.xlu0 0
    %2312 = vperm.xlu0 %2311, %v2278
    %v2313 = vpop.permute.xlu0 %2312
    %2316 = vset.pattern.permute.xlu0 0
    %2317 = vperm.xlu0 %2316, %v2279
    %v2318 = vpop.permute.xlu0 %2317
    %v2320 = vlaneseq
    %v2321 = vshrl.u32 %v2320, 7
    %v2322 = vsub.s32 0, %v2321
    %v2323 = vrot.slane %v2268, %v2322
    %v2324 = vmul.f32 %v2283, %v2323
    %v2325 = vmul.f32 %v2288, %v2323
    %v2326 = vmul.f32 %v2293, %v2323
    %v2327 = vmul.f32 %v2298, %v2323
    %v2328 = vmul.f32 %v2303, %v2323
    %v2329 = vmul.f32 %v2308, %v2323
    %v2330 = vmul.f32 %v2313, %v2323
    %v2331 = vmul.f32 %v2318, %v2323
    %2332 = vset.pattern.permute.xlu0 1
    %2333 = vperm.xlu0 %2332, %v2272
    %v2334 = vpop.permute.xlu0 %2333
    %2336 = vset.pattern.permute.xlu0 1
    %2337 = vperm.xlu0 %2336, %v2273
    %v2338 = vpop.permute.xlu0 %2337
    %2340 = vset.pattern.permute.xlu0 1
    %2341 = vperm.xlu0 %2340, %v2274
    %v2342 = vpop.permute.xlu0 %2341
    %2344 = vset.pattern.permute.xlu0 1
    %2345 = vperm.xlu0 %2344, %v2275
    %v2346 = vpop.permute.xlu0 %2345
    %2348 = vset.pattern.permute.xlu0 1
    %2349 = vperm.xlu0 %2348, %v2276
    %v2350 = vpop.permute.xlu0 %2349
    %2352 = vset.pattern.permute.xlu0 1
    %2353 = vperm.xlu0 %2352, %v2277
    %v2354 = vpop.permute.xlu0 %2353
    %2356 = vset.pattern.permute.xlu0 1
    %2357 = vperm.xlu0 %2356, %v2278
    %v2358 = vpop.permute.xlu0 %2357
    %2360 = vset.pattern.permute.xlu0 1
    %2361 = vperm.xlu0 %2360, %v2279
    %v2362 = vpop.permute.xlu0 %2361
    %v2365 = vmul.f32 %v2334, %v2260
    %v2366 = vmul.f32 %v2338, %v2260
    %v2367 = vmul.f32 %v2342, %v2260
    %v2368 = vmul.f32 %v2346, %v2260
    %v2369 = vmul.f32 %v2350, %v2260
    %v2370 = vmul.f32 %v2354, %v2260
    %v2371 = vmul.f32 %v2358, %v2260
    %v2372 = vmul.f32 %v2362, %v2260
    %v2373 = vadd.f32 %v2324, %v2365
    %v2374 = vadd.f32 %v2325, %v2366
    %v2375 = vadd.f32 %v2326, %v2367
    %v2376 = vadd.f32 %v2327, %v2368
    %v2377 = vadd.f32 %v2328, %v2369
    %v2378 = vadd.f32 %v2329, %v2370
    %v2379 = vadd.f32 %v2330, %v2371
    %v2380 = vadd.f32 %v2331, %v2372
    %2381 = vset.pattern.permute.xlu0 2
    %2382 = vperm.xlu0 %2381, %v2272
    %v2383 = vpop.permute.xlu0 %2382
    %2385 = vset.pattern.permute.xlu0 2
    %2386 = vperm.xlu0 %2385, %v2273
    %v2387 = vpop.permute.xlu0 %2386
    %2389 = vset.pattern.permute.xlu0 2
    %2390 = vperm.xlu0 %2389, %v2274
    %v2391 = vpop.permute.xlu0 %2390
    %2393 = vset.pattern.permute.xlu0 2
    %2394 = vperm.xlu0 %2393, %v2275
    %v2395 = vpop.permute.xlu0 %2394
    %2397 = vset.pattern.permute.xlu0 2
    %2398 = vperm.xlu0 %2397, %v2276
    %v2399 = vpop.permute.xlu0 %2398
    %2401 = vset.pattern.permute.xlu0 2
    %2402 = vperm.xlu0 %2401, %v2277
    %v2403 = vpop.permute.xlu0 %2402
    %2405 = vset.pattern.permute.xlu0 2
    %2406 = vperm.xlu0 %2405, %v2278
    %v2407 = vpop.permute.xlu0 %2406
    %2409 = vset.pattern.permute.xlu0 2
    %2410 = vperm.xlu0 %2409, %v2279
    %v2411 = vpop.permute.xlu0 %2410
    %v2413 = vlaneseq
    %v2414 = vshrl.u32 %v2413, 7
    %v2415 = vsub.s32 0, %v2414
    %v2416 = vrot.slane %v2271, %v2415
    %v2417 = vmul.f32 %v2383, %v2416
    %v2418 = vmul.f32 %v2387, %v2416
    %v2419 = vmul.f32 %v2391, %v2416
    %v2420 = vmul.f32 %v2395, %v2416
    %v2421 = vmul.f32 %v2399, %v2416
    %v2422 = vmul.f32 %v2403, %v2416
    %v2423 = vmul.f32 %v2407, %v2416
    %v2424 = vmul.f32 %v2411, %v2416
    %v2425 = vadd.f32 %v2373, %v2417
    %v2426 = vadd.f32 %v2374, %v2418
    %v2427 = vadd.f32 %v2375, %v2419
    %v2428 = vadd.f32 %v2376, %v2420
    %v2429 = vadd.f32 %v2377, %v2421
    %v2430 = vadd.f32 %v2378, %v2422
    %v2431 = vadd.f32 %v2379, %v2423
    %v2432 = vadd.f32 %v2380, %v2424
    %v2433 = vld [vmem:[%s63] sm:$0xff]
    %v2434 = vld [vmem:[%s63 + $0x8] sm:$0xff]
    %v2435 = vld [vmem:[%s63 + $0x10] sm:$0xff]
    %v2436 = vld [vmem:[%s63 + $0x18] sm:$0xff]
    %v2437 = vld [vmem:[%s63 + $0x20] sm:$0xff]
    %v2438 = vld [vmem:[%s63 + $0x28] sm:$0xff]
    %v2439 = vld [vmem:[%s63 + $0x30] sm:$0xff]
    %v2440 = vld [vmem:[%s63 + $0x38] sm:$0xff]
    %2442 = vset.pattern.permute.xlu0 0
    %2443 = vperm.xlu0 %2442, %v2433
    %v2444 = vpop.permute.xlu0 %2443
    %2447 = vset.pattern.permute.xlu0 0
    %2448 = vperm.xlu0 %2447, %v2434
    %v2449 = vpop.permute.xlu0 %2448
    %2452 = vset.pattern.permute.xlu0 0
    %2453 = vperm.xlu0 %2452, %v2435
    %v2454 = vpop.permute.xlu0 %2453
    %2457 = vset.pattern.permute.xlu0 0
    %2458 = vperm.xlu0 %2457, %v2436
    %v2459 = vpop.permute.xlu0 %2458
    %2462 = vset.pattern.permute.xlu0 0
    %2463 = vperm.xlu0 %2462, %v2437
    %v2464 = vpop.permute.xlu0 %2463
    %2467 = vset.pattern.permute.xlu0 0
    %2468 = vperm.xlu0 %2467, %v2438
    %v2469 = vpop.permute.xlu0 %2468
    %2472 = vset.pattern.permute.xlu0 0
    %2473 = vperm.xlu0 %2472, %v2439
    %v2474 = vpop.permute.xlu0 %2473
    %2477 = vset.pattern.permute.xlu0 0
    %2478 = vperm.xlu0 %2477, %v2440
    %v2479 = vpop.permute.xlu0 %2478
    %v2481 = vadd.f32 %v2425, %v2444
    %v2482 = vadd.f32 %v2426, %v2449
    %v2483 = vadd.f32 %v2427, %v2454
    %v2484 = vadd.f32 %v2428, %v2459
    %v2485 = vadd.f32 %v2429, %v2464
    %v2486 = vadd.f32 %v2430, %v2469
    %v2487 = vadd.f32 %v2431, %v2474
    %v2488 = vadd.f32 %v2432, %v2479
    %2489 = vadd.xlane.f32.xlu0 %v2481
    %v2490 = vpop.xlane.xlu0 %2489
    %2491 = vadd.xlane.f32.xlu0 %v2482
    %v2492 = vpop.xlane.xlu0 %2491
    %2493 = vadd.xlane.f32.xlu0 %v2483
    %v2494 = vpop.xlane.xlu0 %2493
    %2495 = vadd.xlane.f32.xlu0 %v2484
    %v2496 = vpop.xlane.xlu0 %2495
    %2497 = vadd.xlane.f32.xlu0 %v2485
    %v2498 = vpop.xlane.xlu0 %2497
    %2499 = vadd.xlane.f32.xlu0 %v2486
    %v2500 = vpop.xlane.xlu0 %2499
    %2501 = vadd.xlane.f32.xlu0 %v2487
    %v2502 = vpop.xlane.xlu0 %2501
    %2503 = vadd.xlane.f32.xlu0 %v2488
    %v2504 = vpop.xlane.xlu0 %2503
    %v2505 = vmul.f32 %v2481, %v2481
    %v2506 = vmul.f32 %v2482, %v2482
    %v2507 = vmul.f32 %v2483, %v2483
    %v2508 = vmul.f32 %v2484, %v2484
    %v2509 = vmul.f32 %v2485, %v2485
    %v2510 = vmul.f32 %v2486, %v2486
    %v2511 = vmul.f32 %v2487, %v2487
    %v2512 = vmul.f32 %v2488, %v2488
    %2513 = vadd.xlane.f32.xlu0 %v2505
    %v2514 = vpop.xlane.xlu0 %2513
    %2515 = vadd.xlane.f32.xlu0 %v2506
    %v2516 = vpop.xlane.xlu0 %2515
    %2517 = vadd.xlane.f32.xlu0 %v2507
    %v2518 = vpop.xlane.xlu0 %2517
    %2519 = vadd.xlane.f32.xlu0 %v2508
    %v2520 = vpop.xlane.xlu0 %2519
    %2521 = vadd.xlane.f32.xlu0 %v2509
    %v2522 = vpop.xlane.xlu0 %2521
    %2523 = vadd.xlane.f32.xlu0 %v2510
    %v2524 = vpop.xlane.xlu0 %2523
    %2525 = vadd.xlane.f32.xlu0 %v2511
    %v2526 = vpop.xlane.xlu0 %2525
    %2527 = vadd.xlane.f32.xlu0 %v2512
    %v2528 = vpop.xlane.xlu0 %2527
    %v2529 = vmul.f32 %v2490, 0.0078125
    %v2530 = vmul.f32 %v2492, 0.0078125
    %v2531 = vmul.f32 %v2494, 0.0078125
    %v2532 = vmul.f32 %v2496, 0.0078125
    %v2533 = vmul.f32 %v2498, 0.0078125
    %v2534 = vmul.f32 %v2500, 0.0078125
    %v2535 = vmul.f32 %v2502, 0.0078125
    %v2536 = vmul.f32 %v2504, 0.0078125
    %v2537 = vmul.f32 %v2514, 0.0078125
    %v2538 = vmul.f32 %v2516, 0.0078125
    %v2539 = vmul.f32 %v2518, 0.0078125
    %v2540 = vmul.f32 %v2520, 0.0078125
    %v2541 = vmul.f32 %v2522, 0.0078125
    %v2542 = vmul.f32 %v2524, 0.0078125
    %v2543 = vmul.f32 %v2526, 0.0078125
    %v2544 = vmul.f32 %v2528, 0.0078125
    %v2545 = vmul.f32 %v2529, %v2529
    %v2546 = vmul.f32 %v2530, %v2530
    %v2547 = vmul.f32 %v2531, %v2531
    %v2548 = vmul.f32 %v2532, %v2532
    %v2549 = vmul.f32 %v2533, %v2533
    %v2550 = vmul.f32 %v2534, %v2534
    %v2551 = vmul.f32 %v2535, %v2535
    %v2552 = vmul.f32 %v2536, %v2536
    %v2553 = vsub.f32 %v2537, %v2545
    %v2554 = vsub.f32 %v2538, %v2546
    %v2555 = vsub.f32 %v2539, %v2547
    %v2556 = vsub.f32 %v2540, %v2548
    %v2557 = vsub.f32 %v2541, %v2549
    %v2558 = vsub.f32 %v2542, %v2550
    %v2559 = vsub.f32 %v2543, %v2551
    %v2560 = vsub.f32 %v2544, %v2552
    %v2561 = vmax.f32 %v2553, 0.0
    %v2562 = vmax.f32 %v2554, 0.0
    %v2563 = vmax.f32 %v2555, 0.0
    %v2564 = vmax.f32 %v2556, 0.0
    %v2565 = vmax.f32 %v2557, 0.0
    %v2566 = vmax.f32 %v2558, 0.0
    %v2567 = vmax.f32 %v2559, 0.0
    %v2568 = vmax.f32 %v2560, 0.0
    %v2569 = vld [vmem:[%s65] sm:$0xff]
    %v2570 = vld [vmem:[%s65 + $0x8] sm:$0xff]
    %v2571 = vld [vmem:[%s65 + $0x10] sm:$0xff]
    %v2572 = vld [vmem:[%s65 + $0x18] sm:$0xff]
    %v2573 = vld [vmem:[%s65 + $0x20] sm:$0xff]
    %v2574 = vld [vmem:[%s65 + $0x28] sm:$0xff]
    %v2575 = vld [vmem:[%s65 + $0x30] sm:$0xff]
    %v2576 = vld [vmem:[%s65 + $0x38] sm:$0xff]
    %v2577 = vadd.f32 %v2561, 1e-05
    %v2578 = vadd.f32 %v2562, 1e-05
    %v2579 = vadd.f32 %v2563, 1e-05
    %v2580 = vadd.f32 %v2564, 1e-05
    %v2581 = vadd.f32 %v2565, 1e-05
    %v2582 = vadd.f32 %v2566, 1e-05
    %v2583 = vadd.f32 %v2567, 1e-05
    %v2584 = vadd.f32 %v2568, 1e-05
    %v2585 = vrsqrt.pop %v2577
    %v2586 = vrsqrt.pop %v2578
    %v2587 = vrsqrt.pop %v2579
    %v2588 = vrsqrt.pop %v2580
    %v2589 = vrsqrt.pop %v2581
    %v2590 = vrsqrt.pop %v2582
    %v2591 = vrsqrt.pop %v2583
    %v2592 = vrsqrt.pop %v2584
    %v2593 = vmul.f32 %v2569, %v2585
    %v2594 = vmul.f32 %v2570, %v2586
    %v2595 = vmul.f32 %v2571, %v2587
    %v2596 = vmul.f32 %v2572, %v2588
    %v2597 = vmul.f32 %v2573, %v2589
    %v2598 = vmul.f32 %v2574, %v2590
    %v2599 = vmul.f32 %v2575, %v2591
    %v2600 = vmul.f32 %v2576, %v2592
    %v2601 = vld [vmem:[%s67] sm:$0xff]
    %v2602 = vld [vmem:[%s67 + $0x8] sm:$0xff]
    %v2603 = vld [vmem:[%s67 + $0x10] sm:$0xff]
    %v2604 = vld [vmem:[%s67 + $0x18] sm:$0xff]
    %v2605 = vld [vmem:[%s67 + $0x20] sm:$0xff]
    %v2606 = vld [vmem:[%s67 + $0x28] sm:$0xff]
    %v2607 = vld [vmem:[%s67 + $0x30] sm:$0xff]
    %v2608 = vld [vmem:[%s67 + $0x38] sm:$0xff]
    %v2609 = vmul.f32 %v2529, %v2593
    %v2610 = vmul.f32 %v2530, %v2594
    %v2611 = vmul.f32 %v2531, %v2595
    %v2612 = vmul.f32 %v2532, %v2596
    %v2613 = vmul.f32 %v2533, %v2597
    %v2614 = vmul.f32 %v2534, %v2598
    %v2615 = vmul.f32 %v2535, %v2599
    %v2616 = vmul.f32 %v2536, %v2600
    %v2617 = vsub.f32 %v2601, %v2609
    %v2618 = vsub.f32 %v2602, %v2610
    %v2619 = vsub.f32 %v2603, %v2611
    %v2620 = vsub.f32 %v2604, %v2612
    %v2621 = vsub.f32 %v2605, %v2613
    %v2622 = vsub.f32 %v2606, %v2614
    %v2623 = vsub.f32 %v2607, %v2615
    %v2624 = vsub.f32 %v2608, %v2616
    %2626 = vset.pattern.permute.xlu0 0
    %2627 = vperm.xlu0 %2626, %v2593
    %v2628 = vpop.permute.xlu0 %2627
    %2631 = vset.pattern.permute.xlu0 0
    %2632 = vperm.xlu0 %2631, %v2594
    %v2633 = vpop.permute.xlu0 %2632
    %2636 = vset.pattern.permute.xlu0 0
    %2637 = vperm.xlu0 %2636, %v2595
    %v2638 = vpop.permute.xlu0 %2637
    %2641 = vset.pattern.permute.xlu0 0
    %2642 = vperm.xlu0 %2641, %v2596
    %v2643 = vpop.permute.xlu0 %2642
    %2646 = vset.pattern.permute.xlu0 0
    %2647 = vperm.xlu0 %2646, %v2597
    %v2648 = vpop.permute.xlu0 %2647
    %2651 = vset.pattern.permute.xlu0 0
    %2652 = vperm.xlu0 %2651, %v2598
    %v2653 = vpop.permute.xlu0 %2652
    %2656 = vset.pattern.permute.xlu0 0
    %2657 = vperm.xlu0 %2656, %v2599
    %v2658 = vpop.permute.xlu0 %2657
    %2661 = vset.pattern.permute.xlu0 0
    %2662 = vperm.xlu0 %2661, %v2600
    %v2663 = vpop.permute.xlu0 %2662
    %v2665 = vmul.f32 %v2481, %v2628
    %v2666 = vmul.f32 %v2482, %v2633
    %v2667 = vmul.f32 %v2483, %v2638
    %v2668 = vmul.f32 %v2484, %v2643
    %v2669 = vmul.f32 %v2485, %v2648
    %v2670 = vmul.f32 %v2486, %v2653
    %v2671 = vmul.f32 %v2487, %v2658
    %v2672 = vmul.f32 %v2488, %v2663
    %2674 = vset.pattern.permute.xlu0 0
    %2675 = vperm.xlu0 %2674, %v2617
    %v2676 = vpop.permute.xlu0 %2675
    %2679 = vset.pattern.permute.xlu0 0
    %2680 = vperm.xlu0 %2679, %v2618
    %v2681 = vpop.permute.xlu0 %2680
    %2684 = vset.pattern.permute.xlu0 0
    %2685 = vperm.xlu0 %2684, %v2619
    %v2686 = vpop.permute.xlu0 %2685
    %2689 = vset.pattern.permute.xlu0 0
    %2690 = vperm.xlu0 %2689, %v2620
    %v2691 = vpop.permute.xlu0 %2690
    %2694 = vset.pattern.permute.xlu0 0
    %2695 = vperm.xlu0 %2694, %v2621
    %v2696 = vpop.permute.xlu0 %2695
    %2699 = vset.pattern.permute.xlu0 0
    %2700 = vperm.xlu0 %2699, %v2622
    %v2701 = vpop.permute.xlu0 %2700
    %2704 = vset.pattern.permute.xlu0 0
    %2705 = vperm.xlu0 %2704, %v2623
    %v2706 = vpop.permute.xlu0 %2705
    %2709 = vset.pattern.permute.xlu0 0
    %2710 = vperm.xlu0 %2709, %v2624
    %v2711 = vpop.permute.xlu0 %2710
    %v2713 = vadd.f32 %v2665, %v2676
    %v2714 = vadd.f32 %v2666, %v2681
    %v2715 = vadd.f32 %v2667, %v2686
    %v2716 = vadd.f32 %v2668, %v2691
    %v2717 = vadd.f32 %v2669, %v2696
    %v2718 = vadd.f32 %v2670, %v2701
    %v2719 = vadd.f32 %v2671, %v2706
    %v2720 = vadd.f32 %v2672, %v2711
    %v2721 = vmul.f32 %v2713, 0.5
    %v2722 = vmul.f32 %v2714, 0.5
    %v2723 = vmul.f32 %v2715, 0.5
    %v2724 = vmul.f32 %v2716, 0.5
    %v2725 = vmul.f32 %v2717, 0.5
    %v2726 = vmul.f32 %v2718, 0.5
    %v2727 = vmul.f32 %v2719, 0.5
    %v2728 = vmul.f32 %v2720, 0.5
    %v2729 = vtanh.pop %v2721
    %v2730 = vtanh.pop %v2722
    %v2731 = vtanh.pop %v2723
    %v2732 = vtanh.pop %v2724
    %v2733 = vtanh.pop %v2725
    %v2734 = vtanh.pop %v2726
    %v2735 = vtanh.pop %v2727
    %v2736 = vtanh.pop %v2728
    %v2737 = vmul.f32 %v2729, 0.5
    %v2738 = vmul.f32 %v2730, 0.5
    %v2739 = vmul.f32 %v2731, 0.5
    %v2740 = vmul.f32 %v2732, 0.5
    %v2741 = vmul.f32 %v2733, 0.5
    %v2742 = vmul.f32 %v2734, 0.5
    %v2743 = vmul.f32 %v2735, 0.5
    %v2744 = vmul.f32 %v2736, 0.5
    %v2745 = vadd.f32 %v2737, 0.5
    %v2746 = vadd.f32 %v2738, 0.5
    %v2747 = vadd.f32 %v2739, 0.5
    %v2748 = vadd.f32 %v2740, 0.5
    %v2749 = vadd.f32 %v2741, 0.5
    %v2750 = vadd.f32 %v2742, 0.5
    %v2751 = vadd.f32 %v2743, 0.5
    %v2752 = vadd.f32 %v2744, 0.5
    %2753 = vst.msk [vmem:[#allocation26] sm:$0xff] %vm749, %v2745
    %2754 = vst.msk [vmem:[#allocation26 + $0x8] sm:$0xff] %vm749, %v2746
    %2755 = vst.msk [vmem:[#allocation26 + $0x10] sm:$0xff] %vm749, %v2747
    %2756 = vst.msk [vmem:[#allocation26 + $0x18] sm:$0xff] %vm749, %v2748
    %2757 = vst.msk [vmem:[#allocation26 + $0x20] sm:$0xff] %vm749, %v2749
    %2758 = vst.msk [vmem:[#allocation26 + $0x28] sm:$0xff] %vm749, %v2750
    %2759 = vst.msk [vmem:[#allocation26 + $0x30] sm:$0xff] %vm749, %v2751
    %2760 = vst.msk [vmem:[#allocation26 + $0x38] sm:$0xff] %vm749, %v2752
    %2769 = vrot.lane.b32.xlu0 %v2745, 64
    %v2770 = vpop.permute.xlu0 %2769
    %2771 = vrot.lane.b32.xlu0 %v2746, 64
    %v2772 = vpop.permute.xlu0 %2771
    %2773 = vrot.lane.b32.xlu0 %v2747, 64
    %v2774 = vpop.permute.xlu0 %2773
    %2775 = vrot.lane.b32.xlu0 %v2748, 64
    %v2776 = vpop.permute.xlu0 %2775
    %2777 = vrot.lane.b32.xlu0 %v2749, 64
    %v2778 = vpop.permute.xlu0 %2777
    %2779 = vrot.lane.b32.xlu0 %v2750, 64
    %v2780 = vpop.permute.xlu0 %2779
    %2781 = vrot.lane.b32.xlu0 %v2751, 64
    %v2782 = vpop.permute.xlu0 %2781
    %2783 = vrot.lane.b32.xlu0 %v2752, 64
    %v2784 = vpop.permute.xlu0 %2783
    %s2793 = scalar_lea.vmem [#allocation26], 64
    %2794 = vst.msk [vmem:[%s2793] sm:$0xff] %vm749, %v2770
    %2795 = vst.msk [vmem:[%s2793 + $0x8] sm:$0xff] %vm749, %v2772
    %2796 = vst.msk [vmem:[%s2793 + $0x10] sm:$0xff] %vm749, %v2774
    %2797 = vst.msk [vmem:[%s2793 + $0x18] sm:$0xff] %vm749, %v2776
    %2798 = vst.msk [vmem:[%s2793 + $0x20] sm:$0xff] %vm749, %v2778
    %2799 = vst.msk [vmem:[%s2793 + $0x28] sm:$0xff] %vm749, %v2780
    %2800 = vst.msk [vmem:[%s2793 + $0x30] sm:$0xff] %vm749, %v2782
    %2801 = vst.msk [vmem:[%s2793 + $0x38] sm:$0xff] %vm749, %v2784
    %2802 = vrot.lane.b32.xlu0 %v2745, 1
    %v2803 = vpop.permute.xlu0 %2802
    %2804 = vrot.lane.b32.xlu0 %v2746, 1
    %v2805 = vpop.permute.xlu0 %2804
    %2806 = vrot.lane.b32.xlu0 %v2747, 1
    %v2807 = vpop.permute.xlu0 %2806
    %2808 = vrot.lane.b32.xlu0 %v2748, 1
    %v2809 = vpop.permute.xlu0 %2808
    %2810 = vrot.lane.b32.xlu0 %v2749, 1
    %v2811 = vpop.permute.xlu0 %2810
    %2812 = vrot.lane.b32.xlu0 %v2750, 1
    %v2813 = vpop.permute.xlu0 %2812
    %2814 = vrot.lane.b32.xlu0 %v2751, 1
    %v2815 = vpop.permute.xlu0 %2814
    %2816 = vrot.lane.b32.xlu0 %v2752, 1
    %v2817 = vpop.permute.xlu0 %2816
    %v2818 = vmul.f32 %v2803, %v819
    %v2819 = vmul.f32 %v2805, %v819
    %v2820 = vmul.f32 %v2807, %v819
    %v2821 = vmul.f32 %v2809, %v819
    %v2822 = vmul.f32 %v2811, %v819
    %v2823 = vmul.f32 %v2813, %v819
    %v2824 = vmul.f32 %v2815, %v819
    %v2825 = vmul.f32 %v2817, %v819
    %2826 = vrot.lane.b32.xlu0 %v2745, 127
    %v2827 = vpop.permute.xlu0 %2826
    %2828 = vrot.lane.b32.xlu0 %v2746, 127
    %v2829 = vpop.permute.xlu0 %2828
    %2830 = vrot.lane.b32.xlu0 %v2747, 127
    %v2831 = vpop.permute.xlu0 %2830
    %2832 = vrot.lane.b32.xlu0 %v2748, 127
    %v2833 = vpop.permute.xlu0 %2832
    %2834 = vrot.lane.b32.xlu0 %v2749, 127
    %v2835 = vpop.permute.xlu0 %2834
    %2836 = vrot.lane.b32.xlu0 %v2750, 127
    %v2837 = vpop.permute.xlu0 %2836
    %2838 = vrot.lane.b32.xlu0 %v2751, 127
    %v2839 = vpop.permute.xlu0 %2838
    %2840 = vrot.lane.b32.xlu0 %v2752, 127
    %v2841 = vpop.permute.xlu0 %2840
    %v2842 = vmul.f32 %v2827, %v849
    %v2843 = vmul.f32 %v2829, %v849
    %v2844 = vmul.f32 %v2831, %v849
    %v2845 = vmul.f32 %v2833, %v849
    %v2846 = vmul.f32 %v2835, %v849
    %v2847 = vmul.f32 %v2837, %v849
    %v2848 = vmul.f32 %v2839, %v849
    %v2849 = vmul.f32 %v2841, %v849
    %v2850 = vld [vmem:[%s71] sm:$0xff]
    %v2851 = vld [vmem:[%s71 + $0x8] sm:$0xff]
    %v2852 = vld [vmem:[%s71 + $0x10] sm:$0xff]
    %v2853 = vld [vmem:[%s71 + $0x18] sm:$0xff]
    %v2854 = vld [vmem:[%s71 + $0x20] sm:$0xff]
    %v2855 = vld [vmem:[%s71 + $0x28] sm:$0xff]
    %v2856 = vld [vmem:[%s71 + $0x30] sm:$0xff]
    %v2857 = vld [vmem:[%s71 + $0x38] sm:$0xff]
    %v2858 = vld [vmem:[%s69] sm:$0xff]
    %v2859 = vld [vmem:[%s69 + $0x8] sm:$0xff]
    %v2860 = vld [vmem:[%s69 + $0x10] sm:$0xff]
    %v2861 = vld [vmem:[%s69 + $0x18] sm:$0xff]
    %v2862 = vld [vmem:[%s69 + $0x20] sm:$0xff]
    %v2863 = vld [vmem:[%s69 + $0x28] sm:$0xff]
    %v2864 = vld [vmem:[%s69 + $0x30] sm:$0xff]
    %v2865 = vld [vmem:[%s69 + $0x38] sm:$0xff]
    %v2867 = vsel %vm749, %v2858, 0
    %v2870 = vsel %vm749, %v2859, 0
    %v2873 = vsel %vm749, %v2860, 0
    %v2876 = vsel %vm749, %v2861, 0
    %v2879 = vsel %vm749, %v2862, 0
    %v2882 = vsel %vm749, %v2863, 0
    %v2885 = vsel %vm749, %v2864, 0
    %v2888 = vsel %vm749, %v2865, 0
    %2890 = vmatprep.subr.mxu0 0.0
    %2891 = vmatpush1.msra.mxu0 %v2818
    %2892 = vmatprep.subr.mxu0 0.0
    %2893 = vmatpush1.msra.mxu0 %v2819
    %2894 = vmatprep.subr.mxu0 0.0
    %2895 = vmatpush1.msra.mxu0 %v2820
    %2896 = vmatprep.subr.mxu0 0.0
    %2897 = vmatpush1.msra.mxu0 %v2821
    %2898 = vmatprep.subr.mxu0 0.0
    %2899 = vmatpush1.msra.mxu0 %v2822
    %2900 = vmatprep.subr.mxu0 0.0
    %2901 = vmatpush1.msra.mxu0 %v2823
    %2902 = vmatprep.subr.mxu0 0.0
    %2903 = vmatpush1.msra.mxu0 %v2824
    %2904 = vmatprep.subr.mxu0 0.0
    %2905 = vmatpush1.msra.mxu0 %v2825
    %2906 = vmatprep.subr.mxu0 0.0
    %2907 = vmatpush1.msra.mxu0 0.0
    %2908 = vmatprep.subr.mxu0 0.0
    %2909 = vmatpush1.msra.mxu0 0.0
    %2910 = vmatprep.subr.mxu0 0.0
    %2911 = vmatpush1.msra.mxu0 0.0
    %2912 = vmatprep.subr.mxu0 0.0
    %2913 = vmatpush1.msra.mxu0 0.0
    %2914 = vmatprep.subr.mxu0 0.0
    %2915 = vmatpush1.msra.mxu0 0.0
    %2916 = vmatprep.subr.mxu0 0.0
    %2917 = vmatpush1.msra.mxu0 0.0
    %2918 = vmatprep.subr.mxu0 0.0
    %2919 = vmatpush1.msra.mxu0 0.0
    %2920 = vmatprep.subr.mxu0 0.0
    %2921 = vmatpush1.msra.mxu0 0.0
    %2922 = vmatprep.subr.mxu0 0.0
    %2923 = vmatpush1.msra.mxu0 0.0
    %2924 = vmatprep.subr.mxu0 0.0
    %2925 = vmatpush1.msra.mxu0 0.0
    %2926 = vmatprep.subr.mxu0 0.0
    %2927 = vmatpush1.msra.mxu0 0.0
    %2928 = vmatprep.subr.mxu0 0.0
    %2929 = vmatpush1.msra.mxu0 0.0
    %2930 = vmatprep.subr.mxu0 0.0
    %2931 = vmatpush1.msra.mxu0 0.0
    %2932 = vmatprep.subr.mxu0 0.0
    %2933 = vmatpush1.msra.mxu0 0.0
    %2934 = vmatprep.subr.mxu0 0.0
    %2935 = vmatpush1.msra.mxu0 0.0
    %2936 = vmatprep.subr.mxu0 0.0
    %2937 = vmatpush1.msra.mxu0 0.0
    %2938 = vmatprep.subr.mxu0 0.0
    %2939 = vmatpush1.msra.mxu0 0.0
    %2940 = vmatprep.subr.mxu0 0.0
    %2941 = vmatpush1.msra.mxu0 0.0
    %2942 = vmatprep.subr.mxu0 0.0
    %2943 = vmatpush1.msra.mxu0 0.0
    %2944 = vmatprep.subr.mxu0 0.0
    %2945 = vmatpush1.msra.mxu0 0.0
    %2946 = vmatprep.subr.mxu0 0.0
    %2947 = vmatpush1.msra.mxu0 0.0
    %2948 = vmatprep.subr.mxu0 0.0
    %2949 = vmatpush1.msra.mxu0 0.0
    %2950 = vmatprep.subr.mxu0 0.0
    %2951 = vmatpush1.msra.mxu0 0.0
    %2952 = vmatprep.subr.mxu0 0.0
    %2953 = vmatpush1.msra.mxu0 0.0
    %2954 = vmatprep.mubr.f32.mxu0 0.0
    %2955 = vmatmul.mubr.f32.gmra.mrb[0].mxu0 %v2867
    %v2956 = vpop.f32.mrb[0].mxu0
    %v2957 = vadd.f32 0.0, %v2956
    %v2958 = vpop.f32.mrb[0].mxu0
    %2959 = vmatprep.mubr.f32.mxu0 0.0
    %2960 = vmatmul.mubr.f32.gmra.mrb[0].mxu0 %v2870
    %v2961 = vpop.f32.mrb[0].mxu0
    %v2962 = vadd.f32 0.0, %v2961
    %v2963 = vpop.f32.mrb[0].mxu0
    %2964 = vmatprep.mubr.f32.mxu0 0.0
    %2965 = vmatmul.mubr.f32.gmra.mrb[0].mxu0 %v2873
    %v2966 = vpop.f32.mrb[0].mxu0
    %v2967 = vadd.f32 0.0, %v2966
    %v2968 = vpop.f32.mrb[0].mxu0
    %2969 = vmatprep.mubr.f32.mxu0 0.0
    %2970 = vmatmul.mubr.f32.gmra.mrb[0].mxu0 %v2876
    %v2971 = vpop.f32.mrb[0].mxu0
    %v2972 = vadd.f32 0.0, %v2971
    %v2973 = vpop.f32.mrb[0].mxu0
    %2974 = vmatprep.mubr.f32.mxu0 0.0
    %2975 = vmatmul.mubr.f32.gmra.mrb[0].mxu0 %v2879
    %v2976 = vpop.f32.mrb[0].mxu0
    %v2977 = vadd.f32 0.0, %v2976
    %v2978 = vpop.f32.mrb[0].mxu0
    %2979 = vmatprep.mubr.f32.mxu0 0.0
    %2980 = vmatmul.mubr.f32.gmra.mrb[0].mxu0 %v2882
    %v2981 = vpop.f32.mrb[0].mxu0
    %v2982 = vadd.f32 0.0, %v2981
    %v2983 = vpop.f32.mrb[0].mxu0
    %2984 = vmatprep.mubr.f32.mxu0 0.0
    %2985 = vmatmul.mubr.f32.gmra.mrb[0].mxu0 %v2885
    %v2986 = vpop.f32.mrb[0].mxu0
    %v2987 = vadd.f32 0.0, %v2986
    %v2988 = vpop.f32.mrb[0].mxu0
    %2989 = vmatprep.mubr.f32.mxu0 0.0
    %2990 = vmatmul.mubr.f32.gmra.mrb[0].mxu0 %v2888
    %v2991 = vpop.f32.mrb[0].mxu0
    %v2992 = vadd.f32 0.0, %v2991
    %v2993 = vpop.f32.mrb[0].mxu0
    %2994 = vdwg.mxu0
    %v2996 = vsel %vm749, %v2850, 0
    %v2999 = vsel %vm749, %v2851, 0
    %v3002 = vsel %vm749, %v2852, 0
    %v3005 = vsel %vm749, %v2853, 0
    %v3008 = vsel %vm749, %v2854, 0
    %v3011 = vsel %vm749, %v2855, 0
    %v3014 = vsel %vm749, %v2856, 0
    %v3017 = vsel %vm749, %v2857, 0
    %3019 = vmatprep.subr.mxu0 0.0
    %3020 = vmatpush1.msra.mxu0 %v2745
    %3021 = vmatprep.subr.mxu0 0.0
    %3022 = vmatpush1.msra.mxu0 %v2746
    %3023 = vmatprep.subr.mxu0 0.0
    %3024 = vmatpush1.msra.mxu0 %v2747
    %3025 = vmatprep.subr.mxu0 0.0
    %3026 = vmatpush1.msra.mxu0 %v2748
    %3027 = vmatprep.subr.mxu0 0.0
    %3028 = vmatpush1.msra.mxu0 %v2749
    %3029 = vmatprep.subr.mxu0 0.0
    %3030 = vmatpush1.msra.mxu0 %v2750
    %3031 = vmatprep.subr.mxu0 0.0
    %3032 = vmatpush1.msra.mxu0 %v2751
    %3033 = vmatprep.subr.mxu0 0.0
    %3034 = vmatpush1.msra.mxu0 %v2752
    %3035 = vmatprep.subr.mxu0 0.0
    %3036 = vmatpush1.msra.mxu0 0.0
    %3037 = vmatprep.subr.mxu0 0.0
    %3038 = vmatpush1.msra.mxu0 0.0
    %3039 = vmatprep.subr.mxu0 0.0
    %3040 = vmatpush1.msra.mxu0 0.0
    %3041 = vmatprep.subr.mxu0 0.0
    %3042 = vmatpush1.msra.mxu0 0.0
    %3043 = vmatprep.subr.mxu0 0.0
    %3044 = vmatpush1.msra.mxu0 0.0
    %3045 = vmatprep.subr.mxu0 0.0
    %3046 = vmatpush1.msra.mxu0 0.0
    %3047 = vmatprep.subr.mxu0 0.0
    %3048 = vmatpush1.msra.mxu0 0.0
    %3049 = vmatprep.subr.mxu0 0.0
    %3050 = vmatpush1.msra.mxu0 0.0
    %3051 = vmatprep.subr.mxu0 0.0
    %3052 = vmatpush1.msra.mxu0 0.0
    %3053 = vmatprep.subr.mxu0 0.0
    %3054 = vmatpush1.msra.mxu0 0.0
    %3055 = vmatprep.subr.mxu0 0.0
    %3056 = vmatpush1.msra.mxu0 0.0
    %3057 = vmatprep.subr.mxu0 0.0
    %3058 = vmatpush1.msra.mxu0 0.0
    %3059 = vmatprep.subr.mxu0 0.0
    %3060 = vmatpush1.msra.mxu0 0.0
    %3061 = vmatprep.subr.mxu0 0.0
    %3062 = vmatpush1.msra.mxu0 0.0
    %3063 = vmatprep.subr.mxu0 0.0
    %3064 = vmatpush1.msra.mxu0 0.0
    %3065 = vmatprep.subr.mxu0 0.0
    %3066 = vmatpush1.msra.mxu0 0.0
    %3067 = vmatprep.subr.mxu0 0.0
    %3068 = vmatpush1.msra.mxu0 0.0
    %3069 = vmatprep.subr.mxu0 0.0
    %3070 = vmatpush1.msra.mxu0 0.0
    %3071 = vmatprep.subr.mxu0 0.0
    %3072 = vmatpush1.msra.mxu0 0.0
    %3073 = vmatprep.subr.mxu0 0.0
    %3074 = vmatpush1.msra.mxu0 0.0
    %3075 = vmatprep.subr.mxu0 0.0
    %3076 = vmatpush1.msra.mxu0 0.0
    %3077 = vmatprep.subr.mxu0 0.0
    %3078 = vmatpush1.msra.mxu0 0.0
    %3079 = vmatprep.subr.mxu0 0.0
    %3080 = vmatpush1.msra.mxu0 0.0
    %3081 = vmatprep.subr.mxu0 0.0
    %3082 = vmatpush1.msra.mxu0 0.0
    %3083 = vmatprep.mubr.f32.mxu0 0.0
    %3084 = vmatmul.mubr.f32.gmra.mrb[0].mxu0 %v2996
    %v3085 = vpop.f32.mrb[0].mxu0
    %v3086 = vadd.f32 %v2957, %v3085
    %v3087 = vpop.f32.mrb[0].mxu0
    %3088 = vmatprep.mubr.f32.mxu0 0.0
    %3089 = vmatmul.mubr.f32.gmra.mrb[0].mxu0 %v2999
    %v3090 = vpop.f32.mrb[0].mxu0
    %v3091 = vadd.f32 %v2962, %v3090
    %v3092 = vpop.f32.mrb[0].mxu0
    %3093 = vmatprep.mubr.f32.mxu0 0.0
    %3094 = vmatmul.mubr.f32.gmra.mrb[0].mxu0 %v3002
    %v3095 = vpop.f32.mrb[0].mxu0
    %v3096 = vadd.f32 %v2967, %v3095
    %v3097 = vpop.f32.mrb[0].mxu0
    %3098 = vmatprep.mubr.f32.mxu0 0.0
    %3099 = vmatmul.mubr.f32.gmra.mrb[0].mxu0 %v3005
    %v3100 = vpop.f32.mrb[0].mxu0
    %v3101 = vadd.f32 %v2972, %v3100
    %v3102 = vpop.f32.mrb[0].mxu0
    %3103 = vmatprep.mubr.f32.mxu0 0.0
    %3104 = vmatmul.mubr.f32.gmra.mrb[0].mxu0 %v3008
    %v3105 = vpop.f32.mrb[0].mxu0
    %v3106 = vadd.f32 %v2977, %v3105
    %v3107 = vpop.f32.mrb[0].mxu0
    %3108 = vmatprep.mubr.f32.mxu0 0.0
    %3109 = vmatmul.mubr.f32.gmra.mrb[0].mxu0 %v3011
    %v3110 = vpop.f32.mrb[0].mxu0
    %v3111 = vadd.f32 %v2982, %v3110
    %v3112 = vpop.f32.mrb[0].mxu0
    %3113 = vmatprep.mubr.f32.mxu0 0.0
    %3114 = vmatmul.mubr.f32.gmra.mrb[0].mxu0 %v3014
    %v3115 = vpop.f32.mrb[0].mxu0
    %v3116 = vadd.f32 %v2987, %v3115
    %v3117 = vpop.f32.mrb[0].mxu0
    %3118 = vmatprep.mubr.f32.mxu0 0.0
    %3119 = vmatmul.mubr.f32.gmra.mrb[0].mxu0 %v3017
    %v3120 = vpop.f32.mrb[0].mxu0
    %v3121 = vadd.f32 %v2992, %v3120
    %v3122 = vpop.f32.mrb[0].mxu0
    %3123 = vdwg.mxu0
    %v3124 = vld [vmem:[%s73] sm:$0xff]
    %v3125 = vld [vmem:[%s73 + $0x8] sm:$0xff]
    %v3126 = vld [vmem:[%s73 + $0x10] sm:$0xff]
    %v3127 = vld [vmem:[%s73 + $0x18] sm:$0xff]
    %v3128 = vld [vmem:[%s73 + $0x20] sm:$0xff]
    %v3129 = vld [vmem:[%s73 + $0x28] sm:$0xff]
    %v3130 = vld [vmem:[%s73 + $0x30] sm:$0xff]
    %v3131 = vld [vmem:[%s73 + $0x38] sm:$0xff]
    %v3133 = vsel %vm749, %v3124, 0
    %v3136 = vsel %vm749, %v3125, 0
    %v3139 = vsel %vm749, %v3126, 0
    %v3142 = vsel %vm749, %v3127, 0
    %v3145 = vsel %vm749, %v3128, 0
    %v3148 = vsel %vm749, %v3129, 0
    %v3151 = vsel %vm749, %v3130, 0
    %v3154 = vsel %vm749, %v3131, 0
    %3156 = vmatprep.subr.mxu0 0.0
    %3157 = vmatpush1.msra.mxu0 %v2842
    %3158 = vmatprep.subr.mxu0 0.0
    %3159 = vmatpush1.msra.mxu0 %v2843
    %3160 = vmatprep.subr.mxu0 0.0
    %3161 = vmatpush1.msra.mxu0 %v2844
    %3162 = vmatprep.subr.mxu0 0.0
    %3163 = vmatpush1.msra.mxu0 %v2845
    %3164 = vmatprep.subr.mxu0 0.0
    %3165 = vmatpush1.msra.mxu0 %v2846
    %3166 = vmatprep.subr.mxu0 0.0
    %3167 = vmatpush1.msra.mxu0 %v2847
    %3168 = vmatprep.subr.mxu0 0.0
    %3169 = vmatpush1.msra.mxu0 %v2848
    %3170 = vmatprep.subr.mxu0 0.0
    %3171 = vmatpush1.msra.mxu0 %v2849
    %3172 = vmatprep.subr.mxu0 0.0
    %3173 = vmatpush1.msra.mxu0 0.0
    %3174 = vmatprep.subr.mxu0 0.0
    %3175 = vmatpush1.msra.mxu0 0.0
    %3176 = vmatprep.subr.mxu0 0.0
    %3177 = vmatpush1.msra.mxu0 0.0
    %3178 = vmatprep.subr.mxu0 0.0
    %3179 = vmatpush1.msra.mxu0 0.0
    %3180 = vmatprep.subr.mxu0 0.0
    %3181 = vmatpush1.msra.mxu0 0.0
    %3182 = vmatprep.subr.mxu0 0.0
    %3183 = vmatpush1.msra.mxu0 0.0
    %3184 = vmatprep.subr.mxu0 0.0
    %3185 = vmatpush1.msra.mxu0 0.0
    %3186 = vmatprep.subr.mxu0 0.0
    %3187 = vmatpush1.msra.mxu0 0.0
    %3188 = vmatprep.subr.mxu0 0.0
    %3189 = vmatpush1.msra.mxu0 0.0
    %3190 = vmatprep.subr.mxu0 0.0
    %3191 = vmatpush1.msra.mxu0 0.0
    %3192 = vmatprep.subr.mxu0 0.0
    %3193 = vmatpush1.msra.mxu0 0.0
    %3194 = vmatprep.subr.mxu0 0.0
    %3195 = vmatpush1.msra.mxu0 0.0
    %3196 = vmatprep.subr.mxu0 0.0
    %3197 = vmatpush1.msra.mxu0 0.0
    %3198 = vmatprep.subr.mxu0 0.0
    %3199 = vmatpush1.msra.mxu0 0.0
    %3200 = vmatprep.subr.mxu0 0.0
    %3201 = vmatpush1.msra.mxu0 0.0
    %3202 = vmatprep.subr.mxu0 0.0
    %3203 = vmatpush1.msra.mxu0 0.0
    %3204 = vmatprep.subr.mxu0 0.0
    %3205 = vmatpush1.msra.mxu0 0.0
    %3206 = vmatprep.subr.mxu0 0.0
    %3207 = vmatpush1.msra.mxu0 0.0
    %3208 = vmatprep.subr.mxu0 0.0
    %3209 = vmatpush1.msra.mxu0 0.0
    %3210 = vmatprep.subr.mxu0 0.0
    %3211 = vmatpush1.msra.mxu0 0.0
    %3212 = vmatprep.subr.mxu0 0.0
    %3213 = vmatpush1.msra.mxu0 0.0
    %3214 = vmatprep.subr.mxu0 0.0
    %3215 = vmatpush1.msra.mxu0 0.0
    %3216 = vmatprep.subr.mxu0 0.0
    %3217 = vmatpush1.msra.mxu0 0.0
    %3218 = vmatprep.subr.mxu0 0.0
    %3219 = vmatpush1.msra.mxu0 0.0
    %3220 = vmatprep.mubr.f32.mxu0 0.0
    %3221 = vmatmul.mubr.f32.gmra.mrb[0].mxu0 %v3133
    %v3222 = vpop.f32.mrb[0].mxu0
    %v3223 = vadd.f32 0.0, %v3222
    %v3224 = vpop.f32.mrb[0].mxu0
    %3225 = vmatprep.mubr.f32.mxu0 0.0
    %3226 = vmatmul.mubr.f32.gmra.mrb[0].mxu0 %v3136
    %v3227 = vpop.f32.mrb[0].mxu0
    %v3228 = vadd.f32 0.0, %v3227
    %v3229 = vpop.f32.mrb[0].mxu0
    %3230 = vmatprep.mubr.f32.mxu0 0.0
    %3231 = vmatmul.mubr.f32.gmra.mrb[0].mxu0 %v3139
    %v3232 = vpop.f32.mrb[0].mxu0
    %v3233 = vadd.f32 0.0, %v3232
    %v3234 = vpop.f32.mrb[0].mxu0
    %3235 = vmatprep.mubr.f32.mxu0 0.0
    %3236 = vmatmul.mubr.f32.gmra.mrb[0].mxu0 %v3142
    %v3237 = vpop.f32.mrb[0].mxu0
    %v3238 = vadd.f32 0.0, %v3237
    %v3239 = vpop.f32.mrb[0].mxu0
    %3240 = vmatprep.mubr.f32.mxu0 0.0
    %3241 = vmatmul.mubr.f32.gmra.mrb[0].mxu0 %v3145
    %v3242 = vpop.f32.mrb[0].mxu0
    %v3243 = vadd.f32 0.0, %v3242
    %v3244 = vpop.f32.mrb[0].mxu0
    %3245 = vmatprep.mubr.f32.mxu0 0.0
    %3246 = vmatmul.mubr.f32.gmra.mrb[0].mxu0 %v3148
    %v3247 = vpop.f32.mrb[0].mxu0
    %v3248 = vadd.f32 0.0, %v3247
    %v3249 = vpop.f32.mrb[0].mxu0
    %3250 = vmatprep.mubr.f32.mxu0 0.0
    %3251 = vmatmul.mubr.f32.gmra.mrb[0].mxu0 %v3151
    %v3252 = vpop.f32.mrb[0].mxu0
    %v3253 = vadd.f32 0.0, %v3252
    %v3254 = vpop.f32.mrb[0].mxu0
    %3255 = vmatprep.mubr.f32.mxu0 0.0
    %3256 = vmatmul.mubr.f32.gmra.mrb[0].mxu0 %v3154
    %v3257 = vpop.f32.mrb[0].mxu0
    %v3258 = vadd.f32 0.0, %v3257
    %v3259 = vpop.f32.mrb[0].mxu0
    %3260 = vdwg.mxu0
    %v3261 = vadd.f32 %v3086, %v3223
    %v3262 = vadd.f32 %v3091, %v3228
    %v3263 = vadd.f32 %v3096, %v3233
    %v3264 = vadd.f32 %v3101, %v3238
    %v3265 = vadd.f32 %v3106, %v3243
    %v3266 = vadd.f32 %v3111, %v3248
    %v3267 = vadd.f32 %v3116, %v3253
    %v3268 = vadd.f32 %v3121, %v3258
    %v3269 = vld [vmem:[%s75] sm:$0xff]
    %v3270 = vld [vmem:[%s75 + $0x8] sm:$0xff]
    %v3271 = vld [vmem:[%s75 + $0x10] sm:$0xff]
    %v3272 = vld [vmem:[%s75 + $0x18] sm:$0xff]
    %v3273 = vld [vmem:[%s75 + $0x20] sm:$0xff]
    %v3274 = vld [vmem:[%s75 + $0x28] sm:$0xff]
    %v3275 = vld [vmem:[%s75 + $0x30] sm:$0xff]
    %v3276 = vld [vmem:[%s75 + $0x38] sm:$0xff]
    %3278 = vset.pattern.permute.xlu0 0
    %3279 = vperm.xlu0 %3278, %v3269
    %v3280 = vpop.permute.xlu0 %3279
    %3283 = vset.pattern.permute.xlu0 0
    %3284 = vperm.xlu0 %3283, %v3270
    %v3285 = vpop.permute.xlu0 %3284
    %3288 = vset.pattern.permute.xlu0 0
    %3289 = vperm.xlu0 %3288, %v3271
    %v3290 = vpop.permute.xlu0 %3289
    %3293 = vset.pattern.permute.xlu0 0
    %3294 = vperm.xlu0 %3293, %v3272
    %v3295 = vpop.permute.xlu0 %3294
    %3298 = vset.pattern.permute.xlu0 0
    %3299 = vperm.xlu0 %3298, %v3273
    %v3300 = vpop.permute.xlu0 %3299
    %3303 = vset.pattern.permute.xlu0 0
    %3304 = vperm.xlu0 %3303, %v3274
    %v3305 = vpop.permute.xlu0 %3304
    %3308 = vset.pattern.permute.xlu0 0
    %3309 = vperm.xlu0 %3308, %v3275
    %v3310 = vpop.permute.xlu0 %3309
    %3313 = vset.pattern.permute.xlu0 0
    %3314 = vperm.xlu0 %3313, %v3276
    %v3315 = vpop.permute.xlu0 %3314
    %v3317 = vadd.f32 %v3261, %v3280
    %v3318 = vadd.f32 %v3262, %v3285
    %v3319 = vadd.f32 %v3263, %v3290
    %v3320 = vadd.f32 %v3264, %v3295
    %v3321 = vadd.f32 %v3265, %v3300
    %v3322 = vadd.f32 %v3266, %v3305
    %v3323 = vadd.f32 %v3267, %v3310
    %v3324 = vadd.f32 %v3268, %v3315
    %3325 = vadd.xlane.f32.xlu0 %v3317
    %v3326 = vpop.xlane.xlu0 %3325
    %3327 = vadd.xlane.f32.xlu0 %v3318
    %v3328 = vpop.xlane.xlu0 %3327
    %3329 = vadd.xlane.f32.xlu0 %v3319
    %v3330 = vpop.xlane.xlu0 %3329
    %3331 = vadd.xlane.f32.xlu0 %v3320
    %v3332 = vpop.xlane.xlu0 %3331
    %3333 = vadd.xlane.f32.xlu0 %v3321
    %v3334 = vpop.xlane.xlu0 %3333
    %3335 = vadd.xlane.f32.xlu0 %v3322
    %v3336 = vpop.xlane.xlu0 %3335
    %3337 = vadd.xlane.f32.xlu0 %v3323
    %v3338 = vpop.xlane.xlu0 %3337
    %3339 = vadd.xlane.f32.xlu0 %v3324
    %v3340 = vpop.xlane.xlu0 %3339
    %v3341 = vmul.f32 %v3317, %v3317
    %v3342 = vmul.f32 %v3318, %v3318
    %v3343 = vmul.f32 %v3319, %v3319
    %v3344 = vmul.f32 %v3320, %v3320
    %v3345 = vmul.f32 %v3321, %v3321
    %v3346 = vmul.f32 %v3322, %v3322
    %v3347 = vmul.f32 %v3323, %v3323
    %v3348 = vmul.f32 %v3324, %v3324
    %3349 = vadd.xlane.f32.xlu0 %v3341
    %v3350 = vpop.xlane.xlu0 %3349
    %3351 = vadd.xlane.f32.xlu0 %v3342
    %v3352 = vpop.xlane.xlu0 %3351
    %3353 = vadd.xlane.f32.xlu0 %v3343
    %v3354 = vpop.xlane.xlu0 %3353
    %3355 = vadd.xlane.f32.xlu0 %v3344
    %v3356 = vpop.xlane.xlu0 %3355
    %3357 = vadd.xlane.f32.xlu0 %v3345
    %v3358 = vpop.xlane.xlu0 %3357
    %3359 = vadd.xlane.f32.xlu0 %v3346
    %v3360 = vpop.xlane.xlu0 %3359
    %3361 = vadd.xlane.f32.xlu0 %v3347
    %v3362 = vpop.xlane.xlu0 %3361
    %3363 = vadd.xlane.f32.xlu0 %v3348
    %v3364 = vpop.xlane.xlu0 %3363
    %v3365 = vmul.f32 %v3326, 0.0078125
    %v3366 = vmul.f32 %v3328, 0.0078125
    %v3367 = vmul.f32 %v3330, 0.0078125
    %v3368 = vmul.f32 %v3332, 0.0078125
    %v3369 = vmul.f32 %v3334, 0.0078125
    %v3370 = vmul.f32 %v3336, 0.0078125
    %v3371 = vmul.f32 %v3338, 0.0078125
    %v3372 = vmul.f32 %v3340, 0.0078125
    %v3373 = vmul.f32 %v3350, 0.0078125
    %v3374 = vmul.f32 %v3352, 0.0078125
    %v3375 = vmul.f32 %v3354, 0.0078125
    %v3376 = vmul.f32 %v3356, 0.0078125
    %v3377 = vmul.f32 %v3358, 0.0078125
    %v3378 = vmul.f32 %v3360, 0.0078125
    %v3379 = vmul.f32 %v3362, 0.0078125
    %v3380 = vmul.f32 %v3364, 0.0078125
    %v3381 = vmul.f32 %v3365, %v3365
    %v3382 = vmul.f32 %v3366, %v3366
    %v3383 = vmul.f32 %v3367, %v3367
    %v3384 = vmul.f32 %v3368, %v3368
    %v3385 = vmul.f32 %v3369, %v3369
    %v3386 = vmul.f32 %v3370, %v3370
    %v3387 = vmul.f32 %v3371, %v3371
    %v3388 = vmul.f32 %v3372, %v3372
    %v3389 = vsub.f32 %v3373, %v3381
    %v3390 = vsub.f32 %v3374, %v3382
    %v3391 = vsub.f32 %v3375, %v3383
    %v3392 = vsub.f32 %v3376, %v3384
    %v3393 = vsub.f32 %v3377, %v3385
    %v3394 = vsub.f32 %v3378, %v3386
    %v3395 = vsub.f32 %v3379, %v3387
    %v3396 = vsub.f32 %v3380, %v3388
    %v3397 = vmax.f32 %v3389, 0.0
    %v3398 = vmax.f32 %v3390, 0.0
    %v3399 = vmax.f32 %v3391, 0.0
    %v3400 = vmax.f32 %v3392, 0.0
    %v3401 = vmax.f32 %v3393, 0.0
    %v3402 = vmax.f32 %v3394, 0.0
    %v3403 = vmax.f32 %v3395, 0.0
    %v3404 = vmax.f32 %v3396, 0.0
    %v3405 = vld [vmem:[%s77] sm:$0xff]
    %v3406 = vld [vmem:[%s77 + $0x8] sm:$0xff]
    %v3407 = vld [vmem:[%s77 + $0x10] sm:$0xff]
    %v3408 = vld [vmem:[%s77 + $0x18] sm:$0xff]
    %v3409 = vld [vmem:[%s77 + $0x20] sm:$0xff]
    %v3410 = vld [vmem:[%s77 + $0x28] sm:$0xff]
    %v3411 = vld [vmem:[%s77 + $0x30] sm:$0xff]
    %v3412 = vld [vmem:[%s77 + $0x38] sm:$0xff]
    %v3413 = vadd.f32 %v3397, 1e-05
    %v3414 = vadd.f32 %v3398, 1e-05
    %v3415 = vadd.f32 %v3399, 1e-05
    %v3416 = vadd.f32 %v3400, 1e-05
    %v3417 = vadd.f32 %v3401, 1e-05
    %v3418 = vadd.f32 %v3402, 1e-05
    %v3419 = vadd.f32 %v3403, 1e-05
    %v3420 = vadd.f32 %v3404, 1e-05
    %v3421 = vrsqrt.pop %v3413
    %v3422 = vrsqrt.pop %v3414
    %v3423 = vrsqrt.pop %v3415
    %v3424 = vrsqrt.pop %v3416
    %v3425 = vrsqrt.pop %v3417
    %v3426 = vrsqrt.pop %v3418
    %v3427 = vrsqrt.pop %v3419
    %v3428 = vrsqrt.pop %v3420
    %v3429 = vmul.f32 %v3405, %v3421
    %v3430 = vmul.f32 %v3406, %v3422
    %v3431 = vmul.f32 %v3407, %v3423
    %v3432 = vmul.f32 %v3408, %v3424
    %v3433 = vmul.f32 %v3409, %v3425
    %v3434 = vmul.f32 %v3410, %v3426
    %v3435 = vmul.f32 %v3411, %v3427
    %v3436 = vmul.f32 %v3412, %v3428
    %v3437 = vld [vmem:[%s79] sm:$0xff]
    %v3438 = vld [vmem:[%s79 + $0x8] sm:$0xff]
    %v3439 = vld [vmem:[%s79 + $0x10] sm:$0xff]
    %v3440 = vld [vmem:[%s79 + $0x18] sm:$0xff]
    %v3441 = vld [vmem:[%s79 + $0x20] sm:$0xff]
    %v3442 = vld [vmem:[%s79 + $0x28] sm:$0xff]
    %v3443 = vld [vmem:[%s79 + $0x30] sm:$0xff]
    %v3444 = vld [vmem:[%s79 + $0x38] sm:$0xff]
    %v3445 = vmul.f32 %v3365, %v3429
    %v3446 = vmul.f32 %v3366, %v3430
    %v3447 = vmul.f32 %v3367, %v3431
    %v3448 = vmul.f32 %v3368, %v3432
    %v3449 = vmul.f32 %v3369, %v3433
    %v3450 = vmul.f32 %v3370, %v3434
    %v3451 = vmul.f32 %v3371, %v3435
    %v3452 = vmul.f32 %v3372, %v3436
    %v3453 = vsub.f32 %v3437, %v3445
    %v3454 = vsub.f32 %v3438, %v3446
    %v3455 = vsub.f32 %v3439, %v3447
    %v3456 = vsub.f32 %v3440, %v3448
    %v3457 = vsub.f32 %v3441, %v3449
    %v3458 = vsub.f32 %v3442, %v3450
    %v3459 = vsub.f32 %v3443, %v3451
    %v3460 = vsub.f32 %v3444, %v3452
    %3462 = vset.pattern.permute.xlu0 0
    %3463 = vperm.xlu0 %3462, %v3429
    %v3464 = vpop.permute.xlu0 %3463
    %3467 = vset.pattern.permute.xlu0 0
    %3468 = vperm.xlu0 %3467, %v3430
    %v3469 = vpop.permute.xlu0 %3468
    %3472 = vset.pattern.permute.xlu0 0
    %3473 = vperm.xlu0 %3472, %v3431
    %v3474 = vpop.permute.xlu0 %3473
    %3477 = vset.pattern.permute.xlu0 0
    %3478 = vperm.xlu0 %3477, %v3432
    %v3479 = vpop.permute.xlu0 %3478
    %3482 = vset.pattern.permute.xlu0 0
    %3483 = vperm.xlu0 %3482, %v3433
    %v3484 = vpop.permute.xlu0 %3483
    %3487 = vset.pattern.permute.xlu0 0
    %3488 = vperm.xlu0 %3487, %v3434
    %v3489 = vpop.permute.xlu0 %3488
    %3492 = vset.pattern.permute.xlu0 0
    %3493 = vperm.xlu0 %3492, %v3435
    %v3494 = vpop.permute.xlu0 %3493
    %3497 = vset.pattern.permute.xlu0 0
    %3498 = vperm.xlu0 %3497, %v3436
    %v3499 = vpop.permute.xlu0 %3498
    %v3501 = vmul.f32 %v3317, %v3464
    %v3502 = vmul.f32 %v3318, %v3469
    %v3503 = vmul.f32 %v3319, %v3474
    %v3504 = vmul.f32 %v3320, %v3479
    %v3505 = vmul.f32 %v3321, %v3484
    %v3506 = vmul.f32 %v3322, %v3489
    %v3507 = vmul.f32 %v3323, %v3494
    %v3508 = vmul.f32 %v3324, %v3499
    %3510 = vset.pattern.permute.xlu0 0
    %3511 = vperm.xlu0 %3510, %v3453
    %v3512 = vpop.permute.xlu0 %3511
    %3515 = vset.pattern.permute.xlu0 0
    %3516 = vperm.xlu0 %3515, %v3454
    %v3517 = vpop.permute.xlu0 %3516
    %3520 = vset.pattern.permute.xlu0 0
    %3521 = vperm.xlu0 %3520, %v3455
    %v3522 = vpop.permute.xlu0 %3521
    %3525 = vset.pattern.permute.xlu0 0
    %3526 = vperm.xlu0 %3525, %v3456
    %v3527 = vpop.permute.xlu0 %3526
    %3530 = vset.pattern.permute.xlu0 0
    %3531 = vperm.xlu0 %3530, %v3457
    %v3532 = vpop.permute.xlu0 %3531
    %3535 = vset.pattern.permute.xlu0 0
    %3536 = vperm.xlu0 %3535, %v3458
    %v3537 = vpop.permute.xlu0 %3536
    %3540 = vset.pattern.permute.xlu0 0
    %3541 = vperm.xlu0 %3540, %v3459
    %v3542 = vpop.permute.xlu0 %3541
    %3545 = vset.pattern.permute.xlu0 0
    %3546 = vperm.xlu0 %3545, %v3460
    %v3547 = vpop.permute.xlu0 %3546
    %v3549 = vadd.f32 %v3501, %v3512
    %v3550 = vadd.f32 %v3502, %v3517
    %v3551 = vadd.f32 %v3503, %v3522
    %v3552 = vadd.f32 %v3504, %v3527
    %v3553 = vadd.f32 %v3505, %v3532
    %v3554 = vadd.f32 %v3506, %v3537
    %v3555 = vadd.f32 %v3507, %v3542
    %v3556 = vadd.f32 %v3508, %v3547
    %v3557 = vmul.f32 %v3549, 0.5
    %v3558 = vmul.f32 %v3550, 0.5
    %v3559 = vmul.f32 %v3551, 0.5
    %v3560 = vmul.f32 %v3552, 0.5
    %v3561 = vmul.f32 %v3553, 0.5
    %v3562 = vmul.f32 %v3554, 0.5
    %v3563 = vmul.f32 %v3555, 0.5
    %v3564 = vmul.f32 %v3556, 0.5
    %v3565 = vtanh.pop %v3557
    %v3566 = vtanh.pop %v3558
    %v3567 = vtanh.pop %v3559
    %v3568 = vtanh.pop %v3560
    %v3569 = vtanh.pop %v3561
    %v3570 = vtanh.pop %v3562
    %v3571 = vtanh.pop %v3563
    %v3572 = vtanh.pop %v3564
    %v3573 = vmul.f32 %v3565, 0.5
    %v3574 = vmul.f32 %v3566, 0.5
    %v3575 = vmul.f32 %v3567, 0.5
    %v3576 = vmul.f32 %v3568, 0.5
    %v3577 = vmul.f32 %v3569, 0.5
    %v3578 = vmul.f32 %v3570, 0.5
    %v3579 = vmul.f32 %v3571, 0.5
    %v3580 = vmul.f32 %v3572, 0.5
    %v3581 = vadd.f32 %v3573, 0.5
    %v3582 = vadd.f32 %v3574, 0.5
    %v3583 = vadd.f32 %v3575, 0.5
    %v3584 = vadd.f32 %v3576, 0.5
    %v3585 = vadd.f32 %v3577, 0.5
    %v3586 = vadd.f32 %v3578, 0.5
    %v3587 = vadd.f32 %v3579, 0.5
    %v3588 = vadd.f32 %v3580, 0.5
    %3589 = vst.msk [vmem:[#allocation28] sm:$0xff] %vm749, %v3581
    %3590 = vst.msk [vmem:[#allocation28 + $0x8] sm:$0xff] %vm749, %v3582
    %3591 = vst.msk [vmem:[#allocation28 + $0x10] sm:$0xff] %vm749, %v3583
    %3592 = vst.msk [vmem:[#allocation28 + $0x18] sm:$0xff] %vm749, %v3584
    %3593 = vst.msk [vmem:[#allocation28 + $0x20] sm:$0xff] %vm749, %v3585
    %3594 = vst.msk [vmem:[#allocation28 + $0x28] sm:$0xff] %vm749, %v3586
    %3595 = vst.msk [vmem:[#allocation28 + $0x30] sm:$0xff] %vm749, %v3587
    %3596 = vst.msk [vmem:[#allocation28 + $0x38] sm:$0xff] %vm749, %v3588
    %3605 = vrot.lane.b32.xlu0 %v3581, 64
    %v3606 = vpop.permute.xlu0 %3605
    %3607 = vrot.lane.b32.xlu0 %v3582, 64
    %v3608 = vpop.permute.xlu0 %3607
    %3609 = vrot.lane.b32.xlu0 %v3583, 64
    %v3610 = vpop.permute.xlu0 %3609
    %3611 = vrot.lane.b32.xlu0 %v3584, 64
    %v3612 = vpop.permute.xlu0 %3611
    %3613 = vrot.lane.b32.xlu0 %v3585, 64
    %v3614 = vpop.permute.xlu0 %3613
    %3615 = vrot.lane.b32.xlu0 %v3586, 64
    %v3616 = vpop.permute.xlu0 %3615
    %3617 = vrot.lane.b32.xlu0 %v3587, 64
    %v3618 = vpop.permute.xlu0 %3617
    %3619 = vrot.lane.b32.xlu0 %v3588, 64
    %v3620 = vpop.permute.xlu0 %3619
    %s3629 = scalar_lea.vmem [#allocation28], 64
    %3630 = vst.msk [vmem:[%s3629] sm:$0xff] %vm749, %v3606
    %3631 = vst.msk [vmem:[%s3629 + $0x8] sm:$0xff] %vm749, %v3608
    %3632 = vst.msk [vmem:[%s3629 + $0x10] sm:$0xff] %vm749, %v3610
    %3633 = vst.msk [vmem:[%s3629 + $0x18] sm:$0xff] %vm749, %v3612
    %3634 = vst.msk [vmem:[%s3629 + $0x20] sm:$0xff] %vm749, %v3614
    %3635 = vst.msk [vmem:[%s3629 + $0x28] sm:$0xff] %vm749, %v3616
    %3636 = vst.msk [vmem:[%s3629 + $0x30] sm:$0xff] %vm749, %v3618
    %3637 = vst.msk [vmem:[%s3629 + $0x38] sm:$0xff] %vm749, %v3620
    %3638 = vrot.lane.b32.xlu0 %v3581, 1
    %v3639 = vpop.permute.xlu0 %3638
    %3640 = vrot.lane.b32.xlu0 %v3582, 1
    %v3641 = vpop.permute.xlu0 %3640
    %3642 = vrot.lane.b32.xlu0 %v3583, 1
    %v3643 = vpop.permute.xlu0 %3642
    %3644 = vrot.lane.b32.xlu0 %v3584, 1
    %v3645 = vpop.permute.xlu0 %3644
    %3646 = vrot.lane.b32.xlu0 %v3585, 1
    %v3647 = vpop.permute.xlu0 %3646
    %3648 = vrot.lane.b32.xlu0 %v3586, 1
    %v3649 = vpop.permute.xlu0 %3648
    %3650 = vrot.lane.b32.xlu0 %v3587, 1
    %v3651 = vpop.permute.xlu0 %3650
    %3652 = vrot.lane.b32.xlu0 %v3588, 1
    %v3653 = vpop.permute.xlu0 %3652
    %v3654 = vmul.f32 %v3639, %v819
    %v3655 = vmul.f32 %v3641, %v819
    %v3656 = vmul.f32 %v3643, %v819
    %v3657 = vmul.f32 %v3645, %v819
    %v3658 = vmul.f32 %v3647, %v819
    %v3659 = vmul.f32 %v3649, %v819
    %v3660 = vmul.f32 %v3651, %v819
    %v3661 = vmul.f32 %v3653, %v819
    %3662 = vrot.lane.b32.xlu0 %v3581, 127
    %v3663 = vpop.permute.xlu0 %3662
    %3664 = vrot.lane.b32.xlu0 %v3582, 127
    %v3665 = vpop.permute.xlu0 %3664
    %3666 = vrot.lane.b32.xlu0 %v3583, 127
    %v3667 = vpop.permute.xlu0 %3666
    %3668 = vrot.lane.b32.xlu0 %v3584, 127
    %v3669 = vpop.permute.xlu0 %3668
    %3670 = vrot.lane.b32.xlu0 %v3585, 127
    %v3671 = vpop.permute.xlu0 %3670
    %3672 = vrot.lane.b32.xlu0 %v3586, 127
    %v3673 = vpop.permute.xlu0 %3672
    %3674 = vrot.lane.b32.xlu0 %v3587, 127
    %v3675 = vpop.permute.xlu0 %3674
    %3676 = vrot.lane.b32.xlu0 %v3588, 127
    %v3677 = vpop.permute.xlu0 %3676
    %v3678 = vmul.f32 %v3663, %v849
    %v3679 = vmul.f32 %v3665, %v849
    %v3680 = vmul.f32 %v3667, %v849
    %v3681 = vmul.f32 %v3669, %v849
    %v3682 = vmul.f32 %v3671, %v849
    %v3683 = vmul.f32 %v3673, %v849
    %v3684 = vmul.f32 %v3675, %v849
    %v3685 = vmul.f32 %v3677, %v849
    %v3686 = vld [vmem:[%s83] sm:$0x1]
    %v3687 = vld [vmem:[%s81] sm:$0x1]
    %v3689 = vsel %vm749, %v3687, 0
    %3691 = vmatprep.subr.mxu0 0.0
    %3692 = vmatpush1.msra.mxu0 %v3654
    %3693 = vmatprep.subr.mxu0 0.0
    %3694 = vmatpush1.msra.mxu0 %v3655
    %3695 = vmatprep.subr.mxu0 0.0
    %3696 = vmatpush1.msra.mxu0 %v3656
    %3697 = vmatprep.subr.mxu0 0.0
    %3698 = vmatpush1.msra.mxu0 %v3657
    %3699 = vmatprep.subr.mxu0 0.0
    %3700 = vmatpush1.msra.mxu0 %v3658
    %3701 = vmatprep.subr.mxu0 0.0
    %3702 = vmatpush1.msra.mxu0 %v3659
    %3703 = vmatprep.subr.mxu0 0.0
    %3704 = vmatpush1.msra.mxu0 %v3660
    %3705 = vmatprep.subr.mxu0 0.0
    %3706 = vmatpush1.msra.mxu0 %v3661
    %3707 = vmatprep.subr.mxu0 0.0
    %3708 = vmatpush1.msra.mxu0 0.0
    %3709 = vmatprep.subr.mxu0 0.0
    %3710 = vmatpush1.msra.mxu0 0.0
    %3711 = vmatprep.subr.mxu0 0.0
    %3712 = vmatpush1.msra.mxu0 0.0
    %3713 = vmatprep.subr.mxu0 0.0
    %3714 = vmatpush1.msra.mxu0 0.0
    %3715 = vmatprep.subr.mxu0 0.0
    %3716 = vmatpush1.msra.mxu0 0.0
    %3717 = vmatprep.subr.mxu0 0.0
    %3718 = vmatpush1.msra.mxu0 0.0
    %3719 = vmatprep.subr.mxu0 0.0
    %3720 = vmatpush1.msra.mxu0 0.0
    %3721 = vmatprep.subr.mxu0 0.0
    %3722 = vmatpush1.msra.mxu0 0.0
    %3723 = vmatprep.subr.mxu0 0.0
    %3724 = vmatpush1.msra.mxu0 0.0
    %3725 = vmatprep.subr.mxu0 0.0
    %3726 = vmatpush1.msra.mxu0 0.0
    %3727 = vmatprep.subr.mxu0 0.0
    %3728 = vmatpush1.msra.mxu0 0.0
    %3729 = vmatprep.subr.mxu0 0.0
    %3730 = vmatpush1.msra.mxu0 0.0
    %3731 = vmatprep.subr.mxu0 0.0
    %3732 = vmatpush1.msra.mxu0 0.0
    %3733 = vmatprep.subr.mxu0 0.0
    %3734 = vmatpush1.msra.mxu0 0.0
    %3735 = vmatprep.subr.mxu0 0.0
    %3736 = vmatpush1.msra.mxu0 0.0
    %3737 = vmatprep.subr.mxu0 0.0
    %3738 = vmatpush1.msra.mxu0 0.0
    %3739 = vmatprep.subr.mxu0 0.0
    %3740 = vmatpush1.msra.mxu0 0.0
    %3741 = vmatprep.subr.mxu0 0.0
    %3742 = vmatpush1.msra.mxu0 0.0
    %3743 = vmatprep.subr.mxu0 0.0
    %3744 = vmatpush1.msra.mxu0 0.0
    %3745 = vmatprep.subr.mxu0 0.0
    %3746 = vmatpush1.msra.mxu0 0.0
    %3747 = vmatprep.subr.mxu0 0.0
    %3748 = vmatpush1.msra.mxu0 0.0
    %3749 = vmatprep.subr.mxu0 0.0
    %3750 = vmatpush1.msra.mxu0 0.0
    %3751 = vmatprep.subr.mxu0 0.0
    %3752 = vmatpush1.msra.mxu0 0.0
    %3753 = vmatprep.subr.mxu0 0.0
    %3754 = vmatpush1.msra.mxu0 0.0
    %3755 = vmatprep.mubr.f32.mxu0 0.0
    %3756 = vmatmul.mubr.f32.gmra.mrb[0].mxu0 %v3689
    %v3757 = vpop.f32.mrb[0].mxu0
    %v3758 = vadd.f32 0.0, %v3757
    %v3759 = vpop.f32.mrb[0].mxu0
    %3760 = vdwg.mxu0
    %v3762 = vsel %vm749, %v3686, 0
    %3764 = vmatprep.subr.mxu0 0.0
    %3765 = vmatpush1.msra.mxu0 %v3581
    %3766 = vmatprep.subr.mxu0 0.0
    %3767 = vmatpush1.msra.mxu0 %v3582
    %3768 = vmatprep.subr.mxu0 0.0
    %3769 = vmatpush1.msra.mxu0 %v3583
    %3770 = vmatprep.subr.mxu0 0.0
    %3771 = vmatpush1.msra.mxu0 %v3584
    %3772 = vmatprep.subr.mxu0 0.0
    %3773 = vmatpush1.msra.mxu0 %v3585
    %3774 = vmatprep.subr.mxu0 0.0
    %3775 = vmatpush1.msra.mxu0 %v3586
    %3776 = vmatprep.subr.mxu0 0.0
    %3777 = vmatpush1.msra.mxu0 %v3587
    %3778 = vmatprep.subr.mxu0 0.0
    %3779 = vmatpush1.msra.mxu0 %v3588
    %3780 = vmatprep.subr.mxu0 0.0
    %3781 = vmatpush1.msra.mxu0 0.0
    %3782 = vmatprep.subr.mxu0 0.0
    %3783 = vmatpush1.msra.mxu0 0.0
    %3784 = vmatprep.subr.mxu0 0.0
    %3785 = vmatpush1.msra.mxu0 0.0
    %3786 = vmatprep.subr.mxu0 0.0
    %3787 = vmatpush1.msra.mxu0 0.0
    %3788 = vmatprep.subr.mxu0 0.0
    %3789 = vmatpush1.msra.mxu0 0.0
    %3790 = vmatprep.subr.mxu0 0.0
    %3791 = vmatpush1.msra.mxu0 0.0
    %3792 = vmatprep.subr.mxu0 0.0
    %3793 = vmatpush1.msra.mxu0 0.0
    %3794 = vmatprep.subr.mxu0 0.0
    %3795 = vmatpush1.msra.mxu0 0.0
    %3796 = vmatprep.subr.mxu0 0.0
    %3797 = vmatpush1.msra.mxu0 0.0
    %3798 = vmatprep.subr.mxu0 0.0
    %3799 = vmatpush1.msra.mxu0 0.0
    %3800 = vmatprep.subr.mxu0 0.0
    %3801 = vmatpush1.msra.mxu0 0.0
    %3802 = vmatprep.subr.mxu0 0.0
    %3803 = vmatpush1.msra.mxu0 0.0
    %3804 = vmatprep.subr.mxu0 0.0
    %3805 = vmatpush1.msra.mxu0 0.0
    %3806 = vmatprep.subr.mxu0 0.0
    %3807 = vmatpush1.msra.mxu0 0.0
    %3808 = vmatprep.subr.mxu0 0.0
    %3809 = vmatpush1.msra.mxu0 0.0
    %3810 = vmatprep.subr.mxu0 0.0
    %3811 = vmatpush1.msra.mxu0 0.0
    %3812 = vmatprep.subr.mxu0 0.0
    %3813 = vmatpush1.msra.mxu0 0.0
    %3814 = vmatprep.subr.mxu0 0.0
    %3815 = vmatpush1.msra.mxu0 0.0
    %3816 = vmatprep.subr.mxu0 0.0
    %3817 = vmatpush1.msra.mxu0 0.0
    %3818 = vmatprep.subr.mxu0 0.0
    %3819 = vmatpush1.msra.mxu0 0.0
    %3820 = vmatprep.subr.mxu0 0.0
    %3821 = vmatpush1.msra.mxu0 0.0
    %3822 = vmatprep.subr.mxu0 0.0
    %3823 = vmatpush1.msra.mxu0 0.0
    %3824 = vmatprep.subr.mxu0 0.0
    %3825 = vmatpush1.msra.mxu0 0.0
    %3826 = vmatprep.subr.mxu0 0.0
    %3827 = vmatpush1.msra.mxu0 0.0
    %3828 = vmatprep.mubr.f32.mxu0 0.0
    %3829 = vmatmul.mubr.f32.gmra.mrb[0].mxu0 %v3762
    %v3830 = vpop.f32.mrb[0].mxu0
    %v3831 = vadd.f32 %v3758, %v3830
    %v3832 = vpop.f32.mrb[0].mxu0
    %3833 = vdwg.mxu0
    %v3834 = vld [vmem:[%s85] sm:$0x1]
    %v3836 = vsel %vm749, %v3834, 0
    %3838 = vmatprep.subr.mxu0 0.0
    %3839 = vmatpush1.msra.mxu0 %v3678
    %3840 = vmatprep.subr.mxu0 0.0
    %3841 = vmatpush1.msra.mxu0 %v3679
    %3842 = vmatprep.subr.mxu0 0.0
    %3843 = vmatpush1.msra.mxu0 %v3680
    %3844 = vmatprep.subr.mxu0 0.0
    %3845 = vmatpush1.msra.mxu0 %v3681
    %3846 = vmatprep.subr.mxu0 0.0
    %3847 = vmatpush1.msra.mxu0 %v3682
    %3848 = vmatprep.subr.mxu0 0.0
    %3849 = vmatpush1.msra.mxu0 %v3683
    %3850 = vmatprep.subr.mxu0 0.0
    %3851 = vmatpush1.msra.mxu0 %v3684
    %3852 = vmatprep.subr.mxu0 0.0
    %3853 = vmatpush1.msra.mxu0 %v3685
    %3854 = vmatprep.subr.mxu0 0.0
    %3855 = vmatpush1.msra.mxu0 0.0
    %3856 = vmatprep.subr.mxu0 0.0
    %3857 = vmatpush1.msra.mxu0 0.0
    %3858 = vmatprep.subr.mxu0 0.0
    %3859 = vmatpush1.msra.mxu0 0.0
    %3860 = vmatprep.subr.mxu0 0.0
    %3861 = vmatpush1.msra.mxu0 0.0
    %3862 = vmatprep.subr.mxu0 0.0
    %3863 = vmatpush1.msra.mxu0 0.0
    %3864 = vmatprep.subr.mxu0 0.0
    %3865 = vmatpush1.msra.mxu0 0.0
    %3866 = vmatprep.subr.mxu0 0.0
    %3867 = vmatpush1.msra.mxu0 0.0
    %3868 = vmatprep.subr.mxu0 0.0
    %3869 = vmatpush1.msra.mxu0 0.0
    %3870 = vmatprep.subr.mxu0 0.0
    %3871 = vmatpush1.msra.mxu0 0.0
    %3872 = vmatprep.subr.mxu0 0.0
    %3873 = vmatpush1.msra.mxu0 0.0
    %3874 = vmatprep.subr.mxu0 0.0
    %3875 = vmatpush1.msra.mxu0 0.0
    %3876 = vmatprep.subr.mxu0 0.0
    %3877 = vmatpush1.msra.mxu0 0.0
    %3878 = vmatprep.subr.mxu0 0.0
    %3879 = vmatpush1.msra.mxu0 0.0
    %3880 = vmatprep.subr.mxu0 0.0
    %3881 = vmatpush1.msra.mxu0 0.0
    %3882 = vmatprep.subr.mxu0 0.0
    %3883 = vmatpush1.msra.mxu0 0.0
    %3884 = vmatprep.subr.mxu0 0.0
    %3885 = vmatpush1.msra.mxu0 0.0
    %3886 = vmatprep.subr.mxu0 0.0
    %3887 = vmatpush1.msra.mxu0 0.0
    %3888 = vmatprep.subr.mxu0 0.0
    %3889 = vmatpush1.msra.mxu0 0.0
    %3890 = vmatprep.subr.mxu0 0.0
    %3891 = vmatpush1.msra.mxu0 0.0
    %3892 = vmatprep.subr.mxu0 0.0
    %3893 = vmatpush1.msra.mxu0 0.0
    %3894 = vmatprep.subr.mxu0 0.0
    %3895 = vmatpush1.msra.mxu0 0.0
    %3896 = vmatprep.subr.mxu0 0.0
    %3897 = vmatpush1.msra.mxu0 0.0
    %3898 = vmatprep.subr.mxu0 0.0
    %3899 = vmatpush1.msra.mxu0 0.0
    %3900 = vmatprep.subr.mxu0 0.0
    %3901 = vmatpush1.msra.mxu0 0.0
    %3902 = vmatprep.mubr.f32.mxu0 0.0
    %3903 = vmatmul.mubr.f32.gmra.mrb[0].mxu0 %v3836
    %v3904 = vpop.f32.mrb[0].mxu0
    %v3905 = vadd.f32 0.0, %v3904
    %v3906 = vpop.f32.mrb[0].mxu0
    %3907 = vdwg.mxu0
    %v3908 = vadd.f32 %v3831, %v3905
    %v3909 = vld [vmem:[#allocation15] sm:$0x1]
    %3911 = vset.pattern.permute.xlu0 0
    %3912 = vperm.xlu0 %3911, %v3909
    %v3913 = vpop.permute.xlu0 %3912
    %v3915 = vlaneseq
    %v3916 = vshrl.u32 %v3915, 7
    %v3917 = vsub.s32 0, %v3916
    %v3918 = vrot.slane %v3913, %v3917
    %v3919 = vadd.f32 %v3908, %v3918
    %v3920 = vsel %vm1929, %v3919, 0.0
    %3921 = vadd.xlane.f32.xlu0 %v3920
    %v3922 = vpop.xlane.xlu0 %3921
    %v3923 = vmul.f32 %v3919, %v3919
    %v3924 = vsel %vm1929, %v3923, 0.0
    %3925 = vadd.xlane.f32.xlu0 %v3924
    %v3926 = vpop.xlane.xlu0 %3925
    %v3927 = vmul.f32 %v3922, 0.0078125
    %v3928 = vmul.f32 %v3926, 0.0078125
    %v3929 = vmul.f32 %v3927, %v3927
    %v3930 = vsub.f32 %v3928, %v3929
    %v3931 = vmax.f32 %v3930, 0.0
    %v3932 = vld [vmem:[#allocation16] sm:$0x1]
    %v3933 = vadd.f32 %v3931, 1e-05
    %v3934 = vrsqrt.pop %v3933
    %v3935 = vmul.f32 %v3932, %v3934
    %v3936 = vld [vmem:[#allocation17] sm:$0x1]
    %v3937 = vmul.f32 %v3927, %v3935
    %v3938 = vsub.f32 %v3936, %v3937
    %3940 = vset.pattern.permute.xlu0 0
    %3941 = vperm.xlu0 %3940, %v3935
    %v3942 = vpop.permute.xlu0 %3941
    %v3944 = vlaneseq
    %v3945 = vshrl.u32 %v3944, 7
    %v3946 = vsub.s32 0, %v3945
    %v3947 = vrot.slane %v3942, %v3946
    %v3948 = vmul.f32 %v3919, %v3947
    %3950 = vset.pattern.permute.xlu0 0
    %3951 = vperm.xlu0 %3950, %v3938
    %v3952 = vpop.permute.xlu0 %3951
    %v3954 = vlaneseq
    %v3955 = vshrl.u32 %v3954, 7
    %v3956 = vsub.s32 0, %v3955
    %v3957 = vrot.slane %v3952, %v3956
    %v3958 = vadd.f32 %v3948, %v3957
    %v3959 = vmul.f32 %v3958, 0.5
    %v3960 = vtanh.pop %v3959
    %v3961 = vmul.f32 %v3960, 0.5
    %v3962 = vadd.f32 %v3961, 0.5
    %3963 = vst.msk [vmem:[#allocation29] sm:$0x1] %vm1973, %v3962
    %3965 = vrot.lane.b32.xlu0 %v3962, 64
    %v3966 = vpop.permute.xlu0 %3965
    %s3968 = scalar_lea.vmem [#allocation29], 1
    %3969 = vst.msk [vmem:[%s3968] sm:$0x1] %vm1973, %v3966
    // Predicated region
    $region194: #{tpu_custom_call.1} parent=1 // pred_check
      _
    $region195: #{tpu_custom_call.1} parent=1 // pred_check_branch
      %3971 = sbr.rel (0) target = $region197
    $region196: #{tpu_custom_call.1} parent=1 // pred_region
      %s3973 = ssub.s32 2048, 2048
      %3974 = vsyncadd [#allocation19], %s3973
      %s3975 = sshll.u32 [#allocation18], 4
      %s3976 = int_to_ptr.vmem [resolvable:$true] %s3975
      %3981 = dma.vmem_to_hbm [thread:$0]  %s3976, 2048, %s97, [#allocation19], 128, 128, 8
    $region197: #{tpu_custom_call.1} parent=1 // pred_fallthru
      _
    // Predicated region
    $region198: #{tpu_custom_call.1} parent=1 // pred_check
      _
    $region199: #{tpu_custom_call.1} parent=1 // pred_check_branch
      %3983 = sbr.rel (0) target = $region201
    $region200: #{tpu_custom_call.1} parent=1 // pred_region
      %s3985 = ssub.s32 2048, 2048
      %3986 = vsyncadd [#allocation21], %s3985
      %s3987 = sshll.u32 [#allocation20], 4
      %s3988 = int_to_ptr.vmem [resolvable:$true] %s3987
      %3993 = dma.vmem_to_hbm [thread:$0]  %s3988, 2048, %s99, [#allocation21], 128, 128, 8
    $region201: #{tpu_custom_call.1} parent=1 // pred_fallthru
      _
    // Predicated region
    $region202: #{tpu_custom_call.1} parent=1 // pred_check
      _
    $region203: #{tpu_custom_call.1} parent=1 // pred_check_branch
      %3995 = sbr.rel (0) target = $region205
    $region204: #{tpu_custom_call.1} parent=1 // pred_region
      %s3997 = ssub.s32 32, 32
      %3998 = vsyncadd [#allocation21], %s3997
      %s3999 = sshll.u32 [#allocation22], 4
      %s4000 = int_to_ptr.vmem [resolvable:$true] %s3999
      %4005 = dma.vmem_to_hbm [thread:$0]  %s4000, 32, %s101, [#allocation21], 16, 16, 1
    $region205: #{tpu_custom_call.1} parent=1 // pred_fallthru
      _
    // Predicated region
    $region206: #{tpu_custom_call.1} parent=1 // pred_check
      _
    $region207: #{tpu_custom_call.1} parent=1 // pred_check_branch
      %4007 = sbr.rel (0) target = $region209
    $region208: #{tpu_custom_call.1} parent=1 // pred_region
      %s4009 = ssub.s32 32, 32
      %4010 = vsyncadd [#allocation24], %s4009
      %s4011 = sshll.u32 [#allocation23], 4
      %s4012 = int_to_ptr.vmem [resolvable:$true] %s4011
      %4017 = dma.vmem_to_hbm [thread:$0]  %s4012, 32, %s103, [#allocation24], 16, 16, 1
    $region209: #{tpu_custom_call.1} parent=1 // pred_fallthru
      _
    // Predicated region
    $region210: #{tpu_custom_call.1} parent=1 // pred_check
      _
    $region211: #{tpu_custom_call.1} parent=1 // pred_check_branch
      %4019 = sbr.rel (0) target = $region213
    $region212: #{tpu_custom_call.1} parent=1 // pred_region
      %s4021 = ssub.s32 32, 32
      %4022 = vsyncadd [#allocation24], %s4021
      %s4023 = sshll.u32 [#allocation25], 4
      %s4024 = int_to_ptr.vmem [resolvable:$true] %s4023
      %4029 = dma.vmem_to_hbm [thread:$0]  %s4024, 32, %s105, [#allocation24], 16, 16, 1
    $region213: #{tpu_custom_call.1} parent=1 // pred_fallthru
      _
    // Predicated region
    $region214: #{tpu_custom_call.1} parent=1 // pred_check
      _
    $region215: #{tpu_custom_call.1} parent=1 // pred_check_branch
      %4031 = sbr.rel (0) target = $region217
    $region216: #{tpu_custom_call.1} parent=1 // pred_region
      %s4033 = ssub.s32 2048, 2048
      %4034 = vsyncadd [#allocation27], %s4033
      %s4035 = sshll.u32 [#allocation26], 4
      %s4036 = int_to_ptr.vmem [resolvable:$true] %s4035
      %4041 = dma.vmem_to_hbm [thread:$0]  %s4036, 2048, %s107, [#allocation27], 128, 128, 8
    $region217: #{tpu_custom_call.1} parent=1 // pred_fallthru
      _
    // Predicated region
    $region218: #{tpu_custom_call.1} parent=1 // pred_check
      _
    $region219: #{tpu_custom_call.1} parent=1 // pred_check_branch
      %4043 = sbr.rel (0) target = $region221
    $region220: #{tpu_custom_call.1} parent=1 // pred_region
      %s4045 = ssub.s32 2048, 2048
      %4046 = vsyncadd [#allocation27], %s4045
      %s4047 = sshll.u32 [#allocation28], 4
      %s4048 = int_to_ptr.vmem [resolvable:$true] %s4047
      %4053 = dma.vmem_to_hbm [thread:$0]  %s4048, 2048, %s109, [#allocation27], 128, 128, 8
    $region221: #{tpu_custom_call.1} parent=1 // pred_fallthru
      _
    // Predicated region
    $region222: #{tpu_custom_call.1} parent=1 // pred_check
      _
    $region223: #{tpu_custom_call.1} parent=1 // pred_check_branch
      %4055 = sbr.rel (0) target = $region225
    $region224: #{tpu_custom_call.1} parent=1 // pred_region
      %s4057 = ssub.s32 32, 32
      %4058 = vsyncadd [#allocation30], %s4057
      %s4059 = sshll.u32 [#allocation29], 4
      %s4060 = int_to_ptr.vmem [resolvable:$true] %s4059
      %4065 = dma.vmem_to_hbm [thread:$0]  %s4060, 32, %s111, [#allocation30], 16, 16, 1
    $region225: #{tpu_custom_call.1} parent=1 // pred_fallthru
      _
    // Predicated region
    $region226: #{tpu_custom_call.1} parent=1 // pred_check
      _
    $region227: #{tpu_custom_call.1} parent=1 // pred_check_branch
      %4067 = sbr.rel (0) target = $region229
    $region228: #{tpu_custom_call.1} parent=1 // pred_region
      %s4069 = ssub.s32 32, 32
      %4070 = vsyncadd [#allocation30], %s4069
      %s4072 = sshll.u32 [#allocation31], 4
      %s4073 = int_to_ptr.vmem [resolvable:$true] %s4072
      %4075 = dma.vmem_to_hbm [thread:$0]  %s4073, 32, %s113, [#allocation30]
    $region229: #{tpu_custom_call.1} parent=1 // pred_fallthru
      _
    // Predicated region
    $region230: #{tpu_custom_call.1} parent=1 // pred_check
      _
    $region231: #{tpu_custom_call.1} parent=1 // pred_check_branch
      %4077 = sbr.rel (0) target = $region233
    $region232: #{tpu_custom_call.1} parent=1 // pred_region
      %4078 = dma.done [#allocation19], 2048
    $region233: #{tpu_custom_call.1} parent=1 // pred_fallthru
      _
    // Predicated region
    $region234: #{tpu_custom_call.1} parent=1 // pred_check
      _
    $region235: #{tpu_custom_call.1} parent=1 // pred_check_branch
      %4080 = sbr.rel (0) target = $region237
    $region236: #{tpu_custom_call.1} parent=1 // pred_region
      %4081 = dma.done [#allocation21], 2048
    $region237: #{tpu_custom_call.1} parent=1 // pred_fallthru
      _
    // Predicated region
    $region238: #{tpu_custom_call.1} parent=1 // pred_check
      _
    $region239: #{tpu_custom_call.1} parent=1 // pred_check_branch
      %4083 = sbr.rel (0) target = $region241
    $region240: #{tpu_custom_call.1} parent=1 // pred_region
      %4084 = dma.done [#allocation21], 32
    $region241: #{tpu_custom_call.1} parent=1 // pred_fallthru
      _
    // Predicated region
    $region242: #{tpu_custom_call.1} parent=1 // pred_check
      _
    $region243: #{tpu_custom_call.1} parent=1 // pred_check_branch
      %4086 = sbr.rel (0) target = $region245
    $region244: #{tpu_custom_call.1} parent=1 // pred_region
      %4087 = dma.done [#allocation24], 32
    $region245: #{tpu_custom_call.1} parent=1 // pred_fallthru
      _
    // Predicated region
    $region246: #{tpu_custom_call.1} parent=1 // pred_check
      _
    $region247: #{tpu_custom_call.1} parent=1 // pred_check_branch
      %4089 = sbr.rel (0) target = $region249
    $region248: #{tpu_custom_call.1} parent=1 // pred_region
      %4090 = dma.done [#allocation24], 32
    $region249: #{tpu_custom_call.1} parent=1 // pred_fallthru
      _
    // Predicated region
    $region250: #{tpu_custom_call.1} parent=1 // pred_check
      _
    $region251: #{tpu_custom_call.1} parent=1 // pred_check_branch
      %4092 = sbr.rel (0) target = $region253
    $region252: #{tpu_custom_call.1} parent=1 // pred_region
      %4093 = dma.done [#allocation27], 2048
    $region253: #{tpu_custom_call.1} parent=1 // pred_fallthru
      _
    // Predicated region
    $region254: #{tpu_custom_call.1} parent=1 // pred_check
      _
    $region255: #{tpu_custom_call.1} parent=1 // pred_check_branch
      %4095 = sbr.rel (0) target = $region257
    $region256: #{tpu_custom_call.1} parent=1 // pred_region
      %4096 = dma.done [#allocation27], 2048
    $region257: #{tpu_custom_call.1} parent=1 // pred_fallthru
      _
    // Predicated region
    $region258: #{tpu_custom_call.1} parent=1 // pred_check
      _
    $region259: #{tpu_custom_call.1} parent=1 // pred_check_branch
      %4098 = sbr.rel (0) target = $region261
    $region260: #{tpu_custom_call.1} parent=1 // pred_region
      %4099 = dma.done [#allocation30], 32
    $region261: #{tpu_custom_call.1} parent=1 // pred_fallthru
      _
    // Predicated region
    $region262: #{tpu_custom_call.1} parent=1 // pred_check
      _
    $region263: #{tpu_custom_call.1} parent=1 // pred_check_branch
      %4101 = sbr.rel (0) target = $region265
    $region264: #{tpu_custom_call.1} parent=1 // pred_region
      %4102 = dma.done [#allocation30], 32
    $region265: #{tpu_custom_call.1} parent=1 // pred_fallthru
      _
    %4103 = vsyncpa [#allocation19], 1
    %4104 = vsyncpa [#allocation21], 1
    %4105 = vsyncpa [#allocation24], 1
    %4106 = vsyncpa [#allocation27], 1
    %4107 = vsyncpa [#allocation30], 1

</llo_original>
